<compile_context>
chip_gen: v6e
topology: v6e:2x2x1
jax: 0.10.0
libtpu: 0.0.40
codegen_flags: <defaults>
</compile_context>

<pallas_src>
import numpy as np
import jax
import jax.numpy as jnp
from jax.experimental import pallas as pl
from jax.experimental.pallas import tpu as pltpu


# ----------------------------------------------------------------------------
# Fused multi-layer bidirectional LSTM kernel (single pallas_call, no grid)
# ----------------------------------------------------------------------------
def _make_bilstm_kernel(num_layers, T, B, H):
    """Builds a kernel closed over the static layer/shape structure.

    Ref order: x, mask, [W_f, b_f, W_b, b_b] * num_layers, out, buf_a, buf_b
      x    : (T, B, D_in)      f32
      mask : (T, B, H)         f32 in {0, 1}   (pre-broadcast to H lanes)
      W    : (D_l + H, 4H)     f32  stacked [W_ih; W_hh]
      b    : (1, 4H)           f32
      out  : (T, B, 2H)        f32  last layer's bidirectional output
      buf_a/buf_b : (T, B, 2H) f32  VMEM ping/pong inter-layer activations
    """

    def kernel(*refs):
        x_ref, mask_ref = refs[0], refs[1]
        wb_refs = refs[2:2 + 4 * num_layers]
        out_ref = refs[2 + 4 * num_layers]
        buf_a, buf_b = refs[2 + 4 * num_layers + 1:]

        def run_direction(src_ref, dst_ref, w_ref, b_ref, reverse, col_off):
            # Hoist weight/bias loads and the bias broadcast out of the time
            # loop (JAX does not CSE broadcast_in_dim inside the loop body).
            w = w_ref[...]                                        # (D_l+H, 4H)
            b = jnp.broadcast_to(b_ref[...], (B, 4 * H))          # (B, 4H)

            def step(s, carry):
                h, c = carry
                t = (T - 1 - s) if reverse else s                 # no HBM reverse
                xt = src_ref[t]                                   # (B, D_l)
                m = mask_ref[t]                                   # (B, H)
                # Fused [x_t, h] @ [W_ih; W_hh]: one MXU push per step.
                xh = jnp.concatenate([xt, h], axis=-1)            # (B, D_l+H)
                gates = jnp.dot(xh, w,
                                preferred_element_type=jnp.float32) + b
                # Full-width (B, 4H = 128-lane) transcendentals on the EUP;
                # the remaining H-wide extracts ride the XLU slot (which has
                # slack here), and h must be narrowed to H lanes anyway for
                # the recurrence matmul / output write.
                sg = jax.nn.sigmoid(gates)
                th = jnp.tanh(gates)
                i = sg[:, 0:H]
                f = sg[:, H:2 * H]
                g = th[:, 2 * H:3 * H]
                o = sg[:, 3 * H:4 * H]
                c_new = f * c + i * g
                h_new = o * jnp.tanh(c_new)
                # Packed-sequence semantics: state advances only on valid steps.
                valid = m > 0.5
                h = jnp.where(valid, h_new, h)
                c = jnp.where(valid, c_new, c)
                dst_ref[t, :, col_off:col_off + H] = h
                return h, c

            zeros = jnp.zeros((B, H), jnp.float32)
            jax.lax.fori_loop(0, T, step, (zeros, zeros), unroll=True)

        # TODO(synk): on v7x the independent fwd/bwd directions could be split
        # across the two TensorCores (core_map / direction-parallel grid axis);
        # at these sizes the fused single-core kernel is latency-bound, so the
        # split is not taken here.
        src = x_ref
        for layer in range(num_layers):
            w_f, b_f, w_b, b_b = wb_refs[4 * layer:4 * layer + 4]
            last = (layer == num_layers - 1)
            dst = out_ref if last else (buf_a if layer % 2 == 0 else buf_b)
            run_direction(src, dst, w_f, b_f, reverse=False, col_off=0)
            run_direction(src, dst, w_b, b_b, reverse=True, col_off=H)
            src = dst

    return kernel


def bilstm_stack(x, mask, layer_weights, hidden):
    """x: (T, B, D_in), mask: (T, B, hidden); returns (T, B, 2*hidden)."""
    T, B, _ = x.shape
    num_layers = len(layer_weights) // 4
    kernel = _make_bilstm_kernel(num_layers, T, B, hidden)
    return pl.pallas_call(
        kernel,
        out_shape=jax.ShapeDtypeStruct((T, B, 2 * hidden), jnp.float32),
        scratch_shapes=[
            pltpu.VMEM((T, B, 2 * hidden), jnp.float32),   # inter-layer ping
            pltpu.VMEM((T, B, 2 * hidden), jnp.float32),   # inter-layer pong
        ],
    )(x, mask, *layer_weights)


# ----------------------------------------------------------------------------
# Padded-batch construction shared by kernel path and reference
# ----------------------------------------------------------------------------
def _build_padded_inputs(sent_repr, sentences_per_doc, hidden):
    sent_repr = sent_repr.astype(jnp.float32)
    D = sent_repr.shape[1]
    num_docs = len(sentences_per_doc)
    T = int(max(sentences_per_doc))
    B_pad = ((num_docs + 7) // 8) * 8            # pad batch to the 8-row sublane tile
    # TODO(synk): bucket T / the doc-length pattern to a few fixed sizes to
    # avoid retracing per distinct batch shape.

    t_idx = np.concatenate([np.arange(n) for n in sentences_per_doc]).astype(np.int32)
    b_idx = np.concatenate([np.full(n, i) for i, n in
                            enumerate(sentences_per_doc)]).astype(np.int32)

    # Padded time-major tensor in a single scatter; mask emulates packed seqs.
    x = jnp.zeros((T, B_pad, D), jnp.float32).at[t_idx, b_idx].set(sent_repr)
    mask_np = np.zeros((T, B_pad, hidden), np.float32)
    mask_np[t_idx, b_idx, :] = 1.0
    mask = jnp.asarray(mask_np)

    # Per document keep outputs 0 .. len-2 (drop last), original doc order.
    sel_t = np.concatenate([np.arange(n - 1) for n in
                            sentences_per_doc]).astype(np.int32)
    sel_b = np.concatenate([np.full(n - 1, i) for i, n in
                            enumerate(sentences_per_doc)]).astype(np.int32)
    return x, mask, sel_t, sel_b


# ----------------------------------------------------------------------------
# seg_model forward (glue in plain JAX, hot path = one fused Pallas kernel)
# ----------------------------------------------------------------------------
def seg_model_forward(sent_repr, sentences_per_doc, params):
    # TODO(synk): sr_model (f_model / l_model / s_model / t_model / g_model /
    # b_model) is an external sub-encoder with many configs; sentence
    # representations are supplied directly as kernel input instead.
    hidden = params["hidden_dim"]
    x, mask, sel_t, sel_b = _build_padded_inputs(sent_repr, sentences_per_doc, hidden)

    layer_weights = []
    for (wih_f, whh_f, b_f, wih_b, whh_b, b_b) in params["lstm"]:
        layer_weights += [jnp.concatenate([wih_f, whh_f], axis=0), b_f,
                          jnp.concatenate([wih_b, whh_b], axis=0), b_b]

    y = bilstm_stack(x, mask, layer_weights, hidden)          # (T, B_pad, 2H)
    sentence_outputs = y[sel_t, sel_b]                        # (N, 2H)

    # h2s: N x 2H @ 2H x 2 with a 2-wide output -- left to XLA per the perf
    # review (a dedicated Pallas launch costs more than this matmul).
    return sentence_outputs @ params["w_h2s"] + params["b_h2s"][0]


# ----------------------------------------------------------------------------
# Pure-JAX reference (lax.scan) for correctness
# ----------------------------------------------------------------------------
def _ref_lstm_direction(x, mask1, w_ih, w_hh, b, hidden):
    B = x.shape[1]

    def step(carry, xm):
        h, c = carry
        xt, mt = xm
        gates = xt @ w_ih + h @ w_hh + b[0]
        i, f, g, o = jnp.split(gates, 4, axis=-1)
        i, f, o = jax.nn.sigmoid(i), jax.nn.sigmoid(f), jax.nn.sigmoid(o)
        g = jnp.tanh(g)
        c_new = f * c + i * g
        h_new = o * jnp.tanh(c_new)
        h = mt * h_new + (1.0 - mt) * h
        c = mt * c_new + (1.0 - mt) * c
        return (h, c), h

    init = (jnp.zeros((B, hidden), jnp.float32),
            jnp.zeros((B, hidden), jnp.float32))
    _, hs = jax.lax.scan(step, init, (x, mask1))
    return hs


def seg_model_forward_ref(sent_repr, sentences_per_doc, params):
    hidden = params["hidden_dim"]
    x, mask, sel_t, sel_b = _build_padded_inputs(sent_repr, sentences_per_doc, hidden)
    mask1 = mask[..., :1]

    inp = x
    for (wih_f, whh_f, b_f, wih_b, whh_b, b_b) in params["lstm"]:
        out_f = _ref_lstm_direction(inp, mask1, wih_f, whh_f, b_f, hidden)
        out_b = _ref_lstm_direction(inp[::-1], mask1[::-1],
                                    wih_b, whh_b, b_b, hidden)[::-1]
        inp = jnp.concatenate([out_f, out_b], axis=-1)

    sentence_outputs = inp[sel_t, sel_b]
    return sentence_outputs @ params["w_h2s"] + params["b_h2s"][0]


# ----------------------------------------------------------------------------
# main
# ----------------------------------------------------------------------------
def make_params(key, sl_input_dim, hidden_dim, num_layers):
    params = {"hidden_dim": hidden_dim, "lstm": []}
    for layer in range(num_layers):
        d_in = sl_input_dim if layer == 0 else 2 * hidden_dim
        layer_p = []
        for _ in range(2):  # forward, backward directions
            key, k1, k2, k3 = jax.random.split(key, 4)
            w_ih = 0.1 * jax.random.normal(k1, (d_in, 4 * hidden_dim), jnp.float32)
            w_hh = 0.1 * jax.random.normal(k2, (hidden_dim, 4 * hidden_dim), jnp.float32)
            b = 0.1 * jax.random.normal(k3, (1, 4 * hidden_dim), jnp.float32)  # b_ih + b_hh
            layer_p += [w_ih, w_hh, b]
        params["lstm"].append(tuple(layer_p))
    key, k1, k2 = jax.random.split(key, 3)
    params["w_h2s"] = 0.1 * jax.random.normal(k1, (2 * hidden_dim, 2), jnp.float32)
    params["b_h2s"] = 0.1 * jax.random.normal(k2, (1, 2), jnp.float32)
    return params


if __name__ == "__main__":
    sl_input_dim = 32     # sr_model.get_output_dim()
    hidden_dim = 32       # args.hidden_dim
    num_layers = 2        # args.num_layers
    sentences_per_doc = [6, 4, 8]           # 3 documents
    total_sentences = sum(sentences_per_doc)

    key = jax.random.PRNGKey(0)
    key, k_x = jax.random.split(key)
    sent_repr = jax.random.normal(k_x, (total_sentences, sl_input_dim), jnp.float32)
    params = make_params(key, sl_input_dim, hidden_dim, num_layers)

    out = seg_model_forward(sent_repr, sentences_per_doc, params)
    out = jax.block_until_ready(out)

    ref = jax.block_until_ready(
        seg_model_forward_ref(sent_repr, sentences_per_doc, params))

    assert out.shape == (sum(n - 1 for n in sentences_per_doc), 2), out.shape
    np.testing.assert_allclose(np.asarray(out), np.asarray(ref), atol=2e-2, rtol=2e-2)

    print("KERNEL_OK")
</pallas_src>

<mosaic_0001>
module attributes {stable_mosaic.version = 11 : i64} {
  func.func @kernel(%arg0: memref<8x8x32xf32, #tpu.memory_space<vmem>>, %arg1: memref<8x8x32xf32, #tpu.memory_space<vmem>>, %arg2: memref<64x128xf32, #tpu.memory_space<vmem>>, %arg3: memref<1x128xf32, #tpu.memory_space<vmem>>, %arg4: memref<64x128xf32, #tpu.memory_space<vmem>>, %arg5: memref<1x128xf32, #tpu.memory_space<vmem>>, %arg6: memref<96x128xf32, #tpu.memory_space<vmem>>, %arg7: memref<1x128xf32, #tpu.memory_space<vmem>>, %arg8: memref<96x128xf32, #tpu.memory_space<vmem>>, %arg9: memref<1x128xf32, #tpu.memory_space<vmem>>, %arg10: memref<8x8x64xf32, #tpu.memory_space<vmem>>, %arg11: memref<8x8x64xf32, #tpu.memory_space<vmem>>, %arg12: memref<8x8x64xf32, #tpu.memory_space<vmem>>) attributes {dimension_semantics = [], scalar_prefetch = 0 : i64, scratch_operands = 2 : i64, tpu.core_type = #tpu.core_type<tc>} {
    %c0 = arith.constant 0 : index
    %c0_0 = arith.constant 0 : index
    %0 = vector.load %arg2[%c0, %c0_0] : memref<64x128xf32, #tpu.memory_space<vmem>>, vector<64x128xf32>
    %c0_1 = arith.constant 0 : index
    %c0_2 = arith.constant 0 : index
    %1 = vector.load %arg3[%c0_1, %c0_2] : memref<1x128xf32, #tpu.memory_space<vmem>>, vector<1x128xf32>
    %2 = vector.shape_cast %1 : vector<1x128xf32> to vector<1x128xf32>
    %3 = vector.broadcast %2 : vector<1x128xf32> to vector<8x128xf32>
    %cst = arith.constant 0.000000e+00 : f32
    %4 = vector.broadcast %cst : f32 to vector<8x32xf32>
    %c0_i32 = arith.constant 0 : i32
    %5 = arith.index_cast %c0_i32 : i32 to index
    %c0_3 = arith.constant 0 : index
    %c0_4 = arith.constant 0 : index
    %6 = vector.load %arg0[%5, %c0_3, %c0_4] : memref<8x8x32xf32, #tpu.memory_space<vmem>>, vector<1x8x32xf32>
    %7 = vector.shape_cast %6 : vector<1x8x32xf32> to vector<8x32xf32>
    %8 = arith.index_cast %c0_i32 : i32 to index
    %c0_5 = arith.constant 0 : index
    %c0_6 = arith.constant 0 : index
    %9 = vector.load %arg1[%8, %c0_5, %c0_6] : memref<8x8x32xf32, #tpu.memory_space<vmem>>, vector<1x8x32xf32>
    %10 = vector.shape_cast %9 : vector<1x8x32xf32> to vector<8x32xf32>
    %11 = tpu.concatenate %7, %4 in 1 : vector<8x32xf32>, vector<8x32xf32> -> vector<8x64xf32>
    %cst_7 = arith.constant dense<0.000000e+00> : vector<8x128xf32>
    %12 = tpu.matmul %11, %0, %cst_7 {dimension_numbers = #tpu.dot_dimension_numbers<[1], [0], [0], [1], [0, 0, 1, 1], [], []>} : vector<8x64xf32>, vector<64x128xf32>, vector<8x128xf32> -> vector<8x128xf32>
    %13 = arith.addf %12, %3 : vector<8x128xf32>
    %14 = arith.negf %13 : vector<8x128xf32>
    %15 = math.exp %14 : vector<8x128xf32>
    %cst_8 = arith.constant 1.000000e+00 : f32
    %16 = vector.broadcast %cst_8 : f32 to vector<8x128xf32>
    %17 = arith.addf %16, %15 : vector<8x128xf32>
    %18 = arith.divf %16, %17 : vector<8x128xf32>
    %19 = math.tanh %13 : vector<8x128xf32>
    %20 = vector.extract_strided_slice %18 {offsets = [0, 0], sizes = [8, 32], strides = [1, 1]} : vector<8x128xf32> to vector<8x32xf32>
    %21 = vector.extract_strided_slice %18 {offsets = [0, 32], sizes = [8, 32], strides = [1, 1]} : vector<8x128xf32> to vector<8x32xf32>
    %22 = vector.extract_strided_slice %19 {offsets = [0, 64], sizes = [8, 32], strides = [1, 1]} : vector<8x128xf32> to vector<8x32xf32>
    %23 = vector.extract_strided_slice %18 {offsets = [0, 96], sizes = [8, 32], strides = [1, 1]} : vector<8x128xf32> to vector<8x32xf32>
    %24 = arith.mulf %21, %4 : vector<8x32xf32>
    %25 = arith.mulf %20, %22 : vector<8x32xf32>
    %26 = arith.addf %24, %25 : vector<8x32xf32>
    %27 = math.tanh %26 : vector<8x32xf32>
    %28 = arith.mulf %23, %27 : vector<8x32xf32>
    %cst_9 = arith.constant 5.000000e-01 : f32
    %29 = vector.broadcast %cst_9 : f32 to vector<8x32xf32>
    %30 = arith.cmpf ogt, %10, %29 : vector<8x32xf32>
    %31 = arith.select %30, %28, %4 : vector<8x32xi1>, vector<8x32xf32>
    %32 = arith.select %30, %26, %4 : vector<8x32xi1>, vector<8x32xf32>
    %33 = arith.index_cast %c0_i32 : i32 to index
    %c0_10 = arith.constant 0 : index
    %c0_11 = arith.constant 0 : index
    %34 = vector.load %arg11[%33, %c0_10, %c0_11] : memref<8x8x64xf32, #tpu.memory_space<vmem>>, vector<1x8x32xf32>
    %35 = vector.shape_cast %34 : vector<1x8x32xf32> to vector<8x32xf32>
    %36 = vector.shape_cast %31 : vector<8x32xf32> to vector<1x8x32xf32>
    tpu.vector_store %arg11[%33, %c0_10, %c0_11], %36 {strides = array<i32>} : memref<8x8x64xf32, #tpu.memory_space<vmem>>, vector<1x8x32xf32>,
    %c1_i32 = arith.constant 1 : i32
    %37 = arith.index_cast %c1_i32 : i32 to index
    %c0_12 = arith.constant 0 : index
    %c0_13 = arith.constant 0 : index
    %38 = vector.load %arg0[%37, %c0_12, %c0_13] : memref<8x8x32xf32, #tpu.memory_space<vmem>>, vector<1x8x32xf32>
    %39 = vector.shape_cast %38 : vector<1x8x32xf32> to vector<8x32xf32>
    %40 = arith.index_cast %c1_i32 : i32 to index
    %c0_14 = arith.constant 0 : index
    %c0_15 = arith.constant 0 : index
    %41 = vector.load %arg1[%40, %c0_14, %c0_15] : memref<8x8x32xf32, #tpu.memory_space<vmem>>, vector<1x8x32xf32>
    %42 = vector.shape_cast %41 : vector<1x8x32xf32> to vector<8x32xf32>
    %43 = tpu.concatenate %39, %31 in 1 : vector<8x32xf32>, vector<8x32xf32> -> vector<8x64xf32>
    %cst_16 = arith.constant dense<0.000000e+00> : vector<8x128xf32>
    %44 = tpu.matmul %43, %0, %cst_16 {dimension_numbers = #tpu.dot_dimension_numbers<[1], [0], [0], [1], [0, 0, 1, 1], [], []>} : vector<8x64xf32>, vector<64x128xf32>, vector<8x128xf32> -> vector<8x128xf32>
    %45 = arith.addf %44, %3 : vector<8x128xf32>
    %46 = arith.negf %45 : vector<8x128xf32>
    %47 = math.exp %46 : vector<8x128xf32>
    %cst_17 = arith.constant 1.000000e+00 : f32
    %48 = vector.broadcast %cst_17 : f32 to vector<8x128xf32>
    %49 = arith.addf %48, %47 : vector<8x128xf32>
    %50 = arith.divf %48, %49 : vector<8x128xf32>
    %51 = math.tanh %45 : vector<8x128xf32>
    %52 = vector.extract_strided_slice %50 {offsets = [0, 0], sizes = [8, 32], strides = [1, 1]} : vector<8x128xf32> to vector<8x32xf32>
    %53 = vector.extract_strided_slice %50 {offsets = [0, 32], sizes = [8, 32], strides = [1, 1]} : vector<8x128xf32> to vector<8x32xf32>
    %54 = vector.extract_strided_slice %51 {offsets = [0, 64], sizes = [8, 32], strides = [1, 1]} : vector<8x128xf32> to vector<8x32xf32>
    %55 = vector.extract_strided_slice %50 {offsets = [0, 96], sizes = [8, 32], strides = [1, 1]} : vector<8x128xf32> to vector<8x32xf32>
    %56 = arith.mulf %53, %32 : vector<8x32xf32>
    %57 = arith.mulf %52, %54 : vector<8x32xf32>
    %58 = arith.addf %56, %57 : vector<8x32xf32>
    %59 = math.tanh %58 : vector<8x32xf32>
    %60 = arith.mulf %55, %59 : vector<8x32xf32>
    %cst_18 = arith.constant 5.000000e-01 : f32
    %61 = vector.broadcast %cst_18 : f32 to vector<8x32xf32>
    %62 = arith.cmpf ogt, %42, %61 : vector<8x32xf32>
    %63 = arith.select %62, %60, %31 : vector<8x32xi1>, vector<8x32xf32>
    %64 = arith.select %62, %58, %32 : vector<8x32xi1>, vector<8x32xf32>
    %65 = arith.index_cast %c1_i32 : i32 to index
    %c0_19 = arith.constant 0 : index
    %c0_20 = arith.constant 0 : index
    %66 = vector.load %arg11[%65, %c0_19, %c0_20] : memref<8x8x64xf32, #tpu.memory_space<vmem>>, vector<1x8x32xf32>
    %67 = vector.shape_cast %66 : vector<1x8x32xf32> to vector<8x32xf32>
    %68 = vector.shape_cast %63 : vector<8x32xf32> to vector<1x8x32xf32>
    tpu.vector_store %arg11[%65, %c0_19, %c0_20], %68 {strides = array<i32>} : memref<8x8x64xf32, #tpu.memory_space<vmem>>, vector<1x8x32xf32>,
    %c2_i32 = arith.constant 2 : i32
    %69 = arith.index_cast %c2_i32 : i32 to index
    %c0_21 = arith.constant 0 : index
    %c0_22 = arith.constant 0 : index
    %70 = vector.load %arg0[%69, %c0_21, %c0_22] : memref<8x8x32xf32, #tpu.memory_space<vmem>>, vector<1x8x32xf32>
    %71 = vector.shape_cast %70 : vector<1x8x32xf32> to vector<8x32xf32>
    %72 = arith.index_cast %c2_i32 : i32 to index
    %c0_23 = arith.constant 0 : index
    %c0_24 = arith.constant 0 : index
    %73 = vector.load %arg1[%72, %c0_23, %c0_24] : memref<8x8x32xf32, #tpu.memory_space<vmem>>, vector<1x8x32xf32>
    %74 = vector.shape_cast %73 : vector<1x8x32xf32> to vector<8x32xf32>
    %75 = tpu.concatenate %71, %63 in 1 : vector<8x32xf32>, vector<8x32xf32> -> vector<8x64xf32>
    %cst_25 = arith.constant dense<0.000000e+00> : vector<8x128xf32>
    %76 = tpu.matmul %75, %0, %cst_25 {dimension_numbers = #tpu.dot_dimension_numbers<[1], [0], [0], [1], [0, 0, 1, 1], [], []>} : vector<8x64xf32>, vector<64x128xf32>, vector<8x128xf32> -> vector<8x128xf32>
    %77 = arith.addf %76, %3 : vector<8x128xf32>
    %78 = arith.negf %77 : vector<8x128xf32>
    %79 = math.exp %78 : vector<8x128xf32>
    %cst_26 = arith.constant 1.000000e+00 : f32
    %80 = vector.broadcast %cst_26 : f32 to vector<8x128xf32>
    %81 = arith.addf %80, %79 : vector<8x128xf32>
    %82 = arith.divf %80, %81 : vector<8x128xf32>
    %83 = math.tanh %77 : vector<8x128xf32>
    %84 = vector.extract_strided_slice %82 {offsets = [0, 0], sizes = [8, 32], strides = [1, 1]} : vector<8x128xf32> to vector<8x32xf32>
    %85 = vector.extract_strided_slice %82 {offsets = [0, 32], sizes = [8, 32], strides = [1, 1]} : vector<8x128xf32> to vector<8x32xf32>
    %86 = vector.extract_strided_slice %83 {offsets = [0, 64], sizes = [8, 32], strides = [1, 1]} : vector<8x128xf32> to vector<8x32xf32>
    %87 = vector.extract_strided_slice %82 {offsets = [0, 96], sizes = [8, 32], strides = [1, 1]} : vector<8x128xf32> to vector<8x32xf32>
    %88 = arith.mulf %85, %64 : vector<8x32xf32>
    %89 = arith.mulf %84, %86 : vector<8x32xf32>
    %90 = arith.addf %88, %89 : vector<8x32xf32>
    %91 = math.tanh %90 : vector<8x32xf32>
    %92 = arith.mulf %87, %91 : vector<8x32xf32>
    %cst_27 = arith.constant 5.000000e-01 : f32
    %93 = vector.broadcast %cst_27 : f32 to vector<8x32xf32>
    %94 = arith.cmpf ogt, %74, %93 : vector<8x32xf32>
    %95 = arith.select %94, %92, %63 : vector<8x32xi1>, vector<8x32xf32>
    %96 = arith.select %94, %90, %64 : vector<8x32xi1>, vector<8x32xf32>
    %97 = arith.index_cast %c2_i32 : i32 to index
    %c0_28 = arith.constant 0 : index
    %c0_29 = arith.constant 0 : index
    %98 = vector.load %arg11[%97, %c0_28, %c0_29] : memref<8x8x64xf32, #tpu.memory_space<vmem>>, vector<1x8x32xf32>
    %99 = vector.shape_cast %98 : vector<1x8x32xf32> to vector<8x32xf32>
    %100 = vector.shape_cast %95 : vector<8x32xf32> to vector<1x8x32xf32>
    tpu.vector_store %arg11[%97, %c0_28, %c0_29], %100 {strides = array<i32>} : memref<8x8x64xf32, #tpu.memory_space<vmem>>, vector<1x8x32xf32>,
    %c3_i32 = arith.constant 3 : i32
    %101 = arith.index_cast %c3_i32 : i32 to index
    %c0_30 = arith.constant 0 : index
    %c0_31 = arith.constant 0 : index
    %102 = vector.load %arg0[%101, %c0_30, %c0_31] : memref<8x8x32xf32, #tpu.memory_space<vmem>>, vector<1x8x32xf32>
    %103 = vector.shape_cast %102 : vector<1x8x32xf32> to vector<8x32xf32>
    %104 = arith.index_cast %c3_i32 : i32 to index
    %c0_32 = arith.constant 0 : index
    %c0_33 = arith.constant 0 : index
    %105 = vector.load %arg1[%104, %c0_32, %c0_33] : memref<8x8x32xf32, #tpu.memory_space<vmem>>, vector<1x8x32xf32>
    %106 = vector.shape_cast %105 : vector<1x8x32xf32> to vector<8x32xf32>
    %107 = tpu.concatenate %103, %95 in 1 : vector<8x32xf32>, vector<8x32xf32> -> vector<8x64xf32>
    %cst_34 = arith.constant dense<0.000000e+00> : vector<8x128xf32>
    %108 = tpu.matmul %107, %0, %cst_34 {dimension_numbers = #tpu.dot_dimension_numbers<[1], [0], [0], [1], [0, 0, 1, 1], [], []>} : vector<8x64xf32>, vector<64x128xf32>, vector<8x128xf32> -> vector<8x128xf32>
    %109 = arith.addf %108, %3 : vector<8x128xf32>
    %110 = arith.negf %109 : vector<8x128xf32>
    %111 = math.exp %110 : vector<8x128xf32>
    %cst_35 = arith.constant 1.000000e+00 : f32
    %112 = vector.broadcast %cst_35 : f32 to vector<8x128xf32>
    %113 = arith.addf %112, %111 : vector<8x128xf32>
    %114 = arith.divf %112, %113 : vector<8x128xf32>
    %115 = math.tanh %109 : vector<8x128xf32>
    %116 = vector.extract_strided_slice %114 {offsets = [0, 0], sizes = [8, 32], strides = [1, 1]} : vector<8x128xf32> to vector<8x32xf32>
    %117 = vector.extract_strided_slice %114 {offsets = [0, 32], sizes = [8, 32], strides = [1, 1]} : vector<8x128xf32> to vector<8x32xf32>
    %118 = vector.extract_strided_slice %115 {offsets = [0, 64], sizes = [8, 32], strides = [1, 1]} : vector<8x128xf32> to vector<8x32xf32>
    %119 = vector.extract_strided_slice %114 {offsets = [0, 96], sizes = [8, 32], strides = [1, 1]} : vector<8x128xf32> to vector<8x32xf32>
    %120 = arith.mulf %117, %96 : vector<8x32xf32>
    %121 = arith.mulf %116, %118 : vector<8x32xf32>
    %122 = arith.addf %120, %121 : vector<8x32xf32>
    %123 = math.tanh %122 : vector<8x32xf32>
    %124 = arith.mulf %119, %123 : vector<8x32xf32>
    %cst_36 = arith.constant 5.000000e-01 : f32
    %125 = vector.broadcast %cst_36 : f32 to vector<8x32xf32>
    %126 = arith.cmpf ogt, %106, %125 : vector<8x32xf32>
    %127 = arith.select %126, %124, %95 : vector<8x32xi1>, vector<8x32xf32>
    %128 = arith.select %126, %122, %96 : vector<8x32xi1>, vector<8x32xf32>
    %129 = arith.index_cast %c3_i32 : i32 to index
    %c0_37 = arith.constant 0 : index
    %c0_38 = arith.constant 0 : index
    %130 = vector.load %arg11[%129, %c0_37, %c0_38] : memref<8x8x64xf32, #tpu.memory_space<vmem>>, vector<1x8x32xf32>
    %131 = vector.shape_cast %130 : vector<1x8x32xf32> to vector<8x32xf32>
    %132 = vector.shape_cast %127 : vector<8x32xf32> to vector<1x8x32xf32>
    tpu.vector_store %arg11[%129, %c0_37, %c0_38], %132 {strides = array<i32>} : memref<8x8x64xf32, #tpu.memory_space<vmem>>, vector<1x8x32xf32>,
    %c4_i32 = arith.constant 4 : i32
    %133 = arith.index_cast %c4_i32 : i32 to index
    %c0_39 = arith.constant 0 : index
    %c0_40 = arith.constant 0 : index
    %134 = vector.load %arg0[%133, %c0_39, %c0_40] : memref<8x8x32xf32, #tpu.memory_space<vmem>>, vector<1x8x32xf32>
    %135 = vector.shape_cast %134 : vector<1x8x32xf32> to vector<8x32xf32>
    %136 = arith.index_cast %c4_i32 : i32 to index
    %c0_41 = arith.constant 0 : index
    %c0_42 = arith.constant 0 : index
    %137 = vector.load %arg1[%136, %c0_41, %c0_42] : memref<8x8x32xf32, #tpu.memory_space<vmem>>, vector<1x8x32xf32>
    %138 = vector.shape_cast %137 : vector<1x8x32xf32> to vector<8x32xf32>
    %139 = tpu.concatenate %135, %127 in 1 : vector<8x32xf32>, vector<8x32xf32> -> vector<8x64xf32>
    %cst_43 = arith.constant dense<0.000000e+00> : vector<8x128xf32>
    %140 = tpu.matmul %139, %0, %cst_43 {dimension_numbers = #tpu.dot_dimension_numbers<[1], [0], [0], [1], [0, 0, 1, 1], [], []>} : vector<8x64xf32>, vector<64x128xf32>, vector<8x128xf32> -> vector<8x128xf32>
    %141 = arith.addf %140, %3 : vector<8x128xf32>
    %142 = arith.negf %141 : vector<8x128xf32>
    %143 = math.exp %142 : vector<8x128xf32>
    %cst_44 = arith.constant 1.000000e+00 : f32
    %144 = vector.broadcast %cst_44 : f32 to vector<8x128xf32>
    %145 = arith.addf %144, %143 : vector<8x128xf32>
    %146 = arith.divf %144, %145 : vector<8x128xf32>
    %147 = math.tanh %141 : vector<8x128xf32>
    %148 = vector.extract_strided_slice %146 {offsets = [0, 0], sizes = [8, 32], strides = [1, 1]} : vector<8x128xf32> to vector<8x32xf32>
    %149 = vector.extract_strided_slice %146 {offsets = [0, 32], sizes = [8, 32], strides = [1, 1]} : vector<8x128xf32> to vector<8x32xf32>
    %150 = vector.extract_strided_slice %147 {offsets = [0, 64], sizes = [8, 32], strides = [1, 1]} : vector<8x128xf32> to vector<8x32xf32>
    %151 = vector.extract_strided_slice %146 {offsets = [0, 96], sizes = [8, 32], strides = [1, 1]} : vector<8x128xf32> to vector<8x32xf32>
    %152 = arith.mulf %149, %128 : vector<8x32xf32>
    %153 = arith.mulf %148, %150 : vector<8x32xf32>
    %154 = arith.addf %152, %153 : vector<8x32xf32>
    %155 = math.tanh %154 : vector<8x32xf32>
    %156 = arith.mulf %151, %155 : vector<8x32xf32>
    %cst_45 = arith.constant 5.000000e-01 : f32
    %157 = vector.broadcast %cst_45 : f32 to vector<8x32xf32>
    %158 = arith.cmpf ogt, %138, %157 : vector<8x32xf32>
    %159 = arith.select %158, %156, %127 : vector<8x32xi1>, vector<8x32xf32>
    %160 = arith.select %158, %154, %128 : vector<8x32xi1>, vector<8x32xf32>
    %161 = arith.index_cast %c4_i32 : i32 to index
    %c0_46 = arith.constant 0 : index
    %c0_47 = arith.constant 0 : index
    %162 = vector.load %arg11[%161, %c0_46, %c0_47] : memref<8x8x64xf32, #tpu.memory_space<vmem>>, vector<1x8x32xf32>
    %163 = vector.shape_cast %162 : vector<1x8x32xf32> to vector<8x32xf32>
    %164 = vector.shape_cast %159 : vector<8x32xf32> to vector<1x8x32xf32>
    tpu.vector_store %arg11[%161, %c0_46, %c0_47], %164 {strides = array<i32>} : memref<8x8x64xf32, #tpu.memory_space<vmem>>, vector<1x8x32xf32>,
    %c5_i32 = arith.constant 5 : i32
    %165 = arith.index_cast %c5_i32 : i32 to index
    %c0_48 = arith.constant 0 : index
    %c0_49 = arith.constant 0 : index
    %166 = vector.load %arg0[%165, %c0_48, %c0_49] : memref<8x8x32xf32, #tpu.memory_space<vmem>>, vector<1x8x32xf32>
    %167 = vector.shape_cast %166 : vector<1x8x32xf32> to vector<8x32xf32>
    %168 = arith.index_cast %c5_i32 : i32 to index
    %c0_50 = arith.constant 0 : index
    %c0_51 = arith.constant 0 : index
    %169 = vector.load %arg1[%168, %c0_50, %c0_51] : memref<8x8x32xf32, #tpu.memory_space<vmem>>, vector<1x8x32xf32>
    %170 = vector.shape_cast %169 : vector<1x8x32xf32> to vector<8x32xf32>
    %171 = tpu.concatenate %167, %159 in 1 : vector<8x32xf32>, vector<8x32xf32> -> vector<8x64xf32>
    %cst_52 = arith.constant dense<0.000000e+00> : vector<8x128xf32>
    %172 = tpu.matmul %171, %0, %cst_52 {dimension_numbers = #tpu.dot_dimension_numbers<[1], [0], [0], [1], [0, 0, 1, 1], [], []>} : vector<8x64xf32>, vector<64x128xf32>, vector<8x128xf32> -> vector<8x128xf32>
    %173 = arith.addf %172, %3 : vector<8x128xf32>
    %174 = arith.negf %173 : vector<8x128xf32>
    %175 = math.exp %174 : vector<8x128xf32>
    %cst_53 = arith.constant 1.000000e+00 : f32
    %176 = vector.broadcast %cst_53 : f32 to vector<8x128xf32>
    %177 = arith.addf %176, %175 : vector<8x128xf32>
    %178 = arith.divf %176, %177 : vector<8x128xf32>
    %179 = math.tanh %173 : vector<8x128xf32>
    %180 = vector.extract_strided_slice %178 {offsets = [0, 0], sizes = [8, 32], strides = [1, 1]} : vector<8x128xf32> to vector<8x32xf32>
    %181 = vector.extract_strided_slice %178 {offsets = [0, 32], sizes = [8, 32], strides = [1, 1]} : vector<8x128xf32> to vector<8x32xf32>
    %182 = vector.extract_strided_slice %179 {offsets = [0, 64], sizes = [8, 32], strides = [1, 1]} : vector<8x128xf32> to vector<8x32xf32>
    %183 = vector.extract_strided_slice %178 {offsets = [0, 96], sizes = [8, 32], strides = [1, 1]} : vector<8x128xf32> to vector<8x32xf32>
    %184 = arith.mulf %181, %160 : vector<8x32xf32>
    %185 = arith.mulf %180, %182 : vector<8x32xf32>
    %186 = arith.addf %184, %185 : vector<8x32xf32>
    %187 = math.tanh %186 : vector<8x32xf32>
    %188 = arith.mulf %183, %187 : vector<8x32xf32>
    %cst_54 = arith.constant 5.000000e-01 : f32
    %189 = vector.broadcast %cst_54 : f32 to vector<8x32xf32>
    %190 = arith.cmpf ogt, %170, %189 : vector<8x32xf32>
    %191 = arith.select %190, %188, %159 : vector<8x32xi1>, vector<8x32xf32>
    %192 = arith.select %190, %186, %160 : vector<8x32xi1>, vector<8x32xf32>
    %193 = arith.index_cast %c5_i32 : i32 to index
    %c0_55 = arith.constant 0 : index
    %c0_56 = arith.constant 0 : index
    %194 = vector.load %arg11[%193, %c0_55, %c0_56] : memref<8x8x64xf32, #tpu.memory_space<vmem>>, vector<1x8x32xf32>
    %195 = vector.shape_cast %194 : vector<1x8x32xf32> to vector<8x32xf32>
    %196 = vector.shape_cast %191 : vector<8x32xf32> to vector<1x8x32xf32>
    tpu.vector_store %arg11[%193, %c0_55, %c0_56], %196 {strides = array<i32>} : memref<8x8x64xf32, #tpu.memory_space<vmem>>, vector<1x8x32xf32>,
    %c6_i32 = arith.constant 6 : i32
    %197 = arith.index_cast %c6_i32 : i32 to index
    %c0_57 = arith.constant 0 : index
    %c0_58 = arith.constant 0 : index
    %198 = vector.load %arg0[%197, %c0_57, %c0_58] : memref<8x8x32xf32, #tpu.memory_space<vmem>>, vector<1x8x32xf32>
    %199 = vector.shape_cast %198 : vector<1x8x32xf32> to vector<8x32xf32>
    %200 = arith.index_cast %c6_i32 : i32 to index
    %c0_59 = arith.constant 0 : index
    %c0_60 = arith.constant 0 : index
    %201 = vector.load %arg1[%200, %c0_59, %c0_60] : memref<8x8x32xf32, #tpu.memory_space<vmem>>, vector<1x8x32xf32>
    %202 = vector.shape_cast %201 : vector<1x8x32xf32> to vector<8x32xf32>
    %203 = tpu.concatenate %199, %191 in 1 : vector<8x32xf32>, vector<8x32xf32> -> vector<8x64xf32>
    %cst_61 = arith.constant dense<0.000000e+00> : vector<8x128xf32>
    %204 = tpu.matmul %203, %0, %cst_61 {dimension_numbers = #tpu.dot_dimension_numbers<[1], [0], [0], [1], [0, 0, 1, 1], [], []>} : vector<8x64xf32>, vector<64x128xf32>, vector<8x128xf32> -> vector<8x128xf32>
    %205 = arith.addf %204, %3 : vector<8x128xf32>
    %206 = arith.negf %205 : vector<8x128xf32>
    %207 = math.exp %206 : vector<8x128xf32>
    %cst_62 = arith.constant 1.000000e+00 : f32
    %208 = vector.broadcast %cst_62 : f32 to vector<8x128xf32>
    %209 = arith.addf %208, %207 : vector<8x128xf32>
    %210 = arith.divf %208, %209 : vector<8x128xf32>
    %211 = math.tanh %205 : vector<8x128xf32>
    %212 = vector.extract_strided_slice %210 {offsets = [0, 0], sizes = [8, 32], strides = [1, 1]} : vector<8x128xf32> to vector<8x32xf32>
    %213 = vector.extract_strided_slice %210 {offsets = [0, 32], sizes = [8, 32], strides = [1, 1]} : vector<8x128xf32> to vector<8x32xf32>
    %214 = vector.extract_strided_slice %211 {offsets = [0, 64], sizes = [8, 32], strides = [1, 1]} : vector<8x128xf32> to vector<8x32xf32>
    %215 = vector.extract_strided_slice %210 {offsets = [0, 96], sizes = [8, 32], strides = [1, 1]} : vector<8x128xf32> to vector<8x32xf32>
    %216 = arith.mulf %213, %192 : vector<8x32xf32>
    %217 = arith.mulf %212, %214 : vector<8x32xf32>
    %218 = arith.addf %216, %217 : vector<8x32xf32>
    %219 = math.tanh %218 : vector<8x32xf32>
    %220 = arith.mulf %215, %219 : vector<8x32xf32>
    %cst_63 = arith.constant 5.000000e-01 : f32
    %221 = vector.broadcast %cst_63 : f32 to vector<8x32xf32>
    %222 = arith.cmpf ogt, %202, %221 : vector<8x32xf32>
    %223 = arith.select %222, %220, %191 : vector<8x32xi1>, vector<8x32xf32>
    %224 = arith.select %222, %218, %192 : vector<8x32xi1>, vector<8x32xf32>
    %225 = arith.index_cast %c6_i32 : i32 to index
    %c0_64 = arith.constant 0 : index
    %c0_65 = arith.constant 0 : index
    %226 = vector.load %arg11[%225, %c0_64, %c0_65] : memref<8x8x64xf32, #tpu.memory_space<vmem>>, vector<1x8x32xf32>
    %227 = vector.shape_cast %226 : vector<1x8x32xf32> to vector<8x32xf32>
    %228 = vector.shape_cast %223 : vector<8x32xf32> to vector<1x8x32xf32>
    tpu.vector_store %arg11[%225, %c0_64, %c0_65], %228 {strides = array<i32>} : memref<8x8x64xf32, #tpu.memory_space<vmem>>, vector<1x8x32xf32>,
    %c7_i32 = arith.constant 7 : i32
    %229 = arith.index_cast %c7_i32 : i32 to index
    %c0_66 = arith.constant 0 : index
    %c0_67 = arith.constant 0 : index
    %230 = vector.load %arg0[%229, %c0_66, %c0_67] : memref<8x8x32xf32, #tpu.memory_space<vmem>>, vector<1x8x32xf32>
    %231 = vector.shape_cast %230 : vector<1x8x32xf32> to vector<8x32xf32>
    %232 = arith.index_cast %c7_i32 : i32 to index
    %c0_68 = arith.constant 0 : index
    %c0_69 = arith.constant 0 : index
    %233 = vector.load %arg1[%232, %c0_68, %c0_69] : memref<8x8x32xf32, #tpu.memory_space<vmem>>, vector<1x8x32xf32>
    %234 = vector.shape_cast %233 : vector<1x8x32xf32> to vector<8x32xf32>
    %235 = tpu.concatenate %231, %223 in 1 : vector<8x32xf32>, vector<8x32xf32> -> vector<8x64xf32>
    %cst_70 = arith.constant dense<0.000000e+00> : vector<8x128xf32>
    %236 = tpu.matmul %235, %0, %cst_70 {dimension_numbers = #tpu.dot_dimension_numbers<[1], [0], [0], [1], [0, 0, 1, 1], [], []>} : vector<8x64xf32>, vector<64x128xf32>, vector<8x128xf32> -> vector<8x128xf32>
    %237 = arith.addf %236, %3 : vector<8x128xf32>
    %238 = arith.negf %237 : vector<8x128xf32>
    %239 = math.exp %238 : vector<8x128xf32>
    %cst_71 = arith.constant 1.000000e+00 : f32
    %240 = vector.broadcast %cst_71 : f32 to vector<8x128xf32>
    %241 = arith.addf %240, %239 : vector<8x128xf32>
    %242 = arith.divf %240, %241 : vector<8x128xf32>
    %243 = math.tanh %237 : vector<8x128xf32>
    %244 = vector.extract_strided_slice %242 {offsets = [0, 0], sizes = [8, 32], strides = [1, 1]} : vector<8x128xf32> to vector<8x32xf32>
    %245 = vector.extract_strided_slice %242 {offsets = [0, 32], sizes = [8, 32], strides = [1, 1]} : vector<8x128xf32> to vector<8x32xf32>
    %246 = vector.extract_strided_slice %243 {offsets = [0, 64], sizes = [8, 32], strides = [1, 1]} : vector<8x128xf32> to vector<8x32xf32>
    %247 = vector.extract_strided_slice %242 {offsets = [0, 96], sizes = [8, 32], strides = [1, 1]} : vector<8x128xf32> to vector<8x32xf32>
    %248 = arith.mulf %245, %224 : vector<8x32xf32>
    %249 = arith.mulf %244, %246 : vector<8x32xf32>
    %250 = arith.addf %248, %249 : vector<8x32xf32>
    %251 = math.tanh %250 : vector<8x32xf32>
    %252 = arith.mulf %247, %251 : vector<8x32xf32>
    %cst_72 = arith.constant 5.000000e-01 : f32
    %253 = vector.broadcast %cst_72 : f32 to vector<8x32xf32>
    %254 = arith.cmpf ogt, %234, %253 : vector<8x32xf32>
    %255 = arith.select %254, %252, %223 : vector<8x32xi1>, vector<8x32xf32>
    %256 = arith.select %254, %250, %224 : vector<8x32xi1>, vector<8x32xf32>
    %257 = arith.index_cast %c7_i32 : i32 to index
    %c0_73 = arith.constant 0 : index
    %c0_74 = arith.constant 0 : index
    %258 = vector.load %arg11[%257, %c0_73, %c0_74] : memref<8x8x64xf32, #tpu.memory_space<vmem>>, vector<1x8x32xf32>
    %259 = vector.shape_cast %258 : vector<1x8x32xf32> to vector<8x32xf32>
    %260 = vector.shape_cast %255 : vector<8x32xf32> to vector<1x8x32xf32>
    tpu.vector_store %arg11[%257, %c0_73, %c0_74], %260 {strides = array<i32>} : memref<8x8x64xf32, #tpu.memory_space<vmem>>, vector<1x8x32xf32>,
    %c8_i32 = arith.constant 8 : i32
    %c0_75 = arith.constant 0 : index
    %c0_76 = arith.constant 0 : index
    %261 = vector.load %arg4[%c0_75, %c0_76] : memref<64x128xf32, #tpu.memory_space<vmem>>, vector<64x128xf32>
    %c0_77 = arith.constant 0 : index
    %c0_78 = arith.constant 0 : index
    %262 = vector.load %arg5[%c0_77, %c0_78] : memref<1x128xf32, #tpu.memory_space<vmem>>, vector<1x128xf32>
    %263 = vector.shape_cast %262 : vector<1x128xf32> to vector<1x128xf32>
    %264 = vector.broadcast %263 : vector<1x128xf32> to vector<8x128xf32>
    %cst_79 = arith.constant 0.000000e+00 : f32
    %265 = vector.broadcast %cst_79 : f32 to vector<8x32xf32>
    %c0_i32_80 = arith.constant 0 : i32
    %c7_i32_81 = arith.constant 7 : i32
    %266 = arith.subi %c7_i32_81, %c0_i32_80 : i32
    %267 = arith.index_cast %266 : i32 to index
    %c0_82 = arith.constant 0 : index
    %c0_83 = arith.constant 0 : index
    %268 = vector.load %arg0[%267, %c0_82, %c0_83] : memref<8x8x32xf32, #tpu.memory_space<vmem>>, vector<1x8x32xf32>
    %269 = vector.shape_cast %268 : vector<1x8x32xf32> to vector<8x32xf32>
    %270 = arith.index_cast %266 : i32 to index
    %c0_84 = arith.constant 0 : index
    %c0_85 = arith.constant 0 : index
    %271 = vector.load %arg1[%270, %c0_84, %c0_85] : memref<8x8x32xf32, #tpu.memory_space<vmem>>, vector<1x8x32xf32>
    %272 = vector.shape_cast %271 : vector<1x8x32xf32> to vector<8x32xf32>
    %273 = tpu.concatenate %269, %265 in 1 : vector<8x32xf32>, vector<8x32xf32> -> vector<8x64xf32>
    %cst_86 = arith.constant dense<0.000000e+00> : vector<8x128xf32>
    %274 = tpu.matmul %273, %261, %cst_86 {dimension_numbers = #tpu.dot_dimension_numbers<[1], [0], [0], [1], [0, 0, 1, 1], [], []>} : vector<8x64xf32>, vector<64x128xf32>, vector<8x128xf32> -> vector<8x128xf32>
    %275 = arith.addf %274, %264 : vector<8x128xf32>
    %276 = arith.negf %275 : vector<8x128xf32>
    %277 = math.exp %276 : vector<8x128xf32>
    %cst_87 = arith.constant 1.000000e+00 : f32
    %278 = vector.broadcast %cst_87 : f32 to vector<8x128xf32>
    %279 = arith.addf %278, %277 : vector<8x128xf32>
    %280 = arith.divf %278, %279 : vector<8x128xf32>
    %281 = math.tanh %275 : vector<8x128xf32>
    %282 = vector.extract_strided_slice %280 {offsets = [0, 0], sizes = [8, 32], strides = [1, 1]} : vector<8x128xf32> to vector<8x32xf32>
    %283 = vector.extract_strided_slice %280 {offsets = [0, 32], sizes = [8, 32], strides = [1, 1]} : vector<8x128xf32> to vector<8x32xf32>
    %284 = vector.extract_strided_slice %281 {offsets = [0, 64], sizes = [8, 32], strides = [1, 1]} : vector<8x128xf32> to vector<8x32xf32>
    %285 = vector.extract_strided_slice %280 {offsets = [0, 96], sizes = [8, 32], strides = [1, 1]} : vector<8x128xf32> to vector<8x32xf32>
    %286 = arith.mulf %283, %265 : vector<8x32xf32>
    %287 = arith.mulf %282, %284 : vector<8x32xf32>
    %288 = arith.addf %286, %287 : vector<8x32xf32>
    %289 = math.tanh %288 : vector<8x32xf32>
    %290 = arith.mulf %285, %289 : vector<8x32xf32>
    %cst_88 = arith.constant 5.000000e-01 : f32
    %291 = vector.broadcast %cst_88 : f32 to vector<8x32xf32>
    %292 = arith.cmpf ogt, %272, %291 : vector<8x32xf32>
    %293 = arith.select %292, %290, %265 : vector<8x32xi1>, vector<8x32xf32>
    %294 = arith.select %292, %288, %265 : vector<8x32xi1>, vector<8x32xf32>
    %295 = arith.index_cast %266 : i32 to index
    %c0_89 = arith.constant 0 : index
    %c32 = arith.constant 32 : index
    %296 = vector.load %arg11[%295, %c0_89, %c32] : memref<8x8x64xf32, #tpu.memory_space<vmem>>, vector<1x8x32xf32>
    %297 = vector.shape_cast %296 : vector<1x8x32xf32> to vector<8x32xf32>
    %298 = vector.shape_cast %293 : vector<8x32xf32> to vector<1x8x32xf32>
    tpu.vector_store %arg11[%295, %c0_89, %c32], %298 {strides = array<i32>} : memref<8x8x64xf32, #tpu.memory_space<vmem>>, vector<1x8x32xf32>,
    %c1_i32_90 = arith.constant 1 : i32
    %c7_i32_91 = arith.constant 7 : i32
    %299 = arith.subi %c7_i32_91, %c1_i32_90 : i32
    %300 = arith.index_cast %299 : i32 to index
    %c0_92 = arith.constant 0 : index
    %c0_93 = arith.constant 0 : index
    %301 = vector.load %arg0[%300, %c0_92, %c0_93] : memref<8x8x32xf32, #tpu.memory_space<vmem>>, vector<1x8x32xf32>
    %302 = vector.shape_cast %301 : vector<1x8x32xf32> to vector<8x32xf32>
    %303 = arith.index_cast %299 : i32 to index
    %c0_94 = arith.constant 0 : index
    %c0_95 = arith.constant 0 : index
    %304 = vector.load %arg1[%303, %c0_94, %c0_95] : memref<8x8x32xf32, #tpu.memory_space<vmem>>, vector<1x8x32xf32>
    %305 = vector.shape_cast %304 : vector<1x8x32xf32> to vector<8x32xf32>
    %306 = tpu.concatenate %302, %293 in 1 : vector<8x32xf32>, vector<8x32xf32> -> vector<8x64xf32>
    %cst_96 = arith.constant dense<0.000000e+00> : vector<8x128xf32>
    %307 = tpu.matmul %306, %261, %cst_96 {dimension_numbers = #tpu.dot_dimension_numbers<[1], [0], [0], [1], [0, 0, 1, 1], [], []>} : vector<8x64xf32>, vector<64x128xf32>, vector<8x128xf32> -> vector<8x128xf32>
    %308 = arith.addf %307, %264 : vector<8x128xf32>
    %309 = arith.negf %308 : vector<8x128xf32>
    %310 = math.exp %309 : vector<8x128xf32>
    %cst_97 = arith.constant 1.000000e+00 : f32
    %311 = vector.broadcast %cst_97 : f32 to vector<8x128xf32>
    %312 = arith.addf %311, %310 : vector<8x128xf32>
    %313 = arith.divf %311, %312 : vector<8x128xf32>
    %314 = math.tanh %308 : vector<8x128xf32>
    %315 = vector.extract_strided_slice %313 {offsets = [0, 0], sizes = [8, 32], strides = [1, 1]} : vector<8x128xf32> to vector<8x32xf32>
    %316 = vector.extract_strided_slice %313 {offsets = [0, 32], sizes = [8, 32], strides = [1, 1]} : vector<8x128xf32> to vector<8x32xf32>
    %317 = vector.extract_strided_slice %314 {offsets = [0, 64], sizes = [8, 32], strides = [1, 1]} : vector<8x128xf32> to vector<8x32xf32>
    %318 = vector.extract_strided_slice %313 {offsets = [0, 96], sizes = [8, 32], strides = [1, 1]} : vector<8x128xf32> to vector<8x32xf32>
    %319 = arith.mulf %316, %294 : vector<8x32xf32>
    %320 = arith.mulf %315, %317 : vector<8x32xf32>
    %321 = arith.addf %319, %320 : vector<8x32xf32>
    %322 = math.tanh %321 : vector<8x32xf32>
    %323 = arith.mulf %318, %322 : vector<8x32xf32>
    %cst_98 = arith.constant 5.000000e-01 : f32
    %324 = vector.broadcast %cst_98 : f32 to vector<8x32xf32>
    %325 = arith.cmpf ogt, %305, %324 : vector<8x32xf32>
    %326 = arith.select %325, %323, %293 : vector<8x32xi1>, vector<8x32xf32>
    %327 = arith.select %325, %321, %294 : vector<8x32xi1>, vector<8x32xf32>
    %328 = arith.index_cast %299 : i32 to index
    %c0_99 = arith.constant 0 : index
    %c32_100 = arith.constant 32 : index
    %329 = vector.load %arg11[%328, %c0_99, %c32_100] : memref<8x8x64xf32, #tpu.memory_space<vmem>>, vector<1x8x32xf32>
    %330 = vector.shape_cast %329 : vector<1x8x32xf32> to vector<8x32xf32>
    %331 = vector.shape_cast %326 : vector<8x32xf32> to vector<1x8x32xf32>
    tpu.vector_store %arg11[%328, %c0_99, %c32_100], %331 {strides = array<i32>} : memref<8x8x64xf32, #tpu.memory_space<vmem>>, vector<1x8x32xf32>,
    %c2_i32_101 = arith.constant 2 : i32
    %c7_i32_102 = arith.constant 7 : i32
    %332 = arith.subi %c7_i32_102, %c2_i32_101 : i32
    %333 = arith.index_cast %332 : i32 to index
    %c0_103 = arith.constant 0 : index
    %c0_104 = arith.constant 0 : index
    %334 = vector.load %arg0[%333, %c0_103, %c0_104] : memref<8x8x32xf32, #tpu.memory_space<vmem>>, vector<1x8x32xf32>
    %335 = vector.shape_cast %334 : vector<1x8x32xf32> to vector<8x32xf32>
    %336 = arith.index_cast %332 : i32 to index
    %c0_105 = arith.constant 0 : index
    %c0_106 = arith.constant 0 : index
    %337 = vector.load %arg1[%336, %c0_105, %c0_106] : memref<8x8x32xf32, #tpu.memory_space<vmem>>, vector<1x8x32xf32>
    %338 = vector.shape_cast %337 : vector<1x8x32xf32> to vector<8x32xf32>
    %339 = tpu.concatenate %335, %326 in 1 : vector<8x32xf32>, vector<8x32xf32> -> vector<8x64xf32>
    %cst_107 = arith.constant dense<0.000000e+00> : vector<8x128xf32>
    %340 = tpu.matmul %339, %261, %cst_107 {dimension_numbers = #tpu.dot_dimension_numbers<[1], [0], [0], [1], [0, 0, 1, 1], [], []>} : vector<8x64xf32>, vector<64x128xf32>, vector<8x128xf32> -> vector<8x128xf32>
    %341 = arith.addf %340, %264 : vector<8x128xf32>
    %342 = arith.negf %341 : vector<8x128xf32>
    %343 = math.exp %342 : vector<8x128xf32>
    %cst_108 = arith.constant 1.000000e+00 : f32
    %344 = vector.broadcast %cst_108 : f32 to vector<8x128xf32>
    %345 = arith.addf %344, %343 : vector<8x128xf32>
    %346 = arith.divf %344, %345 : vector<8x128xf32>
    %347 = math.tanh %341 : vector<8x128xf32>
    %348 = vector.extract_strided_slice %346 {offsets = [0, 0], sizes = [8, 32], strides = [1, 1]} : vector<8x128xf32> to vector<8x32xf32>
    %349 = vector.extract_strided_slice %346 {offsets = [0, 32], sizes = [8, 32], strides = [1, 1]} : vector<8x128xf32> to vector<8x32xf32>
    %350 = vector.extract_strided_slice %347 {offsets = [0, 64], sizes = [8, 32], strides = [1, 1]} : vector<8x128xf32> to vector<8x32xf32>
    %351 = vector.extract_strided_slice %346 {offsets = [0, 96], sizes = [8, 32], strides = [1, 1]} : vector<8x128xf32> to vector<8x32xf32>
    %352 = arith.mulf %349, %327 : vector<8x32xf32>
    %353 = arith.mulf %348, %350 : vector<8x32xf32>
    %354 = arith.addf %352, %353 : vector<8x32xf32>
    %355 = math.tanh %354 : vector<8x32xf32>
    %356 = arith.mulf %351, %355 : vector<8x32xf32>
    %cst_109 = arith.constant 5.000000e-01 : f32
    %357 = vector.broadcast %cst_109 : f32 to vector<8x32xf32>
    %358 = arith.cmpf ogt, %338, %357 : vector<8x32xf32>
    %359 = arith.select %358, %356, %326 : vector<8x32xi1>, vector<8x32xf32>
    %360 = arith.select %358, %354, %327 : vector<8x32xi1>, vector<8x32xf32>
    %361 = arith.index_cast %332 : i32 to index
    %c0_110 = arith.constant 0 : index
    %c32_111 = arith.constant 32 : index
    %362 = vector.load %arg11[%361, %c0_110, %c32_111] : memref<8x8x64xf32, #tpu.memory_space<vmem>>, vector<1x8x32xf32>
    %363 = vector.shape_cast %362 : vector<1x8x32xf32> to vector<8x32xf32>
    %364 = vector.shape_cast %359 : vector<8x32xf32> to vector<1x8x32xf32>
    tpu.vector_store %arg11[%361, %c0_110, %c32_111], %364 {strides = array<i32>} : memref<8x8x64xf32, #tpu.memory_space<vmem>>, vector<1x8x32xf32>,
    %c3_i32_112 = arith.constant 3 : i32
    %c7_i32_113 = arith.constant 7 : i32
    %365 = arith.subi %c7_i32_113, %c3_i32_112 : i32
    %366 = arith.index_cast %365 : i32 to index
    %c0_114 = arith.constant 0 : index
    %c0_115 = arith.constant 0 : index
    %367 = vector.load %arg0[%366, %c0_114, %c0_115] : memref<8x8x32xf32, #tpu.memory_space<vmem>>, vector<1x8x32xf32>
    %368 = vector.shape_cast %367 : vector<1x8x32xf32> to vector<8x32xf32>
    %369 = arith.index_cast %365 : i32 to index
    %c0_116 = arith.constant 0 : index
    %c0_117 = arith.constant 0 : index
    %370 = vector.load %arg1[%369, %c0_116, %c0_117] : memref<8x8x32xf32, #tpu.memory_space<vmem>>, vector<1x8x32xf32>
    %371 = vector.shape_cast %370 : vector<1x8x32xf32> to vector<8x32xf32>
    %372 = tpu.concatenate %368, %359 in 1 : vector<8x32xf32>, vector<8x32xf32> -> vector<8x64xf32>
    %cst_118 = arith.constant dense<0.000000e+00> : vector<8x128xf32>
    %373 = tpu.matmul %372, %261, %cst_118 {dimension_numbers = #tpu.dot_dimension_numbers<[1], [0], [0], [1], [0, 0, 1, 1], [], []>} : vector<8x64xf32>, vector<64x128xf32>, vector<8x128xf32> -> vector<8x128xf32>
    %374 = arith.addf %373, %264 : vector<8x128xf32>
    %375 = arith.negf %374 : vector<8x128xf32>
    %376 = math.exp %375 : vector<8x128xf32>
    %cst_119 = arith.constant 1.000000e+00 : f32
    %377 = vector.broadcast %cst_119 : f32 to vector<8x128xf32>
    %378 = arith.addf %377, %376 : vector<8x128xf32>
    %379 = arith.divf %377, %378 : vector<8x128xf32>
    %380 = math.tanh %374 : vector<8x128xf32>
    %381 = vector.extract_strided_slice %379 {offsets = [0, 0], sizes = [8, 32], strides = [1, 1]} : vector<8x128xf32> to vector<8x32xf32>
    %382 = vector.extract_strided_slice %379 {offsets = [0, 32], sizes = [8, 32], strides = [1, 1]} : vector<8x128xf32> to vector<8x32xf32>
    %383 = vector.extract_strided_slice %380 {offsets = [0, 64], sizes = [8, 32], strides = [1, 1]} : vector<8x128xf32> to vector<8x32xf32>
    %384 = vector.extract_strided_slice %379 {offsets = [0, 96], sizes = [8, 32], strides = [1, 1]} : vector<8x128xf32> to vector<8x32xf32>
    %385 = arith.mulf %382, %360 : vector<8x32xf32>
    %386 = arith.mulf %381, %383 : vector<8x32xf32>
    %387 = arith.addf %385, %386 : vector<8x32xf32>
    %388 = math.tanh %387 : vector<8x32xf32>
    %389 = arith.mulf %384, %388 : vector<8x32xf32>
    %cst_120 = arith.constant 5.000000e-01 : f32
    %390 = vector.broadcast %cst_120 : f32 to vector<8x32xf32>
    %391 = arith.cmpf ogt, %371, %390 : vector<8x32xf32>
    %392 = arith.select %391, %389, %359 : vector<8x32xi1>, vector<8x32xf32>
    %393 = arith.select %391, %387, %360 : vector<8x32xi1>, vector<8x32xf32>
    %394 = arith.index_cast %365 : i32 to index
    %c0_121 = arith.constant 0 : index
    %c32_122 = arith.constant 32 : index
    %395 = vector.load %arg11[%394, %c0_121, %c32_122] : memref<8x8x64xf32, #tpu.memory_space<vmem>>, vector<1x8x32xf32>
    %396 = vector.shape_cast %395 : vector<1x8x32xf32> to vector<8x32xf32>
    %397 = vector.shape_cast %392 : vector<8x32xf32> to vector<1x8x32xf32>
    tpu.vector_store %arg11[%394, %c0_121, %c32_122], %397 {strides = array<i32>} : memref<8x8x64xf32, #tpu.memory_space<vmem>>, vector<1x8x32xf32>,
    %c4_i32_123 = arith.constant 4 : i32
    %c7_i32_124 = arith.constant 7 : i32
    %398 = arith.subi %c7_i32_124, %c4_i32_123 : i32
    %399 = arith.index_cast %398 : i32 to index
    %c0_125 = arith.constant 0 : index
    %c0_126 = arith.constant 0 : index
    %400 = vector.load %arg0[%399, %c0_125, %c0_126] : memref<8x8x32xf32, #tpu.memory_space<vmem>>, vector<1x8x32xf32>
    %401 = vector.shape_cast %400 : vector<1x8x32xf32> to vector<8x32xf32>
    %402 = arith.index_cast %398 : i32 to index
    %c0_127 = arith.constant 0 : index
    %c0_128 = arith.constant 0 : index
    %403 = vector.load %arg1[%402, %c0_127, %c0_128] : memref<8x8x32xf32, #tpu.memory_space<vmem>>, vector<1x8x32xf32>
    %404 = vector.shape_cast %403 : vector<1x8x32xf32> to vector<8x32xf32>
    %405 = tpu.concatenate %401, %392 in 1 : vector<8x32xf32>, vector<8x32xf32> -> vector<8x64xf32>
    %cst_129 = arith.constant dense<0.000000e+00> : vector<8x128xf32>
    %406 = tpu.matmul %405, %261, %cst_129 {dimension_numbers = #tpu.dot_dimension_numbers<[1], [0], [0], [1], [0, 0, 1, 1], [], []>} : vector<8x64xf32>, vector<64x128xf32>, vector<8x128xf32> -> vector<8x128xf32>
    %407 = arith.addf %406, %264 : vector<8x128xf32>
    %408 = arith.negf %407 : vector<8x128xf32>
    %409 = math.exp %408 : vector<8x128xf32>
    %cst_130 = arith.constant 1.000000e+00 : f32
    %410 = vector.broadcast %cst_130 : f32 to vector<8x128xf32>
    %411 = arith.addf %410, %409 : vector<8x128xf32>
    %412 = arith.divf %410, %411 : vector<8x128xf32>
    %413 = math.tanh %407 : vector<8x128xf32>
    %414 = vector.extract_strided_slice %412 {offsets = [0, 0], sizes = [8, 32], strides = [1, 1]} : vector<8x128xf32> to vector<8x32xf32>
    %415 = vector.extract_strided_slice %412 {offsets = [0, 32], sizes = [8, 32], strides = [1, 1]} : vector<8x128xf32> to vector<8x32xf32>
    %416 = vector.extract_strided_slice %413 {offsets = [0, 64], sizes = [8, 32], strides = [1, 1]} : vector<8x128xf32> to vector<8x32xf32>
    %417 = vector.extract_strided_slice %412 {offsets = [0, 96], sizes = [8, 32], strides = [1, 1]} : vector<8x128xf32> to vector<8x32xf32>
    %418 = arith.mulf %415, %393 : vector<8x32xf32>
    %419 = arith.mulf %414, %416 : vector<8x32xf32>
    %420 = arith.addf %418, %419 : vector<8x32xf32>
    %421 = math.tanh %420 : vector<8x32xf32>
    %422 = arith.mulf %417, %421 : vector<8x32xf32>
    %cst_131 = arith.constant 5.000000e-01 : f32
    %423 = vector.broadcast %cst_131 : f32 to vector<8x32xf32>
    %424 = arith.cmpf ogt, %404, %423 : vector<8x32xf32>
    %425 = arith.select %424, %422, %392 : vector<8x32xi1>, vector<8x32xf32>
    %426 = arith.select %424, %420, %393 : vector<8x32xi1>, vector<8x32xf32>
    %427 = arith.index_cast %398 : i32 to index
    %c0_132 = arith.constant 0 : index
    %c32_133 = arith.constant 32 : index
    %428 = vector.load %arg11[%427, %c0_132, %c32_133] : memref<8x8x64xf32, #tpu.memory_space<vmem>>, vector<1x8x32xf32>
    %429 = vector.shape_cast %428 : vector<1x8x32xf32> to vector<8x32xf32>
    %430 = vector.shape_cast %425 : vector<8x32xf32> to vector<1x8x32xf32>
    tpu.vector_store %arg11[%427, %c0_132, %c32_133], %430 {strides = array<i32>} : memref<8x8x64xf32, #tpu.memory_space<vmem>>, vector<1x8x32xf32>,
    %c5_i32_134 = arith.constant 5 : i32
    %c7_i32_135 = arith.constant 7 : i32
    %431 = arith.subi %c7_i32_135, %c5_i32_134 : i32
    %432 = arith.index_cast %431 : i32 to index
    %c0_136 = arith.constant 0 : index
    %c0_137 = arith.constant 0 : index
    %433 = vector.load %arg0[%432, %c0_136, %c0_137] : memref<8x8x32xf32, #tpu.memory_space<vmem>>, vector<1x8x32xf32>
    %434 = vector.shape_cast %433 : vector<1x8x32xf32> to vector<8x32xf32>
    %435 = arith.index_cast %431 : i32 to index
    %c0_138 = arith.constant 0 : index
    %c0_139 = arith.constant 0 : index
    %436 = vector.load %arg1[%435, %c0_138, %c0_139] : memref<8x8x32xf32, #tpu.memory_space<vmem>>, vector<1x8x32xf32>
    %437 = vector.shape_cast %436 : vector<1x8x32xf32> to vector<8x32xf32>
    %438 = tpu.concatenate %434, %425 in 1 : vector<8x32xf32>, vector<8x32xf32> -> vector<8x64xf32>
    %cst_140 = arith.constant dense<0.000000e+00> : vector<8x128xf32>
    %439 = tpu.matmul %438, %261, %cst_140 {dimension_numbers = #tpu.dot_dimension_numbers<[1], [0], [0], [1], [0, 0, 1, 1], [], []>} : vector<8x64xf32>, vector<64x128xf32>, vector<8x128xf32> -> vector<8x128xf32>
    %440 = arith.addf %439, %264 : vector<8x128xf32>
    %441 = arith.negf %440 : vector<8x128xf32>
    %442 = math.exp %441 : vector<8x128xf32>
    %cst_141 = arith.constant 1.000000e+00 : f32
    %443 = vector.broadcast %cst_141 : f32 to vector<8x128xf32>
    %444 = arith.addf %443, %442 : vector<8x128xf32>
    %445 = arith.divf %443, %444 : vector<8x128xf32>
    %446 = math.tanh %440 : vector<8x128xf32>
    %447 = vector.extract_strided_slice %445 {offsets = [0, 0], sizes = [8, 32], strides = [1, 1]} : vector<8x128xf32> to vector<8x32xf32>
    %448 = vector.extract_strided_slice %445 {offsets = [0, 32], sizes = [8, 32], strides = [1, 1]} : vector<8x128xf32> to vector<8x32xf32>
    %449 = vector.extract_strided_slice %446 {offsets = [0, 64], sizes = [8, 32], strides = [1, 1]} : vector<8x128xf32> to vector<8x32xf32>
    %450 = vector.extract_strided_slice %445 {offsets = [0, 96], sizes = [8, 32], strides = [1, 1]} : vector<8x128xf32> to vector<8x32xf32>
    %451 = arith.mulf %448, %426 : vector<8x32xf32>
    %452 = arith.mulf %447, %449 : vector<8x32xf32>
    %453 = arith.addf %451, %452 : vector<8x32xf32>
    %454 = math.tanh %453 : vector<8x32xf32>
    %455 = arith.mulf %450, %454 : vector<8x32xf32>
    %cst_142 = arith.constant 5.000000e-01 : f32
    %456 = vector.broadcast %cst_142 : f32 to vector<8x32xf32>
    %457 = arith.cmpf ogt, %437, %456 : vector<8x32xf32>
    %458 = arith.select %457, %455, %425 : vector<8x32xi1>, vector<8x32xf32>
    %459 = arith.select %457, %453, %426 : vector<8x32xi1>, vector<8x32xf32>
    %460 = arith.index_cast %431 : i32 to index
    %c0_143 = arith.constant 0 : index
    %c32_144 = arith.constant 32 : index
    %461 = vector.load %arg11[%460, %c0_143, %c32_144] : memref<8x8x64xf32, #tpu.memory_space<vmem>>, vector<1x8x32xf32>
    %462 = vector.shape_cast %461 : vector<1x8x32xf32> to vector<8x32xf32>
    %463 = vector.shape_cast %458 : vector<8x32xf32> to vector<1x8x32xf32>
    tpu.vector_store %arg11[%460, %c0_143, %c32_144], %463 {strides = array<i32>} : memref<8x8x64xf32, #tpu.memory_space<vmem>>, vector<1x8x32xf32>,
    %c6_i32_145 = arith.constant 6 : i32
    %c7_i32_146 = arith.constant 7 : i32
    %464 = arith.subi %c7_i32_146, %c6_i32_145 : i32
    %465 = arith.index_cast %464 : i32 to index
    %c0_147 = arith.constant 0 : index
    %c0_148 = arith.constant 0 : index
    %466 = vector.load %arg0[%465, %c0_147, %c0_148] : memref<8x8x32xf32, #tpu.memory_space<vmem>>, vector<1x8x32xf32>
    %467 = vector.shape_cast %466 : vector<1x8x32xf32> to vector<8x32xf32>
    %468 = arith.index_cast %464 : i32 to index
    %c0_149 = arith.constant 0 : index
    %c0_150 = arith.constant 0 : index
    %469 = vector.load %arg1[%468, %c0_149, %c0_150] : memref<8x8x32xf32, #tpu.memory_space<vmem>>, vector<1x8x32xf32>
    %470 = vector.shape_cast %469 : vector<1x8x32xf32> to vector<8x32xf32>
    %471 = tpu.concatenate %467, %458 in 1 : vector<8x32xf32>, vector<8x32xf32> -> vector<8x64xf32>
    %cst_151 = arith.constant dense<0.000000e+00> : vector<8x128xf32>
    %472 = tpu.matmul %471, %261, %cst_151 {dimension_numbers = #tpu.dot_dimension_numbers<[1], [0], [0], [1], [0, 0, 1, 1], [], []>} : vector<8x64xf32>, vector<64x128xf32>, vector<8x128xf32> -> vector<8x128xf32>
    %473 = arith.addf %472, %264 : vector<8x128xf32>
    %474 = arith.negf %473 : vector<8x128xf32>
    %475 = math.exp %474 : vector<8x128xf32>
    %cst_152 = arith.constant 1.000000e+00 : f32
    %476 = vector.broadcast %cst_152 : f32 to vector<8x128xf32>
    %477 = arith.addf %476, %475 : vector<8x128xf32>
    %478 = arith.divf %476, %477 : vector<8x128xf32>
    %479 = math.tanh %473 : vector<8x128xf32>
    %480 = vector.extract_strided_slice %478 {offsets = [0, 0], sizes = [8, 32], strides = [1, 1]} : vector<8x128xf32> to vector<8x32xf32>
    %481 = vector.extract_strided_slice %478 {offsets = [0, 32], sizes = [8, 32], strides = [1, 1]} : vector<8x128xf32> to vector<8x32xf32>
    %482 = vector.extract_strided_slice %479 {offsets = [0, 64], sizes = [8, 32], strides = [1, 1]} : vector<8x128xf32> to vector<8x32xf32>
    %483 = vector.extract_strided_slice %478 {offsets = [0, 96], sizes = [8, 32], strides = [1, 1]} : vector<8x128xf32> to vector<8x32xf32>
    %484 = arith.mulf %481, %459 : vector<8x32xf32>
    %485 = arith.mulf %480, %482 : vector<8x32xf32>
    %486 = arith.addf %484, %485 : vector<8x32xf32>
    %487 = math.tanh %486 : vector<8x32xf32>
    %488 = arith.mulf %483, %487 : vector<8x32xf32>
    %cst_153 = arith.constant 5.000000e-01 : f32
    %489 = vector.broadcast %cst_153 : f32 to vector<8x32xf32>
    %490 = arith.cmpf ogt, %470, %489 : vector<8x32xf32>
    %491 = arith.select %490, %488, %458 : vector<8x32xi1>, vector<8x32xf32>
    %492 = arith.select %490, %486, %459 : vector<8x32xi1>, vector<8x32xf32>
    %493 = arith.index_cast %464 : i32 to index
    %c0_154 = arith.constant 0 : index
    %c32_155 = arith.constant 32 : index
    %494 = vector.load %arg11[%493, %c0_154, %c32_155] : memref<8x8x64xf32, #tpu.memory_space<vmem>>, vector<1x8x32xf32>
    %495 = vector.shape_cast %494 : vector<1x8x32xf32> to vector<8x32xf32>
    %496 = vector.shape_cast %491 : vector<8x32xf32> to vector<1x8x32xf32>
    tpu.vector_store %arg11[%493, %c0_154, %c32_155], %496 {strides = array<i32>} : memref<8x8x64xf32, #tpu.memory_space<vmem>>, vector<1x8x32xf32>,
    %c7_i32_156 = arith.constant 7 : i32
    %c7_i32_157 = arith.constant 7 : i32
    %497 = arith.subi %c7_i32_157, %c7_i32_156 : i32
    %498 = arith.index_cast %497 : i32 to index
    %c0_158 = arith.constant 0 : index
    %c0_159 = arith.constant 0 : index
    %499 = vector.load %arg0[%498, %c0_158, %c0_159] : memref<8x8x32xf32, #tpu.memory_space<vmem>>, vector<1x8x32xf32>
    %500 = vector.shape_cast %499 : vector<1x8x32xf32> to vector<8x32xf32>
    %501 = arith.index_cast %497 : i32 to index
    %c0_160 = arith.constant 0 : index
    %c0_161 = arith.constant 0 : index
    %502 = vector.load %arg1[%501, %c0_160, %c0_161] : memref<8x8x32xf32, #tpu.memory_space<vmem>>, vector<1x8x32xf32>
    %503 = vector.shape_cast %502 : vector<1x8x32xf32> to vector<8x32xf32>
    %504 = tpu.concatenate %500, %491 in 1 : vector<8x32xf32>, vector<8x32xf32> -> vector<8x64xf32>
    %cst_162 = arith.constant dense<0.000000e+00> : vector<8x128xf32>
    %505 = tpu.matmul %504, %261, %cst_162 {dimension_numbers = #tpu.dot_dimension_numbers<[1], [0], [0], [1], [0, 0, 1, 1], [], []>} : vector<8x64xf32>, vector<64x128xf32>, vector<8x128xf32> -> vector<8x128xf32>
    %506 = arith.addf %505, %264 : vector<8x128xf32>
    %507 = arith.negf %506 : vector<8x128xf32>
    %508 = math.exp %507 : vector<8x128xf32>
    %cst_163 = arith.constant 1.000000e+00 : f32
    %509 = vector.broadcast %cst_163 : f32 to vector<8x128xf32>
    %510 = arith.addf %509, %508 : vector<8x128xf32>
    %511 = arith.divf %509, %510 : vector<8x128xf32>
    %512 = math.tanh %506 : vector<8x128xf32>
    %513 = vector.extract_strided_slice %511 {offsets = [0, 0], sizes = [8, 32], strides = [1, 1]} : vector<8x128xf32> to vector<8x32xf32>
    %514 = vector.extract_strided_slice %511 {offsets = [0, 32], sizes = [8, 32], strides = [1, 1]} : vector<8x128xf32> to vector<8x32xf32>
    %515 = vector.extract_strided_slice %512 {offsets = [0, 64], sizes = [8, 32], strides = [1, 1]} : vector<8x128xf32> to vector<8x32xf32>
    %516 = vector.extract_strided_slice %511 {offsets = [0, 96], sizes = [8, 32], strides = [1, 1]} : vector<8x128xf32> to vector<8x32xf32>
    %517 = arith.mulf %514, %492 : vector<8x32xf32>
    %518 = arith.mulf %513, %515 : vector<8x32xf32>
    %519 = arith.addf %517, %518 : vector<8x32xf32>
    %520 = math.tanh %519 : vector<8x32xf32>
    %521 = arith.mulf %516, %520 : vector<8x32xf32>
    %cst_164 = arith.constant 5.000000e-01 : f32
    %522 = vector.broadcast %cst_164 : f32 to vector<8x32xf32>
    %523 = arith.cmpf ogt, %503, %522 : vector<8x32xf32>
    %524 = arith.select %523, %521, %491 : vector<8x32xi1>, vector<8x32xf32>
    %525 = arith.select %523, %519, %492 : vector<8x32xi1>, vector<8x32xf32>
    %526 = arith.index_cast %497 : i32 to index
    %c0_165 = arith.constant 0 : index
    %c32_166 = arith.constant 32 : index
    %527 = vector.load %arg11[%526, %c0_165, %c32_166] : memref<8x8x64xf32, #tpu.memory_space<vmem>>, vector<1x8x32xf32>
    %528 = vector.shape_cast %527 : vector<1x8x32xf32> to vector<8x32xf32>
    %529 = vector.shape_cast %524 : vector<8x32xf32> to vector<1x8x32xf32>
    tpu.vector_store %arg11[%526, %c0_165, %c32_166], %529 {strides = array<i32>} : memref<8x8x64xf32, #tpu.memory_space<vmem>>, vector<1x8x32xf32>,
    %c8_i32_167 = arith.constant 8 : i32
    %c0_168 = arith.constant 0 : index
    %c0_169 = arith.constant 0 : index
    %530 = vector.load %arg6[%c0_168, %c0_169] : memref<96x128xf32, #tpu.memory_space<vmem>>, vector<96x128xf32>
    %c0_170 = arith.constant 0 : index
    %c0_171 = arith.constant 0 : index
    %531 = vector.load %arg7[%c0_170, %c0_171] : memref<1x128xf32, #tpu.memory_space<vmem>>, vector<1x128xf32>
    %532 = vector.shape_cast %531 : vector<1x128xf32> to vector<1x128xf32>
    %533 = vector.broadcast %532 : vector<1x128xf32> to vector<8x128xf32>
    %cst_172 = arith.constant 0.000000e+00 : f32
    %534 = vector.broadcast %cst_172 : f32 to vector<8x32xf32>
    %c0_i32_173 = arith.constant 0 : i32
    %535 = arith.index_cast %c0_i32_173 : i32 to index
    %c0_174 = arith.constant 0 : index
    %c0_175 = arith.constant 0 : index
    %536 = vector.load %arg11[%535, %c0_174, %c0_175] : memref<8x8x64xf32, #tpu.memory_space<vmem>>, vector<1x8x64xf32>
    %537 = vector.shape_cast %536 : vector<1x8x64xf32> to vector<8x64xf32>
    %538 = arith.index_cast %c0_i32_173 : i32 to index
    %c0_176 = arith.constant 0 : index
    %c0_177 = arith.constant 0 : index
    %539 = vector.load %arg1[%538, %c0_176, %c0_177] : memref<8x8x32xf32, #tpu.memory_space<vmem>>, vector<1x8x32xf32>
    %540 = vector.shape_cast %539 : vector<1x8x32xf32> to vector<8x32xf32>
    %541 = tpu.concatenate %537, %534 in 1 : vector<8x64xf32>, vector<8x32xf32> -> vector<8x96xf32>
    %cst_178 = arith.constant dense<0.000000e+00> : vector<8x128xf32>
    %542 = tpu.matmul %541, %530, %cst_178 {dimension_numbers = #tpu.dot_dimension_numbers<[1], [0], [0], [1], [0, 0, 1, 1], [], []>} : vector<8x96xf32>, vector<96x128xf32>, vector<8x128xf32> -> vector<8x128xf32>
    %543 = arith.addf %542, %533 : vector<8x128xf32>
    %544 = arith.negf %543 : vector<8x128xf32>
    %545 = math.exp %544 : vector<8x128xf32>
    %cst_179 = arith.constant 1.000000e+00 : f32
    %546 = vector.broadcast %cst_179 : f32 to vector<8x128xf32>
    %547 = arith.addf %546, %545 : vector<8x128xf32>
    %548 = arith.divf %546, %547 : vector<8x128xf32>
    %549 = math.tanh %543 : vector<8x128xf32>
    %550 = vector.extract_strided_slice %548 {offsets = [0, 0], sizes = [8, 32], strides = [1, 1]} : vector<8x128xf32> to vector<8x32xf32>
    %551 = vector.extract_strided_slice %548 {offsets = [0, 32], sizes = [8, 32], strides = [1, 1]} : vector<8x128xf32> to vector<8x32xf32>
    %552 = vector.extract_strided_slice %549 {offsets = [0, 64], sizes = [8, 32], strides = [1, 1]} : vector<8x128xf32> to vector<8x32xf32>
    %553 = vector.extract_strided_slice %548 {offsets = [0, 96], sizes = [8, 32], strides = [1, 1]} : vector<8x128xf32> to vector<8x32xf32>
    %554 = arith.mulf %551, %534 : vector<8x32xf32>
    %555 = arith.mulf %550, %552 : vector<8x32xf32>
    %556 = arith.addf %554, %555 : vector<8x32xf32>
    %557 = math.tanh %556 : vector<8x32xf32>
    %558 = arith.mulf %553, %557 : vector<8x32xf32>
    %cst_180 = arith.constant 5.000000e-01 : f32
    %559 = vector.broadcast %cst_180 : f32 to vector<8x32xf32>
    %560 = arith.cmpf ogt, %540, %559 : vector<8x32xf32>
    %561 = arith.select %560, %558, %534 : vector<8x32xi1>, vector<8x32xf32>
    %562 = arith.select %560, %556, %534 : vector<8x32xi1>, vector<8x32xf32>
    %563 = arith.index_cast %c0_i32_173 : i32 to index
    %c0_181 = arith.constant 0 : index
    %c0_182 = arith.constant 0 : index
    %564 = vector.load %arg10[%563, %c0_181, %c0_182] : memref<8x8x64xf32, #tpu.memory_space<vmem>>, vector<1x8x32xf32>
    %565 = vector.shape_cast %564 : vector<1x8x32xf32> to vector<8x32xf32>
    %566 = vector.shape_cast %561 : vector<8x32xf32> to vector<1x8x32xf32>
    tpu.vector_store %arg10[%563, %c0_181, %c0_182], %566 {strides = array<i32>} : memref<8x8x64xf32, #tpu.memory_space<vmem>>, vector<1x8x32xf32>,
    %c1_i32_183 = arith.constant 1 : i32
    %567 = arith.index_cast %c1_i32_183 : i32 to index
    %c0_184 = arith.constant 0 : index
    %c0_185 = arith.constant 0 : index
    %568 = vector.load %arg11[%567, %c0_184, %c0_185] : memref<8x8x64xf32, #tpu.memory_space<vmem>>, vector<1x8x64xf32>
    %569 = vector.shape_cast %568 : vector<1x8x64xf32> to vector<8x64xf32>
    %570 = arith.index_cast %c1_i32_183 : i32 to index
    %c0_186 = arith.constant 0 : index
    %c0_187 = arith.constant 0 : index
    %571 = vector.load %arg1[%570, %c0_186, %c0_187] : memref<8x8x32xf32, #tpu.memory_space<vmem>>, vector<1x8x32xf32>
    %572 = vector.shape_cast %571 : vector<1x8x32xf32> to vector<8x32xf32>
    %573 = tpu.concatenate %569, %561 in 1 : vector<8x64xf32>, vector<8x32xf32> -> vector<8x96xf32>
    %cst_188 = arith.constant dense<0.000000e+00> : vector<8x128xf32>
    %574 = tpu.matmul %573, %530, %cst_188 {dimension_numbers = #tpu.dot_dimension_numbers<[1], [0], [0], [1], [0, 0, 1, 1], [], []>} : vector<8x96xf32>, vector<96x128xf32>, vector<8x128xf32> -> vector<8x128xf32>
    %575 = arith.addf %574, %533 : vector<8x128xf32>
    %576 = arith.negf %575 : vector<8x128xf32>
    %577 = math.exp %576 : vector<8x128xf32>
    %cst_189 = arith.constant 1.000000e+00 : f32
    %578 = vector.broadcast %cst_189 : f32 to vector<8x128xf32>
    %579 = arith.addf %578, %577 : vector<8x128xf32>
    %580 = arith.divf %578, %579 : vector<8x128xf32>
    %581 = math.tanh %575 : vector<8x128xf32>
    %582 = vector.extract_strided_slice %580 {offsets = [0, 0], sizes = [8, 32], strides = [1, 1]} : vector<8x128xf32> to vector<8x32xf32>
    %583 = vector.extract_strided_slice %580 {offsets = [0, 32], sizes = [8, 32], strides = [1, 1]} : vector<8x128xf32> to vector<8x32xf32>
    %584 = vector.extract_strided_slice %581 {offsets = [0, 64], sizes = [8, 32], strides = [1, 1]} : vector<8x128xf32> to vector<8x32xf32>
    %585 = vector.extract_strided_slice %580 {offsets = [0, 96], sizes = [8, 32], strides = [1, 1]} : vector<8x128xf32> to vector<8x32xf32>
    %586 = arith.mulf %583, %562 : vector<8x32xf32>
    %587 = arith.mulf %582, %584 : vector<8x32xf32>
    %588 = arith.addf %586, %587 : vector<8x32xf32>
    %589 = math.tanh %588 : vector<8x32xf32>
    %590 = arith.mulf %585, %589 : vector<8x32xf32>
    %cst_190 = arith.constant 5.000000e-01 : f32
    %591 = vector.broadcast %cst_190 : f32 to vector<8x32xf32>
    %592 = arith.cmpf ogt, %572, %591 : vector<8x32xf32>
    %593 = arith.select %592, %590, %561 : vector<8x32xi1>, vector<8x32xf32>
    %594 = arith.select %592, %588, %562 : vector<8x32xi1>, vector<8x32xf32>
    %595 = arith.index_cast %c1_i32_183 : i32 to index
    %c0_191 = arith.constant 0 : index
    %c0_192 = arith.constant 0 : index
    %596 = vector.load %arg10[%595, %c0_191, %c0_192] : memref<8x8x64xf32, #tpu.memory_space<vmem>>, vector<1x8x32xf32>
    %597 = vector.shape_cast %596 : vector<1x8x32xf32> to vector<8x32xf32>
    %598 = vector.shape_cast %593 : vector<8x32xf32> to vector<1x8x32xf32>
    tpu.vector_store %arg10[%595, %c0_191, %c0_192], %598 {strides = array<i32>} : memref<8x8x64xf32, #tpu.memory_space<vmem>>, vector<1x8x32xf32>,
    %c2_i32_193 = arith.constant 2 : i32
    %599 = arith.index_cast %c2_i32_193 : i32 to index
    %c0_194 = arith.constant 0 : index
    %c0_195 = arith.constant 0 : index
    %600 = vector.load %arg11[%599, %c0_194, %c0_195] : memref<8x8x64xf32, #tpu.memory_space<vmem>>, vector<1x8x64xf32>
    %601 = vector.shape_cast %600 : vector<1x8x64xf32> to vector<8x64xf32>
    %602 = arith.index_cast %c2_i32_193 : i32 to index
    %c0_196 = arith.constant 0 : index
    %c0_197 = arith.constant 0 : index
    %603 = vector.load %arg1[%602, %c0_196, %c0_197] : memref<8x8x32xf32, #tpu.memory_space<vmem>>, vector<1x8x32xf32>
    %604 = vector.shape_cast %603 : vector<1x8x32xf32> to vector<8x32xf32>
    %605 = tpu.concatenate %601, %593 in 1 : vector<8x64xf32>, vector<8x32xf32> -> vector<8x96xf32>
    %cst_198 = arith.constant dense<0.000000e+00> : vector<8x128xf32>
    %606 = tpu.matmul %605, %530, %cst_198 {dimension_numbers = #tpu.dot_dimension_numbers<[1], [0], [0], [1], [0, 0, 1, 1], [], []>} : vector<8x96xf32>, vector<96x128xf32>, vector<8x128xf32> -> vector<8x128xf32>
    %607 = arith.addf %606, %533 : vector<8x128xf32>
    %608 = arith.negf %607 : vector<8x128xf32>
    %609 = math.exp %608 : vector<8x128xf32>
    %cst_199 = arith.constant 1.000000e+00 : f32
    %610 = vector.broadcast %cst_199 : f32 to vector<8x128xf32>
    %611 = arith.addf %610, %609 : vector<8x128xf32>
    %612 = arith.divf %610, %611 : vector<8x128xf32>
    %613 = math.tanh %607 : vector<8x128xf32>
    %614 = vector.extract_strided_slice %612 {offsets = [0, 0], sizes = [8, 32], strides = [1, 1]} : vector<8x128xf32> to vector<8x32xf32>
    %615 = vector.extract_strided_slice %612 {offsets = [0, 32], sizes = [8, 32], strides = [1, 1]} : vector<8x128xf32> to vector<8x32xf32>
    %616 = vector.extract_strided_slice %613 {offsets = [0, 64], sizes = [8, 32], strides = [1, 1]} : vector<8x128xf32> to vector<8x32xf32>
    %617 = vector.extract_strided_slice %612 {offsets = [0, 96], sizes = [8, 32], strides = [1, 1]} : vector<8x128xf32> to vector<8x32xf32>
    %618 = arith.mulf %615, %594 : vector<8x32xf32>
    %619 = arith.mulf %614, %616 : vector<8x32xf32>
    %620 = arith.addf %618, %619 : vector<8x32xf32>
    %621 = math.tanh %620 : vector<8x32xf32>
    %622 = arith.mulf %617, %621 : vector<8x32xf32>
    %cst_200 = arith.constant 5.000000e-01 : f32
    %623 = vector.broadcast %cst_200 : f32 to vector<8x32xf32>
    %624 = arith.cmpf ogt, %604, %623 : vector<8x32xf32>
    %625 = arith.select %624, %622, %593 : vector<8x32xi1>, vector<8x32xf32>
    %626 = arith.select %624, %620, %594 : vector<8x32xi1>, vector<8x32xf32>
    %627 = arith.index_cast %c2_i32_193 : i32 to index
    %c0_201 = arith.constant 0 : index
    %c0_202 = arith.constant 0 : index
    %628 = vector.load %arg10[%627, %c0_201, %c0_202] : memref<8x8x64xf32, #tpu.memory_space<vmem>>, vector<1x8x32xf32>
    %629 = vector.shape_cast %628 : vector<1x8x32xf32> to vector<8x32xf32>
    %630 = vector.shape_cast %625 : vector<8x32xf32> to vector<1x8x32xf32>
    tpu.vector_store %arg10[%627, %c0_201, %c0_202], %630 {strides = array<i32>} : memref<8x8x64xf32, #tpu.memory_space<vmem>>, vector<1x8x32xf32>,
    %c3_i32_203 = arith.constant 3 : i32
    %631 = arith.index_cast %c3_i32_203 : i32 to index
    %c0_204 = arith.constant 0 : index
    %c0_205 = arith.constant 0 : index
    %632 = vector.load %arg11[%631, %c0_204, %c0_205] : memref<8x8x64xf32, #tpu.memory_space<vmem>>, vector<1x8x64xf32>
    %633 = vector.shape_cast %632 : vector<1x8x64xf32> to vector<8x64xf32>
    %634 = arith.index_cast %c3_i32_203 : i32 to index
    %c0_206 = arith.constant 0 : index
    %c0_207 = arith.constant 0 : index
    %635 = vector.load %arg1[%634, %c0_206, %c0_207] : memref<8x8x32xf32, #tpu.memory_space<vmem>>, vector<1x8x32xf32>
    %636 = vector.shape_cast %635 : vector<1x8x32xf32> to vector<8x32xf32>
    %637 = tpu.concatenate %633, %625 in 1 : vector<8x64xf32>, vector<8x32xf32> -> vector<8x96xf32>
    %cst_208 = arith.constant dense<0.000000e+00> : vector<8x128xf32>
    %638 = tpu.matmul %637, %530, %cst_208 {dimension_numbers = #tpu.dot_dimension_numbers<[1], [0], [0], [1], [0, 0, 1, 1], [], []>} : vector<8x96xf32>, vector<96x128xf32>, vector<8x128xf32> -> vector<8x128xf32>
    %639 = arith.addf %638, %533 : vector<8x128xf32>
    %640 = arith.negf %639 : vector<8x128xf32>
    %641 = math.exp %640 : vector<8x128xf32>
    %cst_209 = arith.constant 1.000000e+00 : f32
    %642 = vector.broadcast %cst_209 : f32 to vector<8x128xf32>
    %643 = arith.addf %642, %641 : vector<8x128xf32>
    %644 = arith.divf %642, %643 : vector<8x128xf32>
    %645 = math.tanh %639 : vector<8x128xf32>
    %646 = vector.extract_strided_slice %644 {offsets = [0, 0], sizes = [8, 32], strides = [1, 1]} : vector<8x128xf32> to vector<8x32xf32>
    %647 = vector.extract_strided_slice %644 {offsets = [0, 32], sizes = [8, 32], strides = [1, 1]} : vector<8x128xf32> to vector<8x32xf32>
    %648 = vector.extract_strided_slice %645 {offsets = [0, 64], sizes = [8, 32], strides = [1, 1]} : vector<8x128xf32> to vector<8x32xf32>
    %649 = vector.extract_strided_slice %644 {offsets = [0, 96], sizes = [8, 32], strides = [1, 1]} : vector<8x128xf32> to vector<8x32xf32>
    %650 = arith.mulf %647, %626 : vector<8x32xf32>
    %651 = arith.mulf %646, %648 : vector<8x32xf32>
    %652 = arith.addf %650, %651 : vector<8x32xf32>
    %653 = math.tanh %652 : vector<8x32xf32>
    %654 = arith.mulf %649, %653 : vector<8x32xf32>
    %cst_210 = arith.constant 5.000000e-01 : f32
    %655 = vector.broadcast %cst_210 : f32 to vector<8x32xf32>
    %656 = arith.cmpf ogt, %636, %655 : vector<8x32xf32>
    %657 = arith.select %656, %654, %625 : vector<8x32xi1>, vector<8x32xf32>
    %658 = arith.select %656, %652, %626 : vector<8x32xi1>, vector<8x32xf32>
    %659 = arith.index_cast %c3_i32_203 : i32 to index
    %c0_211 = arith.constant 0 : index
    %c0_212 = arith.constant 0 : index
    %660 = vector.load %arg10[%659, %c0_211, %c0_212] : memref<8x8x64xf32, #tpu.memory_space<vmem>>, vector<1x8x32xf32>
    %661 = vector.shape_cast %660 : vector<1x8x32xf32> to vector<8x32xf32>
    %662 = vector.shape_cast %657 : vector<8x32xf32> to vector<1x8x32xf32>
    tpu.vector_store %arg10[%659, %c0_211, %c0_212], %662 {strides = array<i32>} : memref<8x8x64xf32, #tpu.memory_space<vmem>>, vector<1x8x32xf32>,
    %c4_i32_213 = arith.constant 4 : i32
    %663 = arith.index_cast %c4_i32_213 : i32 to index
    %c0_214 = arith.constant 0 : index
    %c0_215 = arith.constant 0 : index
    %664 = vector.load %arg11[%663, %c0_214, %c0_215] : memref<8x8x64xf32, #tpu.memory_space<vmem>>, vector<1x8x64xf32>
    %665 = vector.shape_cast %664 : vector<1x8x64xf32> to vector<8x64xf32>
    %666 = arith.index_cast %c4_i32_213 : i32 to index
    %c0_216 = arith.constant 0 : index
    %c0_217 = arith.constant 0 : index
    %667 = vector.load %arg1[%666, %c0_216, %c0_217] : memref<8x8x32xf32, #tpu.memory_space<vmem>>, vector<1x8x32xf32>
    %668 = vector.shape_cast %667 : vector<1x8x32xf32> to vector<8x32xf32>
    %669 = tpu.concatenate %665, %657 in 1 : vector<8x64xf32>, vector<8x32xf32> -> vector<8x96xf32>
    %cst_218 = arith.constant dense<0.000000e+00> : vector<8x128xf32>
    %670 = tpu.matmul %669, %530, %cst_218 {dimension_numbers = #tpu.dot_dimension_numbers<[1], [0], [0], [1], [0, 0, 1, 1], [], []>} : vector<8x96xf32>, vector<96x128xf32>, vector<8x128xf32> -> vector<8x128xf32>
    %671 = arith.addf %670, %533 : vector<8x128xf32>
    %672 = arith.negf %671 : vector<8x128xf32>
    %673 = math.exp %672 : vector<8x128xf32>
    %cst_219 = arith.constant 1.000000e+00 : f32
    %674 = vector.broadcast %cst_219 : f32 to vector<8x128xf32>
    %675 = arith.addf %674, %673 : vector<8x128xf32>
    %676 = arith.divf %674, %675 : vector<8x128xf32>
    %677 = math.tanh %671 : vector<8x128xf32>
    %678 = vector.extract_strided_slice %676 {offsets = [0, 0], sizes = [8, 32], strides = [1, 1]} : vector<8x128xf32> to vector<8x32xf32>
    %679 = vector.extract_strided_slice %676 {offsets = [0, 32], sizes = [8, 32], strides = [1, 1]} : vector<8x128xf32> to vector<8x32xf32>
    %680 = vector.extract_strided_slice %677 {offsets = [0, 64], sizes = [8, 32], strides = [1, 1]} : vector<8x128xf32> to vector<8x32xf32>
    %681 = vector.extract_strided_slice %676 {offsets = [0, 96], sizes = [8, 32], strides = [1, 1]} : vector<8x128xf32> to vector<8x32xf32>
    %682 = arith.mulf %679, %658 : vector<8x32xf32>
    %683 = arith.mulf %678, %680 : vector<8x32xf32>
    %684 = arith.addf %682, %683 : vector<8x32xf32>
    %685 = math.tanh %684 : vector<8x32xf32>
    %686 = arith.mulf %681, %685 : vector<8x32xf32>
    %cst_220 = arith.constant 5.000000e-01 : f32
    %687 = vector.broadcast %cst_220 : f32 to vector<8x32xf32>
    %688 = arith.cmpf ogt, %668, %687 : vector<8x32xf32>
    %689 = arith.select %688, %686, %657 : vector<8x32xi1>, vector<8x32xf32>
    %690 = arith.select %688, %684, %658 : vector<8x32xi1>, vector<8x32xf32>
    %691 = arith.index_cast %c4_i32_213 : i32 to index
    %c0_221 = arith.constant 0 : index
    %c0_222 = arith.constant 0 : index
    %692 = vector.load %arg10[%691, %c0_221, %c0_222] : memref<8x8x64xf32, #tpu.memory_space<vmem>>, vector<1x8x32xf32>
    %693 = vector.shape_cast %692 : vector<1x8x32xf32> to vector<8x32xf32>
    %694 = vector.shape_cast %689 : vector<8x32xf32> to vector<1x8x32xf32>
    tpu.vector_store %arg10[%691, %c0_221, %c0_222], %694 {strides = array<i32>} : memref<8x8x64xf32, #tpu.memory_space<vmem>>, vector<1x8x32xf32>,
    %c5_i32_223 = arith.constant 5 : i32
    %695 = arith.index_cast %c5_i32_223 : i32 to index
    %c0_224 = arith.constant 0 : index
    %c0_225 = arith.constant 0 : index
    %696 = vector.load %arg11[%695, %c0_224, %c0_225] : memref<8x8x64xf32, #tpu.memory_space<vmem>>, vector<1x8x64xf32>
    %697 = vector.shape_cast %696 : vector<1x8x64xf32> to vector<8x64xf32>
    %698 = arith.index_cast %c5_i32_223 : i32 to index
    %c0_226 = arith.constant 0 : index
    %c0_227 = arith.constant 0 : index
    %699 = vector.load %arg1[%698, %c0_226, %c0_227] : memref<8x8x32xf32, #tpu.memory_space<vmem>>, vector<1x8x32xf32>
    %700 = vector.shape_cast %699 : vector<1x8x32xf32> to vector<8x32xf32>
    %701 = tpu.concatenate %697, %689 in 1 : vector<8x64xf32>, vector<8x32xf32> -> vector<8x96xf32>
    %cst_228 = arith.constant dense<0.000000e+00> : vector<8x128xf32>
    %702 = tpu.matmul %701, %530, %cst_228 {dimension_numbers = #tpu.dot_dimension_numbers<[1], [0], [0], [1], [0, 0, 1, 1], [], []>} : vector<8x96xf32>, vector<96x128xf32>, vector<8x128xf32> -> vector<8x128xf32>
    %703 = arith.addf %702, %533 : vector<8x128xf32>
    %704 = arith.negf %703 : vector<8x128xf32>
    %705 = math.exp %704 : vector<8x128xf32>
    %cst_229 = arith.constant 1.000000e+00 : f32
    %706 = vector.broadcast %cst_229 : f32 to vector<8x128xf32>
    %707 = arith.addf %706, %705 : vector<8x128xf32>
    %708 = arith.divf %706, %707 : vector<8x128xf32>
    %709 = math.tanh %703 : vector<8x128xf32>
    %710 = vector.extract_strided_slice %708 {offsets = [0, 0], sizes = [8, 32], strides = [1, 1]} : vector<8x128xf32> to vector<8x32xf32>
    %711 = vector.extract_strided_slice %708 {offsets = [0, 32], sizes = [8, 32], strides = [1, 1]} : vector<8x128xf32> to vector<8x32xf32>
    %712 = vector.extract_strided_slice %709 {offsets = [0, 64], sizes = [8, 32], strides = [1, 1]} : vector<8x128xf32> to vector<8x32xf32>
    %713 = vector.extract_strided_slice %708 {offsets = [0, 96], sizes = [8, 32], strides = [1, 1]} : vector<8x128xf32> to vector<8x32xf32>
    %714 = arith.mulf %711, %690 : vector<8x32xf32>
    %715 = arith.mulf %710, %712 : vector<8x32xf32>
    %716 = arith.addf %714, %715 : vector<8x32xf32>
    %717 = math.tanh %716 : vector<8x32xf32>
    %718 = arith.mulf %713, %717 : vector<8x32xf32>
    %cst_230 = arith.constant 5.000000e-01 : f32
    %719 = vector.broadcast %cst_230 : f32 to vector<8x32xf32>
    %720 = arith.cmpf ogt, %700, %719 : vector<8x32xf32>
    %721 = arith.select %720, %718, %689 : vector<8x32xi1>, vector<8x32xf32>
    %722 = arith.select %720, %716, %690 : vector<8x32xi1>, vector<8x32xf32>
    %723 = arith.index_cast %c5_i32_223 : i32 to index
    %c0_231 = arith.constant 0 : index
    %c0_232 = arith.constant 0 : index
    %724 = vector.load %arg10[%723, %c0_231, %c0_232] : memref<8x8x64xf32, #tpu.memory_space<vmem>>, vector<1x8x32xf32>
    %725 = vector.shape_cast %724 : vector<1x8x32xf32> to vector<8x32xf32>
    %726 = vector.shape_cast %721 : vector<8x32xf32> to vector<1x8x32xf32>
    tpu.vector_store %arg10[%723, %c0_231, %c0_232], %726 {strides = array<i32>} : memref<8x8x64xf32, #tpu.memory_space<vmem>>, vector<1x8x32xf32>,
    %c6_i32_233 = arith.constant 6 : i32
    %727 = arith.index_cast %c6_i32_233 : i32 to index
    %c0_234 = arith.constant 0 : index
    %c0_235 = arith.constant 0 : index
    %728 = vector.load %arg11[%727, %c0_234, %c0_235] : memref<8x8x64xf32, #tpu.memory_space<vmem>>, vector<1x8x64xf32>
    %729 = vector.shape_cast %728 : vector<1x8x64xf32> to vector<8x64xf32>
    %730 = arith.index_cast %c6_i32_233 : i32 to index
    %c0_236 = arith.constant 0 : index
    %c0_237 = arith.constant 0 : index
    %731 = vector.load %arg1[%730, %c0_236, %c0_237] : memref<8x8x32xf32, #tpu.memory_space<vmem>>, vector<1x8x32xf32>
    %732 = vector.shape_cast %731 : vector<1x8x32xf32> to vector<8x32xf32>
    %733 = tpu.concatenate %729, %721 in 1 : vector<8x64xf32>, vector<8x32xf32> -> vector<8x96xf32>
    %cst_238 = arith.constant dense<0.000000e+00> : vector<8x128xf32>
    %734 = tpu.matmul %733, %530, %cst_238 {dimension_numbers = #tpu.dot_dimension_numbers<[1], [0], [0], [1], [0, 0, 1, 1], [], []>} : vector<8x96xf32>, vector<96x128xf32>, vector<8x128xf32> -> vector<8x128xf32>
    %735 = arith.addf %734, %533 : vector<8x128xf32>
    %736 = arith.negf %735 : vector<8x128xf32>
    %737 = math.exp %736 : vector<8x128xf32>
    %cst_239 = arith.constant 1.000000e+00 : f32
    %738 = vector.broadcast %cst_239 : f32 to vector<8x128xf32>
    %739 = arith.addf %738, %737 : vector<8x128xf32>
    %740 = arith.divf %738, %739 : vector<8x128xf32>
    %741 = math.tanh %735 : vector<8x128xf32>
    %742 = vector.extract_strided_slice %740 {offsets = [0, 0], sizes = [8, 32], strides = [1, 1]} : vector<8x128xf32> to vector<8x32xf32>
    %743 = vector.extract_strided_slice %740 {offsets = [0, 32], sizes = [8, 32], strides = [1, 1]} : vector<8x128xf32> to vector<8x32xf32>
    %744 = vector.extract_strided_slice %741 {offsets = [0, 64], sizes = [8, 32], strides = [1, 1]} : vector<8x128xf32> to vector<8x32xf32>
    %745 = vector.extract_strided_slice %740 {offsets = [0, 96], sizes = [8, 32], strides = [1, 1]} : vector<8x128xf32> to vector<8x32xf32>
    %746 = arith.mulf %743, %722 : vector<8x32xf32>
    %747 = arith.mulf %742, %744 : vector<8x32xf32>
    %748 = arith.addf %746, %747 : vector<8x32xf32>
    %749 = math.tanh %748 : vector<8x32xf32>
    %750 = arith.mulf %745, %749 : vector<8x32xf32>
    %cst_240 = arith.constant 5.000000e-01 : f32
    %751 = vector.broadcast %cst_240 : f32 to vector<8x32xf32>
    %752 = arith.cmpf ogt, %732, %751 : vector<8x32xf32>
    %753 = arith.select %752, %750, %721 : vector<8x32xi1>, vector<8x32xf32>
    %754 = arith.select %752, %748, %722 : vector<8x32xi1>, vector<8x32xf32>
    %755 = arith.index_cast %c6_i32_233 : i32 to index
    %c0_241 = arith.constant 0 : index
    %c0_242 = arith.constant 0 : index
    %756 = vector.load %arg10[%755, %c0_241, %c0_242] : memref<8x8x64xf32, #tpu.memory_space<vmem>>, vector<1x8x32xf32>
    %757 = vector.shape_cast %756 : vector<1x8x32xf32> to vector<8x32xf32>
    %758 = vector.shape_cast %753 : vector<8x32xf32> to vector<1x8x32xf32>
    tpu.vector_store %arg10[%755, %c0_241, %c0_242], %758 {strides = array<i32>} : memref<8x8x64xf32, #tpu.memory_space<vmem>>, vector<1x8x32xf32>,
    %c7_i32_243 = arith.constant 7 : i32
    %759 = arith.index_cast %c7_i32_243 : i32 to index
    %c0_244 = arith.constant 0 : index
    %c0_245 = arith.constant 0 : index
    %760 = vector.load %arg11[%759, %c0_244, %c0_245] : memref<8x8x64xf32, #tpu.memory_space<vmem>>, vector<1x8x64xf32>
    %761 = vector.shape_cast %760 : vector<1x8x64xf32> to vector<8x64xf32>
    %762 = arith.index_cast %c7_i32_243 : i32 to index
    %c0_246 = arith.constant 0 : index
    %c0_247 = arith.constant 0 : index
    %763 = vector.load %arg1[%762, %c0_246, %c0_247] : memref<8x8x32xf32, #tpu.memory_space<vmem>>, vector<1x8x32xf32>
    %764 = vector.shape_cast %763 : vector<1x8x32xf32> to vector<8x32xf32>
    %765 = tpu.concatenate %761, %753 in 1 : vector<8x64xf32>, vector<8x32xf32> -> vector<8x96xf32>
    %cst_248 = arith.constant dense<0.000000e+00> : vector<8x128xf32>
    %766 = tpu.matmul %765, %530, %cst_248 {dimension_numbers = #tpu.dot_dimension_numbers<[1], [0], [0], [1], [0, 0, 1, 1], [], []>} : vector<8x96xf32>, vector<96x128xf32>, vector<8x128xf32> -> vector<8x128xf32>
    %767 = arith.addf %766, %533 : vector<8x128xf32>
    %768 = arith.negf %767 : vector<8x128xf32>
    %769 = math.exp %768 : vector<8x128xf32>
    %cst_249 = arith.constant 1.000000e+00 : f32
    %770 = vector.broadcast %cst_249 : f32 to vector<8x128xf32>
    %771 = arith.addf %770, %769 : vector<8x128xf32>
    %772 = arith.divf %770, %771 : vector<8x128xf32>
    %773 = math.tanh %767 : vector<8x128xf32>
    %774 = vector.extract_strided_slice %772 {offsets = [0, 0], sizes = [8, 32], strides = [1, 1]} : vector<8x128xf32> to vector<8x32xf32>
    %775 = vector.extract_strided_slice %772 {offsets = [0, 32], sizes = [8, 32], strides = [1, 1]} : vector<8x128xf32> to vector<8x32xf32>
    %776 = vector.extract_strided_slice %773 {offsets = [0, 64], sizes = [8, 32], strides = [1, 1]} : vector<8x128xf32> to vector<8x32xf32>
    %777 = vector.extract_strided_slice %772 {offsets = [0, 96], sizes = [8, 32], strides = [1, 1]} : vector<8x128xf32> to vector<8x32xf32>
    %778 = arith.mulf %775, %754 : vector<8x32xf32>
    %779 = arith.mulf %774, %776 : vector<8x32xf32>
    %780 = arith.addf %778, %779 : vector<8x32xf32>
    %781 = math.tanh %780 : vector<8x32xf32>
    %782 = arith.mulf %777, %781 : vector<8x32xf32>
    %cst_250 = arith.constant 5.000000e-01 : f32
    %783 = vector.broadcast %cst_250 : f32 to vector<8x32xf32>
    %784 = arith.cmpf ogt, %764, %783 : vector<8x32xf32>
    %785 = arith.select %784, %782, %753 : vector<8x32xi1>, vector<8x32xf32>
    %786 = arith.select %784, %780, %754 : vector<8x32xi1>, vector<8x32xf32>
    %787 = arith.index_cast %c7_i32_243 : i32 to index
    %c0_251 = arith.constant 0 : index
    %c0_252 = arith.constant 0 : index
    %788 = vector.load %arg10[%787, %c0_251, %c0_252] : memref<8x8x64xf32, #tpu.memory_space<vmem>>, vector<1x8x32xf32>
    %789 = vector.shape_cast %788 : vector<1x8x32xf32> to vector<8x32xf32>
    %790 = vector.shape_cast %785 : vector<8x32xf32> to vector<1x8x32xf32>
    tpu.vector_store %arg10[%787, %c0_251, %c0_252], %790 {strides = array<i32>} : memref<8x8x64xf32, #tpu.memory_space<vmem>>, vector<1x8x32xf32>,
    %c8_i32_253 = arith.constant 8 : i32
    %c0_254 = arith.constant 0 : index
    %c0_255 = arith.constant 0 : index
    %791 = vector.load %arg8[%c0_254, %c0_255] : memref<96x128xf32, #tpu.memory_space<vmem>>, vector<96x128xf32>
    %c0_256 = arith.constant 0 : index
    %c0_257 = arith.constant 0 : index
    %792 = vector.load %arg9[%c0_256, %c0_257] : memref<1x128xf32, #tpu.memory_space<vmem>>, vector<1x128xf32>
    %793 = vector.shape_cast %792 : vector<1x128xf32> to vector<1x128xf32>
    %794 = vector.broadcast %793 : vector<1x128xf32> to vector<8x128xf32>
    %cst_258 = arith.constant 0.000000e+00 : f32
    %795 = vector.broadcast %cst_258 : f32 to vector<8x32xf32>
    %c0_i32_259 = arith.constant 0 : i32
    %c7_i32_260 = arith.constant 7 : i32
    %796 = arith.subi %c7_i32_260, %c0_i32_259 : i32
    %797 = arith.index_cast %796 : i32 to index
    %c0_261 = arith.constant 0 : index
    %c0_262 = arith.constant 0 : index
    %798 = vector.load %arg11[%797, %c0_261, %c0_262] : memref<8x8x64xf32, #tpu.memory_space<vmem>>, vector<1x8x64xf32>
    %799 = vector.shape_cast %798 : vector<1x8x64xf32> to vector<8x64xf32>
    %800 = arith.index_cast %796 : i32 to index
    %c0_263 = arith.constant 0 : index
    %c0_264 = arith.constant 0 : index
    %801 = vector.load %arg1[%800, %c0_263, %c0_264] : memref<8x8x32xf32, #tpu.memory_space<vmem>>, vector<1x8x32xf32>
    %802 = vector.shape_cast %801 : vector<1x8x32xf32> to vector<8x32xf32>
    %803 = tpu.concatenate %799, %795 in 1 : vector<8x64xf32>, vector<8x32xf32> -> vector<8x96xf32>
    %cst_265 = arith.constant dense<0.000000e+00> : vector<8x128xf32>
    %804 = tpu.matmul %803, %791, %cst_265 {dimension_numbers = #tpu.dot_dimension_numbers<[1], [0], [0], [1], [0, 0, 1, 1], [], []>} : vector<8x96xf32>, vector<96x128xf32>, vector<8x128xf32> -> vector<8x128xf32>
    %805 = arith.addf %804, %794 : vector<8x128xf32>
    %806 = arith.negf %805 : vector<8x128xf32>
    %807 = math.exp %806 : vector<8x128xf32>
    %cst_266 = arith.constant 1.000000e+00 : f32
    %808 = vector.broadcast %cst_266 : f32 to vector<8x128xf32>
    %809 = arith.addf %808, %807 : vector<8x128xf32>
    %810 = arith.divf %808, %809 : vector<8x128xf32>
    %811 = math.tanh %805 : vector<8x128xf32>
    %812 = vector.extract_strided_slice %810 {offsets = [0, 0], sizes = [8, 32], strides = [1, 1]} : vector<8x128xf32> to vector<8x32xf32>
    %813 = vector.extract_strided_slice %810 {offsets = [0, 32], sizes = [8, 32], strides = [1, 1]} : vector<8x128xf32> to vector<8x32xf32>
    %814 = vector.extract_strided_slice %811 {offsets = [0, 64], sizes = [8, 32], strides = [1, 1]} : vector<8x128xf32> to vector<8x32xf32>
    %815 = vector.extract_strided_slice %810 {offsets = [0, 96], sizes = [8, 32], strides = [1, 1]} : vector<8x128xf32> to vector<8x32xf32>
    %816 = arith.mulf %813, %795 : vector<8x32xf32>
    %817 = arith.mulf %812, %814 : vector<8x32xf32>
    %818 = arith.addf %816, %817 : vector<8x32xf32>
    %819 = math.tanh %818 : vector<8x32xf32>
    %820 = arith.mulf %815, %819 : vector<8x32xf32>
    %cst_267 = arith.constant 5.000000e-01 : f32
    %821 = vector.broadcast %cst_267 : f32 to vector<8x32xf32>
    %822 = arith.cmpf ogt, %802, %821 : vector<8x32xf32>
    %823 = arith.select %822, %820, %795 : vector<8x32xi1>, vector<8x32xf32>
    %824 = arith.select %822, %818, %795 : vector<8x32xi1>, vector<8x32xf32>
    %825 = arith.index_cast %796 : i32 to index
    %c0_268 = arith.constant 0 : index
    %c32_269 = arith.constant 32 : index
    %826 = vector.load %arg10[%825, %c0_268, %c32_269] : memref<8x8x64xf32, #tpu.memory_space<vmem>>, vector<1x8x32xf32>
    %827 = vector.shape_cast %826 : vector<1x8x32xf32> to vector<8x32xf32>
    %828 = vector.shape_cast %823 : vector<8x32xf32> to vector<1x8x32xf32>
    tpu.vector_store %arg10[%825, %c0_268, %c32_269], %828 {strides = array<i32>} : memref<8x8x64xf32, #tpu.memory_space<vmem>>, vector<1x8x32xf32>,
    %c1_i32_270 = arith.constant 1 : i32
    %c7_i32_271 = arith.constant 7 : i32
    %829 = arith.subi %c7_i32_271, %c1_i32_270 : i32
    %830 = arith.index_cast %829 : i32 to index
    %c0_272 = arith.constant 0 : index
    %c0_273 = arith.constant 0 : index
    %831 = vector.load %arg11[%830, %c0_272, %c0_273] : memref<8x8x64xf32, #tpu.memory_space<vmem>>, vector<1x8x64xf32>
    %832 = vector.shape_cast %831 : vector<1x8x64xf32> to vector<8x64xf32>
    %833 = arith.index_cast %829 : i32 to index
    %c0_274 = arith.constant 0 : index
    %c0_275 = arith.constant 0 : index
    %834 = vector.load %arg1[%833, %c0_274, %c0_275] : memref<8x8x32xf32, #tpu.memory_space<vmem>>, vector<1x8x32xf32>
    %835 = vector.shape_cast %834 : vector<1x8x32xf32> to vector<8x32xf32>
    %836 = tpu.concatenate %832, %823 in 1 : vector<8x64xf32>, vector<8x32xf32> -> vector<8x96xf32>
    %cst_276 = arith.constant dense<0.000000e+00> : vector<8x128xf32>
    %837 = tpu.matmul %836, %791, %cst_276 {dimension_numbers = #tpu.dot_dimension_numbers<[1], [0], [0], [1], [0, 0, 1, 1], [], []>} : vector<8x96xf32>, vector<96x128xf32>, vector<8x128xf32> -> vector<8x128xf32>
    %838 = arith.addf %837, %794 : vector<8x128xf32>
    %839 = arith.negf %838 : vector<8x128xf32>
    %840 = math.exp %839 : vector<8x128xf32>
    %cst_277 = arith.constant 1.000000e+00 : f32
    %841 = vector.broadcast %cst_277 : f32 to vector<8x128xf32>
    %842 = arith.addf %841, %840 : vector<8x128xf32>
    %843 = arith.divf %841, %842 : vector<8x128xf32>
    %844 = math.tanh %838 : vector<8x128xf32>
    %845 = vector.extract_strided_slice %843 {offsets = [0, 0], sizes = [8, 32], strides = [1, 1]} : vector<8x128xf32> to vector<8x32xf32>
    %846 = vector.extract_strided_slice %843 {offsets = [0, 32], sizes = [8, 32], strides = [1, 1]} : vector<8x128xf32> to vector<8x32xf32>
    %847 = vector.extract_strided_slice %844 {offsets = [0, 64], sizes = [8, 32], strides = [1, 1]} : vector<8x128xf32> to vector<8x32xf32>
    %848 = vector.extract_strided_slice %843 {offsets = [0, 96], sizes = [8, 32], strides = [1, 1]} : vector<8x128xf32> to vector<8x32xf32>
    %849 = arith.mulf %846, %824 : vector<8x32xf32>
    %850 = arith.mulf %845, %847 : vector<8x32xf32>
    %851 = arith.addf %849, %850 : vector<8x32xf32>
    %852 = math.tanh %851 : vector<8x32xf32>
    %853 = arith.mulf %848, %852 : vector<8x32xf32>
    %cst_278 = arith.constant 5.000000e-01 : f32
    %854 = vector.broadcast %cst_278 : f32 to vector<8x32xf32>
    %855 = arith.cmpf ogt, %835, %854 : vector<8x32xf32>
    %856 = arith.select %855, %853, %823 : vector<8x32xi1>, vector<8x32xf32>
    %857 = arith.select %855, %851, %824 : vector<8x32xi1>, vector<8x32xf32>
    %858 = arith.index_cast %829 : i32 to index
    %c0_279 = arith.constant 0 : index
    %c32_280 = arith.constant 32 : index
    %859 = vector.load %arg10[%858, %c0_279, %c32_280] : memref<8x8x64xf32, #tpu.memory_space<vmem>>, vector<1x8x32xf32>
    %860 = vector.shape_cast %859 : vector<1x8x32xf32> to vector<8x32xf32>
    %861 = vector.shape_cast %856 : vector<8x32xf32> to vector<1x8x32xf32>
    tpu.vector_store %arg10[%858, %c0_279, %c32_280], %861 {strides = array<i32>} : memref<8x8x64xf32, #tpu.memory_space<vmem>>, vector<1x8x32xf32>,
    %c2_i32_281 = arith.constant 2 : i32
    %c7_i32_282 = arith.constant 7 : i32
    %862 = arith.subi %c7_i32_282, %c2_i32_281 : i32
    %863 = arith.index_cast %862 : i32 to index
    %c0_283 = arith.constant 0 : index
    %c0_284 = arith.constant 0 : index
    %864 = vector.load %arg11[%863, %c0_283, %c0_284] : memref<8x8x64xf32, #tpu.memory_space<vmem>>, vector<1x8x64xf32>
    %865 = vector.shape_cast %864 : vector<1x8x64xf32> to vector<8x64xf32>
    %866 = arith.index_cast %862 : i32 to index
    %c0_285 = arith.constant 0 : index
    %c0_286 = arith.constant 0 : index
    %867 = vector.load %arg1[%866, %c0_285, %c0_286] : memref<8x8x32xf32, #tpu.memory_space<vmem>>, vector<1x8x32xf32>
    %868 = vector.shape_cast %867 : vector<1x8x32xf32> to vector<8x32xf32>
    %869 = tpu.concatenate %865, %856 in 1 : vector<8x64xf32>, vector<8x32xf32> -> vector<8x96xf32>
    %cst_287 = arith.constant dense<0.000000e+00> : vector<8x128xf32>
    %870 = tpu.matmul %869, %791, %cst_287 {dimension_numbers = #tpu.dot_dimension_numbers<[1], [0], [0], [1], [0, 0, 1, 1], [], []>} : vector<8x96xf32>, vector<96x128xf32>, vector<8x128xf32> -> vector<8x128xf32>
    %871 = arith.addf %870, %794 : vector<8x128xf32>
    %872 = arith.negf %871 : vector<8x128xf32>
    %873 = math.exp %872 : vector<8x128xf32>
    %cst_288 = arith.constant 1.000000e+00 : f32
    %874 = vector.broadcast %cst_288 : f32 to vector<8x128xf32>
    %875 = arith.addf %874, %873 : vector<8x128xf32>
    %876 = arith.divf %874, %875 : vector<8x128xf32>
    %877 = math.tanh %871 : vector<8x128xf32>
    %878 = vector.extract_strided_slice %876 {offsets = [0, 0], sizes = [8, 32], strides = [1, 1]} : vector<8x128xf32> to vector<8x32xf32>
    %879 = vector.extract_strided_slice %876 {offsets = [0, 32], sizes = [8, 32], strides = [1, 1]} : vector<8x128xf32> to vector<8x32xf32>
    %880 = vector.extract_strided_slice %877 {offsets = [0, 64], sizes = [8, 32], strides = [1, 1]} : vector<8x128xf32> to vector<8x32xf32>
    %881 = vector.extract_strided_slice %876 {offsets = [0, 96], sizes = [8, 32], strides = [1, 1]} : vector<8x128xf32> to vector<8x32xf32>
    %882 = arith.mulf %879, %857 : vector<8x32xf32>
    %883 = arith.mulf %878, %880 : vector<8x32xf32>
    %884 = arith.addf %882, %883 : vector<8x32xf32>
    %885 = math.tanh %884 : vector<8x32xf32>
    %886 = arith.mulf %881, %885 : vector<8x32xf32>
    %cst_289 = arith.constant 5.000000e-01 : f32
    %887 = vector.broadcast %cst_289 : f32 to vector<8x32xf32>
    %888 = arith.cmpf ogt, %868, %887 : vector<8x32xf32>
    %889 = arith.select %888, %886, %856 : vector<8x32xi1>, vector<8x32xf32>
    %890 = arith.select %888, %884, %857 : vector<8x32xi1>, vector<8x32xf32>
    %891 = arith.index_cast %862 : i32 to index
    %c0_290 = arith.constant 0 : index
    %c32_291 = arith.constant 32 : index
    %892 = vector.load %arg10[%891, %c0_290, %c32_291] : memref<8x8x64xf32, #tpu.memory_space<vmem>>, vector<1x8x32xf32>
    %893 = vector.shape_cast %892 : vector<1x8x32xf32> to vector<8x32xf32>
    %894 = vector.shape_cast %889 : vector<8x32xf32> to vector<1x8x32xf32>
    tpu.vector_store %arg10[%891, %c0_290, %c32_291], %894 {strides = array<i32>} : memref<8x8x64xf32, #tpu.memory_space<vmem>>, vector<1x8x32xf32>,
    %c3_i32_292 = arith.constant 3 : i32
    %c7_i32_293 = arith.constant 7 : i32
    %895 = arith.subi %c7_i32_293, %c3_i32_292 : i32
    %896 = arith.index_cast %895 : i32 to index
    %c0_294 = arith.constant 0 : index
    %c0_295 = arith.constant 0 : index
    %897 = vector.load %arg11[%896, %c0_294, %c0_295] : memref<8x8x64xf32, #tpu.memory_space<vmem>>, vector<1x8x64xf32>
    %898 = vector.shape_cast %897 : vector<1x8x64xf32> to vector<8x64xf32>
    %899 = arith.index_cast %895 : i32 to index
    %c0_296 = arith.constant 0 : index
    %c0_297 = arith.constant 0 : index
    %900 = vector.load %arg1[%899, %c0_296, %c0_297] : memref<8x8x32xf32, #tpu.memory_space<vmem>>, vector<1x8x32xf32>
    %901 = vector.shape_cast %900 : vector<1x8x32xf32> to vector<8x32xf32>
    %902 = tpu.concatenate %898, %889 in 1 : vector<8x64xf32>, vector<8x32xf32> -> vector<8x96xf32>
    %cst_298 = arith.constant dense<0.000000e+00> : vector<8x128xf32>
    %903 = tpu.matmul %902, %791, %cst_298 {dimension_numbers = #tpu.dot_dimension_numbers<[1], [0], [0], [1], [0, 0, 1, 1], [], []>} : vector<8x96xf32>, vector<96x128xf32>, vector<8x128xf32> -> vector<8x128xf32>
    %904 = arith.addf %903, %794 : vector<8x128xf32>
    %905 = arith.negf %904 : vector<8x128xf32>
    %906 = math.exp %905 : vector<8x128xf32>
    %cst_299 = arith.constant 1.000000e+00 : f32
    %907 = vector.broadcast %cst_299 : f32 to vector<8x128xf32>
    %908 = arith.addf %907, %906 : vector<8x128xf32>
    %909 = arith.divf %907, %908 : vector<8x128xf32>
    %910 = math.tanh %904 : vector<8x128xf32>
    %911 = vector.extract_strided_slice %909 {offsets = [0, 0], sizes = [8, 32], strides = [1, 1]} : vector<8x128xf32> to vector<8x32xf32>
    %912 = vector.extract_strided_slice %909 {offsets = [0, 32], sizes = [8, 32], strides = [1, 1]} : vector<8x128xf32> to vector<8x32xf32>
    %913 = vector.extract_strided_slice %910 {offsets = [0, 64], sizes = [8, 32], strides = [1, 1]} : vector<8x128xf32> to vector<8x32xf32>
    %914 = vector.extract_strided_slice %909 {offsets = [0, 96], sizes = [8, 32], strides = [1, 1]} : vector<8x128xf32> to vector<8x32xf32>
    %915 = arith.mulf %912, %890 : vector<8x32xf32>
    %916 = arith.mulf %911, %913 : vector<8x32xf32>
    %917 = arith.addf %915, %916 : vector<8x32xf32>
    %918 = math.tanh %917 : vector<8x32xf32>
    %919 = arith.mulf %914, %918 : vector<8x32xf32>
    %cst_300 = arith.constant 5.000000e-01 : f32
    %920 = vector.broadcast %cst_300 : f32 to vector<8x32xf32>
    %921 = arith.cmpf ogt, %901, %920 : vector<8x32xf32>
    %922 = arith.select %921, %919, %889 : vector<8x32xi1>, vector<8x32xf32>
    %923 = arith.select %921, %917, %890 : vector<8x32xi1>, vector<8x32xf32>
    %924 = arith.index_cast %895 : i32 to index
    %c0_301 = arith.constant 0 : index
    %c32_302 = arith.constant 32 : index
    %925 = vector.load %arg10[%924, %c0_301, %c32_302] : memref<8x8x64xf32, #tpu.memory_space<vmem>>, vector<1x8x32xf32>
    %926 = vector.shape_cast %925 : vector<1x8x32xf32> to vector<8x32xf32>
    %927 = vector.shape_cast %922 : vector<8x32xf32> to vector<1x8x32xf32>
    tpu.vector_store %arg10[%924, %c0_301, %c32_302], %927 {strides = array<i32>} : memref<8x8x64xf32, #tpu.memory_space<vmem>>, vector<1x8x32xf32>,
    %c4_i32_303 = arith.constant 4 : i32
    %c7_i32_304 = arith.constant 7 : i32
    %928 = arith.subi %c7_i32_304, %c4_i32_303 : i32
    %929 = arith.index_cast %928 : i32 to index
    %c0_305 = arith.constant 0 : index
    %c0_306 = arith.constant 0 : index
    %930 = vector.load %arg11[%929, %c0_305, %c0_306] : memref<8x8x64xf32, #tpu.memory_space<vmem>>, vector<1x8x64xf32>
    %931 = vector.shape_cast %930 : vector<1x8x64xf32> to vector<8x64xf32>
    %932 = arith.index_cast %928 : i32 to index
    %c0_307 = arith.constant 0 : index
    %c0_308 = arith.constant 0 : index
    %933 = vector.load %arg1[%932, %c0_307, %c0_308] : memref<8x8x32xf32, #tpu.memory_space<vmem>>, vector<1x8x32xf32>
    %934 = vector.shape_cast %933 : vector<1x8x32xf32> to vector<8x32xf32>
    %935 = tpu.concatenate %931, %922 in 1 : vector<8x64xf32>, vector<8x32xf32> -> vector<8x96xf32>
    %cst_309 = arith.constant dense<0.000000e+00> : vector<8x128xf32>
    %936 = tpu.matmul %935, %791, %cst_309 {dimension_numbers = #tpu.dot_dimension_numbers<[1], [0], [0], [1], [0, 0, 1, 1], [], []>} : vector<8x96xf32>, vector<96x128xf32>, vector<8x128xf32> -> vector<8x128xf32>
    %937 = arith.addf %936, %794 : vector<8x128xf32>
    %938 = arith.negf %937 : vector<8x128xf32>
    %939 = math.exp %938 : vector<8x128xf32>
    %cst_310 = arith.constant 1.000000e+00 : f32
    %940 = vector.broadcast %cst_310 : f32 to vector<8x128xf32>
    %941 = arith.addf %940, %939 : vector<8x128xf32>
    %942 = arith.divf %940, %941 : vector<8x128xf32>
    %943 = math.tanh %937 : vector<8x128xf32>
    %944 = vector.extract_strided_slice %942 {offsets = [0, 0], sizes = [8, 32], strides = [1, 1]} : vector<8x128xf32> to vector<8x32xf32>
    %945 = vector.extract_strided_slice %942 {offsets = [0, 32], sizes = [8, 32], strides = [1, 1]} : vector<8x128xf32> to vector<8x32xf32>
    %946 = vector.extract_strided_slice %943 {offsets = [0, 64], sizes = [8, 32], strides = [1, 1]} : vector<8x128xf32> to vector<8x32xf32>
    %947 = vector.extract_strided_slice %942 {offsets = [0, 96], sizes = [8, 32], strides = [1, 1]} : vector<8x128xf32> to vector<8x32xf32>
    %948 = arith.mulf %945, %923 : vector<8x32xf32>
    %949 = arith.mulf %944, %946 : vector<8x32xf32>
    %950 = arith.addf %948, %949 : vector<8x32xf32>
    %951 = math.tanh %950 : vector<8x32xf32>
    %952 = arith.mulf %947, %951 : vector<8x32xf32>
    %cst_311 = arith.constant 5.000000e-01 : f32
    %953 = vector.broadcast %cst_311 : f32 to vector<8x32xf32>
    %954 = arith.cmpf ogt, %934, %953 : vector<8x32xf32>
    %955 = arith.select %954, %952, %922 : vector<8x32xi1>, vector<8x32xf32>
    %956 = arith.select %954, %950, %923 : vector<8x32xi1>, vector<8x32xf32>
    %957 = arith.index_cast %928 : i32 to index
    %c0_312 = arith.constant 0 : index
    %c32_313 = arith.constant 32 : index
    %958 = vector.load %arg10[%957, %c0_312, %c32_313] : memref<8x8x64xf32, #tpu.memory_space<vmem>>, vector<1x8x32xf32>
    %959 = vector.shape_cast %958 : vector<1x8x32xf32> to vector<8x32xf32>
    %960 = vector.shape_cast %955 : vector<8x32xf32> to vector<1x8x32xf32>
    tpu.vector_store %arg10[%957, %c0_312, %c32_313], %960 {strides = array<i32>} : memref<8x8x64xf32, #tpu.memory_space<vmem>>, vector<1x8x32xf32>,
    %c5_i32_314 = arith.constant 5 : i32
    %c7_i32_315 = arith.constant 7 : i32
    %961 = arith.subi %c7_i32_315, %c5_i32_314 : i32
    %962 = arith.index_cast %961 : i32 to index
    %c0_316 = arith.constant 0 : index
    %c0_317 = arith.constant 0 : index
    %963 = vector.load %arg11[%962, %c0_316, %c0_317] : memref<8x8x64xf32, #tpu.memory_space<vmem>>, vector<1x8x64xf32>
    %964 = vector.shape_cast %963 : vector<1x8x64xf32> to vector<8x64xf32>
    %965 = arith.index_cast %961 : i32 to index
    %c0_318 = arith.constant 0 : index
    %c0_319 = arith.constant 0 : index
    %966 = vector.load %arg1[%965, %c0_318, %c0_319] : memref<8x8x32xf32, #tpu.memory_space<vmem>>, vector<1x8x32xf32>
    %967 = vector.shape_cast %966 : vector<1x8x32xf32> to vector<8x32xf32>
    %968 = tpu.concatenate %964, %955 in 1 : vector<8x64xf32>, vector<8x32xf32> -> vector<8x96xf32>
    %cst_320 = arith.constant dense<0.000000e+00> : vector<8x128xf32>
    %969 = tpu.matmul %968, %791, %cst_320 {dimension_numbers = #tpu.dot_dimension_numbers<[1], [0], [0], [1], [0, 0, 1, 1], [], []>} : vector<8x96xf32>, vector<96x128xf32>, vector<8x128xf32> -> vector<8x128xf32>
    %970 = arith.addf %969, %794 : vector<8x128xf32>
    %971 = arith.negf %970 : vector<8x128xf32>
    %972 = math.exp %971 : vector<8x128xf32>
    %cst_321 = arith.constant 1.000000e+00 : f32
    %973 = vector.broadcast %cst_321 : f32 to vector<8x128xf32>
    %974 = arith.addf %973, %972 : vector<8x128xf32>
    %975 = arith.divf %973, %974 : vector<8x128xf32>
    %976 = math.tanh %970 : vector<8x128xf32>
    %977 = vector.extract_strided_slice %975 {offsets = [0, 0], sizes = [8, 32], strides = [1, 1]} : vector<8x128xf32> to vector<8x32xf32>
    %978 = vector.extract_strided_slice %975 {offsets = [0, 32], sizes = [8, 32], strides = [1, 1]} : vector<8x128xf32> to vector<8x32xf32>
    %979 = vector.extract_strided_slice %976 {offsets = [0, 64], sizes = [8, 32], strides = [1, 1]} : vector<8x128xf32> to vector<8x32xf32>
    %980 = vector.extract_strided_slice %975 {offsets = [0, 96], sizes = [8, 32], strides = [1, 1]} : vector<8x128xf32> to vector<8x32xf32>
    %981 = arith.mulf %978, %956 : vector<8x32xf32>
    %982 = arith.mulf %977, %979 : vector<8x32xf32>
    %983 = arith.addf %981, %982 : vector<8x32xf32>
    %984 = math.tanh %983 : vector<8x32xf32>
    %985 = arith.mulf %980, %984 : vector<8x32xf32>
    %cst_322 = arith.constant 5.000000e-01 : f32
    %986 = vector.broadcast %cst_322 : f32 to vector<8x32xf32>
    %987 = arith.cmpf ogt, %967, %986 : vector<8x32xf32>
    %988 = arith.select %987, %985, %955 : vector<8x32xi1>, vector<8x32xf32>
    %989 = arith.select %987, %983, %956 : vector<8x32xi1>, vector<8x32xf32>
    %990 = arith.index_cast %961 : i32 to index
    %c0_323 = arith.constant 0 : index
    %c32_324 = arith.constant 32 : index
    %991 = vector.load %arg10[%990, %c0_323, %c32_324] : memref<8x8x64xf32, #tpu.memory_space<vmem>>, vector<1x8x32xf32>
    %992 = vector.shape_cast %991 : vector<1x8x32xf32> to vector<8x32xf32>
    %993 = vector.shape_cast %988 : vector<8x32xf32> to vector<1x8x32xf32>
    tpu.vector_store %arg10[%990, %c0_323, %c32_324], %993 {strides = array<i32>} : memref<8x8x64xf32, #tpu.memory_space<vmem>>, vector<1x8x32xf32>,
    %c6_i32_325 = arith.constant 6 : i32
    %c7_i32_326 = arith.constant 7 : i32
    %994 = arith.subi %c7_i32_326, %c6_i32_325 : i32
    %995 = arith.index_cast %994 : i32 to index
    %c0_327 = arith.constant 0 : index
    %c0_328 = arith.constant 0 : index
    %996 = vector.load %arg11[%995, %c0_327, %c0_328] : memref<8x8x64xf32, #tpu.memory_space<vmem>>, vector<1x8x64xf32>
    %997 = vector.shape_cast %996 : vector<1x8x64xf32> to vector<8x64xf32>
    %998 = arith.index_cast %994 : i32 to index
    %c0_329 = arith.constant 0 : index
    %c0_330 = arith.constant 0 : index
    %999 = vector.load %arg1[%998, %c0_329, %c0_330] : memref<8x8x32xf32, #tpu.memory_space<vmem>>, vector<1x8x32xf32>
    %1000 = vector.shape_cast %999 : vector<1x8x32xf32> to vector<8x32xf32>
    %1001 = tpu.concatenate %997, %988 in 1 : vector<8x64xf32>, vector<8x32xf32> -> vector<8x96xf32>
    %cst_331 = arith.constant dense<0.000000e+00> : vector<8x128xf32>
    %1002 = tpu.matmul %1001, %791, %cst_331 {dimension_numbers = #tpu.dot_dimension_numbers<[1], [0], [0], [1], [0, 0, 1, 1], [], []>} : vector<8x96xf32>, vector<96x128xf32>, vector<8x128xf32> -> vector<8x128xf32>
    %1003 = arith.addf %1002, %794 : vector<8x128xf32>
    %1004 = arith.negf %1003 : vector<8x128xf32>
    %1005 = math.exp %1004 : vector<8x128xf32>
    %cst_332 = arith.constant 1.000000e+00 : f32
    %1006 = vector.broadcast %cst_332 : f32 to vector<8x128xf32>
    %1007 = arith.addf %1006, %1005 : vector<8x128xf32>
    %1008 = arith.divf %1006, %1007 : vector<8x128xf32>
    %1009 = math.tanh %1003 : vector<8x128xf32>
    %1010 = vector.extract_strided_slice %1008 {offsets = [0, 0], sizes = [8, 32], strides = [1, 1]} : vector<8x128xf32> to vector<8x32xf32>
    %1011 = vector.extract_strided_slice %1008 {offsets = [0, 32], sizes = [8, 32], strides = [1, 1]} : vector<8x128xf32> to vector<8x32xf32>
    %1012 = vector.extract_strided_slice %1009 {offsets = [0, 64], sizes = [8, 32], strides = [1, 1]} : vector<8x128xf32> to vector<8x32xf32>
    %1013 = vector.extract_strided_slice %1008 {offsets = [0, 96], sizes = [8, 32], strides = [1, 1]} : vector<8x128xf32> to vector<8x32xf32>
    %1014 = arith.mulf %1011, %989 : vector<8x32xf32>
    %1015 = arith.mulf %1010, %1012 : vector<8x32xf32>
    %1016 = arith.addf %1014, %1015 : vector<8x32xf32>
    %1017 = math.tanh %1016 : vector<8x32xf32>
    %1018 = arith.mulf %1013, %1017 : vector<8x32xf32>
    %cst_333 = arith.constant 5.000000e-01 : f32
    %1019 = vector.broadcast %cst_333 : f32 to vector<8x32xf32>
    %1020 = arith.cmpf ogt, %1000, %1019 : vector<8x32xf32>
    %1021 = arith.select %1020, %1018, %988 : vector<8x32xi1>, vector<8x32xf32>
    %1022 = arith.select %1020, %1016, %989 : vector<8x32xi1>, vector<8x32xf32>
    %1023 = arith.index_cast %994 : i32 to index
    %c0_334 = arith.constant 0 : index
    %c32_335 = arith.constant 32 : index
    %1024 = vector.load %arg10[%1023, %c0_334, %c32_335] : memref<8x8x64xf32, #tpu.memory_space<vmem>>, vector<1x8x32xf32>
    %1025 = vector.shape_cast %1024 : vector<1x8x32xf32> to vector<8x32xf32>
    %1026 = vector.shape_cast %1021 : vector<8x32xf32> to vector<1x8x32xf32>
    tpu.vector_store %arg10[%1023, %c0_334, %c32_335], %1026 {strides = array<i32>} : memref<8x8x64xf32, #tpu.memory_space<vmem>>, vector<1x8x32xf32>,
    %c7_i32_336 = arith.constant 7 : i32
    %c7_i32_337 = arith.constant 7 : i32
    %1027 = arith.subi %c7_i32_337, %c7_i32_336 : i32
    %1028 = arith.index_cast %1027 : i32 to index
    %c0_338 = arith.constant 0 : index
    %c0_339 = arith.constant 0 : index
    %1029 = vector.load %arg11[%1028, %c0_338, %c0_339] : memref<8x8x64xf32, #tpu.memory_space<vmem>>, vector<1x8x64xf32>
    %1030 = vector.shape_cast %1029 : vector<1x8x64xf32> to vector<8x64xf32>
    %1031 = arith.index_cast %1027 : i32 to index
    %c0_340 = arith.constant 0 : index
    %c0_341 = arith.constant 0 : index
    %1032 = vector.load %arg1[%1031, %c0_340, %c0_341] : memref<8x8x32xf32, #tpu.memory_space<vmem>>, vector<1x8x32xf32>
    %1033 = vector.shape_cast %1032 : vector<1x8x32xf32> to vector<8x32xf32>
    %1034 = tpu.concatenate %1030, %1021 in 1 : vector<8x64xf32>, vector<8x32xf32> -> vector<8x96xf32>
    %cst_342 = arith.constant dense<0.000000e+00> : vector<8x128xf32>
    %1035 = tpu.matmul %1034, %791, %cst_342 {dimension_numbers = #tpu.dot_dimension_numbers<[1], [0], [0], [1], [0, 0, 1, 1], [], []>} : vector<8x96xf32>, vector<96x128xf32>, vector<8x128xf32> -> vector<8x128xf32>
    %1036 = arith.addf %1035, %794 : vector<8x128xf32>
    %1037 = arith.negf %1036 : vector<8x128xf32>
    %1038 = math.exp %1037 : vector<8x128xf32>
    %cst_343 = arith.constant 1.000000e+00 : f32
    %1039 = vector.broadcast %cst_343 : f32 to vector<8x128xf32>
    %1040 = arith.addf %1039, %1038 : vector<8x128xf32>
    %1041 = arith.divf %1039, %1040 : vector<8x128xf32>
    %1042 = math.tanh %1036 : vector<8x128xf32>
    %1043 = vector.extract_strided_slice %1041 {offsets = [0, 0], sizes = [8, 32], strides = [1, 1]} : vector<8x128xf32> to vector<8x32xf32>
    %1044 = vector.extract_strided_slice %1041 {offsets = [0, 32], sizes = [8, 32], strides = [1, 1]} : vector<8x128xf32> to vector<8x32xf32>
    %1045 = vector.extract_strided_slice %1042 {offsets = [0, 64], sizes = [8, 32], strides = [1, 1]} : vector<8x128xf32> to vector<8x32xf32>
    %1046 = vector.extract_strided_slice %1041 {offsets = [0, 96], sizes = [8, 32], strides = [1, 1]} : vector<8x128xf32> to vector<8x32xf32>
    %1047 = arith.mulf %1044, %1022 : vector<8x32xf32>
    %1048 = arith.mulf %1043, %1045 : vector<8x32xf32>
    %1049 = arith.addf %1047, %1048 : vector<8x32xf32>
    %1050 = math.tanh %1049 : vector<8x32xf32>
    %1051 = arith.mulf %1046, %1050 : vector<8x32xf32>
    %cst_344 = arith.constant 5.000000e-01 : f32
    %1052 = vector.broadcast %cst_344 : f32 to vector<8x32xf32>
    %1053 = arith.cmpf ogt, %1033, %1052 : vector<8x32xf32>
    %1054 = arith.select %1053, %1051, %1021 : vector<8x32xi1>, vector<8x32xf32>
    %1055 = arith.select %1053, %1049, %1022 : vector<8x32xi1>, vector<8x32xf32>
    %1056 = arith.index_cast %1027 : i32 to index
    %c0_345 = arith.constant 0 : index
    %c32_346 = arith.constant 32 : index
    %1057 = vector.load %arg10[%1056, %c0_345, %c32_346] : memref<8x8x64xf32, #tpu.memory_space<vmem>>, vector<1x8x32xf32>
    %1058 = vector.shape_cast %1057 : vector<1x8x32xf32> to vector<8x32xf32>
    %1059 = vector.shape_cast %1054 : vector<8x32xf32> to vector<1x8x32xf32>
    tpu.vector_store %arg10[%1056, %c0_345, %c32_346], %1059 {strides = array<i32>} : memref<8x8x64xf32, #tpu.memory_space<vmem>>, vector<1x8x32xf32>,
    %c8_i32_347 = arith.constant 8 : i32
    return
  }
}

</mosaic_0001>

<llo_original>
// kernel: tpu_custom_call.1
$region0: #{tpu_custom_call.1}
  #allocation0 [shape = 'u32[]', space=smem, size = 0x4, offset = 0x4, fixed_abs, tag = 'smem constant byte address 0x4 - core index']
  #allocation1 [shape = 'u32[144,128]{1,0:T(1,128)}', space=vmem, size = 0x12000, scoped, tag = 'internal scratch']
  #allocation2 [shape = 'f32[8,8,64]{2,1,0:T(8,128)}', space=vmem, size = 0x8000, scoped, tag = 'scratch operand']
  #allocation3 [shape = 'f32[8,8,64]{2,1,0:T(8,128)}', space=vmem, size = 0x8000, scoped, tag = 'scratch operand']
  %s0 = inlined_call_operand.hbm [shape: f32[8,8,32], index: 0, kind: input, shape index: {}]
  %s1 = inlined_call_operand.hbm [shape: f32[8,8,32], index: 1, kind: input, shape index: {}]
  %s2 = inlined_call_operand.hbm [shape: f32[64,128], index: 2, kind: input, shape index: {}]
  %s3 = inlined_call_operand.vmem [shape: f32[1,128], index: 3, kind: input, shape index: {}]
  %s4 = inlined_call_operand.hbm [shape: f32[64,128], index: 4, kind: input, shape index: {}]
  %s5 = inlined_call_operand.vmem [shape: f32[1,128], index: 5, kind: input, shape index: {}]
  %s6 = inlined_call_operand.hbm [shape: f32[96,128], index: 6, kind: input, shape index: {}]
  %s7 = inlined_call_operand.vmem [shape: f32[1,128], index: 7, kind: input, shape index: {}]
  %s8 = inlined_call_operand.hbm [shape: f32[96,128], index: 8, kind: input, shape index: {}]
  %s9 = inlined_call_operand.vmem [shape: f32[1,128], index: 9, kind: input, shape index: {}]
  %s10 = inlined_call_operand.hbm [shape: f32[8,8,64], index: 10, kind: output, shape index: {}]
  %s11 = sld [smem:[#allocation0]]
  $region74: #{tpu_custom_call.1} parent=0
    _
  %s13 = ssub.s32 1, %s11
  %s14 = scalar_select 0, %s13, %s11
  $region1: #{tpu_custom_call.1} parent=0
    #allocation4 [shape = 'u8[32768]{0}', space=vmem, size = 0x8000, scoped, tag = 'input window, operand 0, single buffered']
    #allocation5 [shape = 's32[1]{0}', space=sflag, size = 0x4, scoped, tag = 'scoped memory for tpu_custom_call.1']
    #allocation6 [shape = 's32[1]{0}', space=sflag, size = 0x4, scoped, tag = 'scoped memory for tpu_custom_call.1']
    #allocation7 [shape = 'u8[32768]{0}', space=vmem, size = 0x8000, scoped, tag = 'input window, operand 1, single buffered']
    #allocation8 [shape = 's32[1]{0}', space=sflag, size = 0x4, scoped, tag = 'scoped memory for tpu_custom_call.1']
    #allocation9 [shape = 'u8[32768]{0}', space=vmem, size = 0x8000, scoped, tag = 'input window, operand 2, single buffered']
    #allocation10 [shape = 'u8[32768]{0}', space=vmem, size = 0x8000, scoped, tag = 'input window, operand 4, single buffered']
    #allocation11 [shape = 's32[1]{0}', space=sflag, size = 0x4, scoped, tag = 'scoped memory for tpu_custom_call.1']
    #allocation12 [shape = 'u8[49152]{0}', space=vmem, size = 0xc000, scoped, tag = 'input window, operand 6, single buffered']
    #allocation13 [shape = 'u8[49152]{0}', space=vmem, size = 0xc000, scoped, tag = 'input window, operand 8, single buffered']
    #allocation14 [shape = 's32[1]{0}', space=sflag, size = 0x4, scoped, tag = 'scoped memory for tpu_custom_call.1']
    #allocation15 [shape = 'u8[32768]{0}', space=vmem, size = 0x8000, scoped, tag = 'output window, operand 0, single buffered']
    %15 = vsyncpa [#allocation5], 0
    %16 = vsyncpa [#allocation8], 0
    %17 = vsyncpa [#allocation11], 0
    %18 = vsyncpa [#allocation14], 0
    %19 = vsyncpa [#allocation6], 0
    // Predicated region
    $region2: #{tpu_custom_call.1} parent=1 // pred_check
      _
    $region3: #{tpu_custom_call.1} parent=1 // pred_check_branch
      %21 = sbr.rel (0) target = $region5
    $region4: #{tpu_custom_call.1} parent=1 // pred_region
      %s23 = ssub.s32 1024, 1024
      %24 = vsyncadd [#allocation5], %s23
      %s25 = sshll.u32 [#allocation4], 4
      %s26 = int_to_ptr.vmem [resolvable:$true] %s25
      %31 = dma.hbm_to_vmem [thread:$0]  %s0, 1024, %s26, [#allocation5], 128, 128, 8
    $region5: #{tpu_custom_call.1} parent=1 // pred_fallthru
      _
    // Predicated region
    $region6: #{tpu_custom_call.1} parent=1 // pred_check
      _
    $region7: #{tpu_custom_call.1} parent=1 // pred_check_branch
      %33 = sbr.rel (0) target = $region9
    $region8: #{tpu_custom_call.1} parent=1 // pred_region
      %s35 = ssub.s32 1024, 1024
      %36 = vsyncadd [#allocation8], %s35
      %s37 = sshll.u32 [#allocation7], 4
      %s38 = int_to_ptr.vmem [resolvable:$true] %s37
      %43 = dma.hbm_to_vmem [thread:$0]  %s1, 1024, %s38, [#allocation8], 128, 128, 8
    $region9: #{tpu_custom_call.1} parent=1 // pred_fallthru
      _
    // Predicated region
    $region10: #{tpu_custom_call.1} parent=1 // pred_check
      _
    $region11: #{tpu_custom_call.1} parent=1 // pred_check_branch
      %45 = sbr.rel (0) target = $region13
    $region12: #{tpu_custom_call.1} parent=1 // pred_region
      %s47 = ssub.s32 1024, 1024
      %48 = vsyncadd [#allocation8], %s47
      %s49 = sshll.u32 [#allocation9], 4
      %s50 = int_to_ptr.vmem [resolvable:$true] %s49
      %55 = dma.hbm_to_vmem [thread:$0]  %s2, 1024, %s50, [#allocation8], 128, 128, 8
    $region13: #{tpu_custom_call.1} parent=1 // pred_fallthru
      _
    // Predicated region
    $region14: #{tpu_custom_call.1} parent=1 // pred_check
      _
    $region15: #{tpu_custom_call.1} parent=1 // pred_check_branch
      %57 = sbr.rel (0) target = $region17
    $region16: #{tpu_custom_call.1} parent=1 // pred_region
      _
    $region17: #{tpu_custom_call.1} parent=1 // pred_fallthru
      _
    // Predicated region
    $region18: #{tpu_custom_call.1} parent=1 // pred_check
      _
    $region19: #{tpu_custom_call.1} parent=1 // pred_check_branch
      %59 = sbr.rel (0) target = $region21
    $region20: #{tpu_custom_call.1} parent=1 // pred_region
      %s61 = ssub.s32 1024, 1024
      %62 = vsyncadd [#allocation11], %s61
      %s63 = sshll.u32 [#allocation10], 4
      %s64 = int_to_ptr.vmem [resolvable:$true] %s63
      %69 = dma.hbm_to_vmem [thread:$0]  %s4, 1024, %s64, [#allocation11], 128, 128, 8
    $region21: #{tpu_custom_call.1} parent=1 // pred_fallthru
      _
    // Predicated region
    $region22: #{tpu_custom_call.1} parent=1 // pred_check
      _
    $region23: #{tpu_custom_call.1} parent=1 // pred_check_branch
      %71 = sbr.rel (0) target = $region25
    $region24: #{tpu_custom_call.1} parent=1 // pred_region
      _
    $region25: #{tpu_custom_call.1} parent=1 // pred_fallthru
      _
    // Predicated region
    $region26: #{tpu_custom_call.1} parent=1 // pred_check
      _
    $region27: #{tpu_custom_call.1} parent=1 // pred_check_branch
      %73 = sbr.rel (0) target = $region29
    $region28: #{tpu_custom_call.1} parent=1 // pred_region
      %s75 = ssub.s32 1536, 1536
      %76 = vsyncadd [#allocation11], %s75
      %s77 = sshll.u32 [#allocation12], 4
      %s78 = int_to_ptr.vmem [resolvable:$true] %s77
      %83 = dma.hbm_to_vmem [thread:$0]  %s6, 1536, %s78, [#allocation11], 128, 128, 8
    $region29: #{tpu_custom_call.1} parent=1 // pred_fallthru
      _
    // Predicated region
    $region30: #{tpu_custom_call.1} parent=1 // pred_check
      _
    $region31: #{tpu_custom_call.1} parent=1 // pred_check_branch
      %85 = sbr.rel (0) target = $region33
    $region32: #{tpu_custom_call.1} parent=1 // pred_region
      _
    $region33: #{tpu_custom_call.1} parent=1 // pred_fallthru
      _
    // Predicated region
    $region34: #{tpu_custom_call.1} parent=1 // pred_check
      _
    $region35: #{tpu_custom_call.1} parent=1 // pred_check_branch
      %87 = sbr.rel (0) target = $region37
    $region36: #{tpu_custom_call.1} parent=1 // pred_region
      %s89 = ssub.s32 1536, 1536
      %90 = vsyncadd [#allocation14], %s89
      %s91 = sshll.u32 [#allocation13], 4
      %s92 = int_to_ptr.vmem [resolvable:$true] %s91
      %97 = dma.hbm_to_vmem [thread:$0]  %s8, 1536, %s92, [#allocation14], 128, 128, 8
    $region37: #{tpu_custom_call.1} parent=1 // pred_fallthru
      _
    // Predicated region
    $region38: #{tpu_custom_call.1} parent=1 // pred_check
      _
    $region39: #{tpu_custom_call.1} parent=1 // pred_check_branch
      %99 = sbr.rel (0) target = $region41
    $region40: #{tpu_custom_call.1} parent=1 // pred_region
      _
    $region41: #{tpu_custom_call.1} parent=1 // pred_fallthru
      _
    // Predicated region
    $region42: #{tpu_custom_call.1} parent=1 // pred_check
      _
    $region43: #{tpu_custom_call.1} parent=1 // pred_check_branch
      %101 = sbr.rel (0) target = $region45
    $region44: #{tpu_custom_call.1} parent=1 // pred_region
      %102 = dma.done [#allocation5], 1024
    $region45: #{tpu_custom_call.1} parent=1 // pred_fallthru
      _
    // Predicated region
    $region46: #{tpu_custom_call.1} parent=1 // pred_check
      _
    $region47: #{tpu_custom_call.1} parent=1 // pred_check_branch
      %104 = sbr.rel (0) target = $region49
    $region48: #{tpu_custom_call.1} parent=1 // pred_region
      %105 = dma.done [#allocation8], 1024
    $region49: #{tpu_custom_call.1} parent=1 // pred_fallthru
      _
    // Predicated region
    $region50: #{tpu_custom_call.1} parent=1 // pred_check
      _
    $region51: #{tpu_custom_call.1} parent=1 // pred_check_branch
      %107 = sbr.rel (0) target = $region53
    $region52: #{tpu_custom_call.1} parent=1 // pred_region
      %108 = dma.done [#allocation8], 1024
    $region53: #{tpu_custom_call.1} parent=1 // pred_fallthru
      _
    // Predicated region
    $region54: #{tpu_custom_call.1} parent=1 // pred_check
      _
    $region55: #{tpu_custom_call.1} parent=1 // pred_check_branch
      %110 = sbr.rel (0) target = $region57
    $region56: #{tpu_custom_call.1} parent=1 // pred_region
      %111 = dma.done [#allocation11], 1024
    $region57: #{tpu_custom_call.1} parent=1 // pred_fallthru
      _
    // Predicated region
    $region58: #{tpu_custom_call.1} parent=1 // pred_check
      _
    $region59: #{tpu_custom_call.1} parent=1 // pred_check_branch
      %113 = sbr.rel (0) target = $region61
    $region60: #{tpu_custom_call.1} parent=1 // pred_region
      %114 = dma.done [#allocation11], 1536
    $region61: #{tpu_custom_call.1} parent=1 // pred_fallthru
      _
    // Predicated region
    $region62: #{tpu_custom_call.1} parent=1 // pred_check
      _
    $region63: #{tpu_custom_call.1} parent=1 // pred_check_branch
      %116 = sbr.rel (0) target = $region65
    $region64: #{tpu_custom_call.1} parent=1 // pred_region
      %117 = dma.done [#allocation14], 1536
    $region65: #{tpu_custom_call.1} parent=1 // pred_fallthru
      _
    %v118 = vld [vmem:[#allocation9] sm:$0xff]
    %v119 = vld [vmem:[#allocation9 + $0x8] sm:$0xff]
    %v120 = vld [vmem:[#allocation9 + $0x10] sm:$0xff]
    %v121 = vld [vmem:[#allocation9 + $0x18] sm:$0xff]
    %v122 = vld [vmem:[#allocation9 + $0x20] sm:$0xff]
    %v123 = vld [vmem:[#allocation9 + $0x28] sm:$0xff]
    %v124 = vld [vmem:[#allocation9 + $0x30] sm:$0xff]
    %v125 = vld [vmem:[#allocation9 + $0x38] sm:$0xff]
    %v126 = vld [vmem:[%s3] sm:$0x1]
    %v128 = vlaneseq
    %v129 = vshrl.u32 %v128, 7
    %v130 = vsub.s32 0, %v129
    %v131 = vrot.slane %v126, %v130
    %v133 = vld [vmem:[#allocation4] sm:$0xff]
    %v134 = vld [vmem:[#allocation7] sm:$0xff]
    %vm135 = vcmask 261120
    %v136 = vsel %vm135, %v133, 0.0
    %vm137 = vcmask 523264
    %v139 = vsel %vm137, %v136, 0
    %141 = vmatprep.subr.mxu0 0.0
    %142 = vmatpush1.msra.mxu0 0.0
    %143 = vmatprep.subr.mxu0 0.0
    %144 = vmatpush1.msra.mxu0 0.0
    %145 = vmatprep.subr.mxu0 0.0
    %146 = vmatpush1.msra.mxu0 0.0
    %147 = vmatprep.subr.mxu0 0.0
    %148 = vmatpush1.msra.mxu0 0.0
    %149 = vmatprep.subr.mxu0 0.0
    %150 = vmatpush1.msra.mxu0 0.0
    %151 = vmatprep.subr.mxu0 0.0
    %152 = vmatpush1.msra.mxu0 0.0
    %153 = vmatprep.subr.mxu0 0.0
    %154 = vmatpush1.msra.mxu0 0.0
    %155 = vmatprep.subr.mxu0 0.0
    %156 = vmatpush1.msra.mxu0 0.0
    %157 = vmatprep.subr.mxu0 0.0
    %158 = vmatpush1.msra.mxu0 %v125
    %159 = vmatprep.subr.mxu0 0.0
    %160 = vmatpush1.msra.mxu0 %v124
    %161 = vmatprep.subr.mxu0 0.0
    %162 = vmatpush1.msra.mxu0 %v123
    %163 = vmatprep.subr.mxu0 0.0
    %164 = vmatpush1.msra.mxu0 %v122
    %165 = vmatprep.subr.mxu0 0.0
    %166 = vmatpush1.msra.mxu0 %v121
    %167 = vmatprep.subr.mxu0 0.0
    %168 = vmatpush1.msra.mxu0 %v120
    %169 = vmatprep.subr.mxu0 0.0
    %170 = vmatpush1.msra.mxu0 %v119
    %171 = vmatprep.subr.mxu0 0.0
    %172 = vmatpush1.msra.mxu0 %v118
    %173 = vmatprep.subr.mxu0 0.0
    %174 = vmatpush2.msra.mxu0 0.0
    %175 = vmatprep.subr.mxu0 0.0
    %176 = vmatpush2.msra.mxu0 0.0
    %177 = vmatprep.subr.mxu0 0.0
    %178 = vmatpush2.msra.mxu0 0.0
    %179 = vmatprep.subr.mxu0 0.0
    %180 = vmatpush2.msra.mxu0 0.0
    %181 = vmatprep.subr.mxu0 0.0
    %182 = vmatpush2.msra.mxu0 0.0
    %183 = vmatprep.subr.mxu0 0.0
    %184 = vmatpush2.msra.mxu0 0.0
    %185 = vmatprep.subr.mxu0 0.0
    %186 = vmatpush2.msra.mxu0 0.0
    %187 = vmatprep.subr.mxu0 0.0
    %188 = vmatpush2.msra.mxu0 0.0
    %189 = vmatprep.subr.mxu0 0.0
    %190 = vmatpush2.msra.mxu0 0.0
    %191 = vmatprep.subr.mxu0 0.0
    %192 = vmatpush2.msra.mxu0 0.0
    %193 = vmatprep.subr.mxu0 0.0
    %194 = vmatpush2.msra.mxu0 0.0
    %195 = vmatprep.subr.mxu0 0.0
    %196 = vmatpush2.msra.mxu0 0.0
    %197 = vmatprep.subr.mxu0 0.0
    %198 = vmatpush2.msra.mxu0 0.0
    %199 = vmatprep.subr.mxu0 0.0
    %200 = vmatpush2.msra.mxu0 0.0
    %201 = vmatprep.subr.mxu0 0.0
    %202 = vmatpush2.msra.mxu0 0.0
    %203 = vmatprep.subr.mxu0 0.0
    %204 = vmatpush2.msra.mxu0 0.0
    %205 = vmatprep.mubr.f32.mxu0 0.0
    %206 = vmatmul.mubr.f32.gmra.mxu0 %v139
    %v207 = vpop.f32.mrf.mxu0
    %v208 = vadd.f32 %v131, %v207
    %v209 = vpop.f32.mrf.mxu0
    %210 = vdwg.mxu0
    %v211 = vxor.u32 %v208, 2147483648
    %v212 = vmul.f32 %v211, 1.442695
    %v213 = vpow.pop %v212
    %v214 = vadd.f32 %v213, 1.0
    %v215 = vrcp.pop %v214
    %v216 = vmul.f32 1.0, %v215
    %v217 = vtanh.pop %v208
    %v218 = vmul.f32 %v216, 0.0
    %220 = vrot.lane.b32.xlu0 %v217, 64
    %v221 = vpop.permute.xlu0 %220
    %v223 = vmul.f32 %v216, %v221
    %225 = vrot.lane.b32.xlu0 %v223, 32
    %v226 = vpop.permute.xlu0 %225
    %v228 = vadd.f32 %v218, %v226
    %v229 = vtanh.pop %v228
    %231 = vrot.lane.b32.xlu0 %v229, 64
    %v232 = vpop.permute.xlu0 %231
    %v234 = vmul.f32 %v216, %v232
    %vm235 = vcmp.gt.f32.partialorder %v134, 0.5
    %237 = vrot.lane.b32.xlu0 %v234, 32
    %v238 = vpop.permute.xlu0 %237
    %v240 = vsel %vm235, %v238, 0.0
    %242 = vrot.lane.b32.xlu0 %v228, 96
    %v243 = vpop.permute.xlu0 %242
    %v245 = vsel %vm235, %v243, 0.0
    %246 = vst.msk [vmem:[#allocation2] sm:$0xff] %vm135, %v240
    %s247 = scalar_lea.vmem [#allocation4], 8
    %v248 = vld [vmem:[%s247] sm:$0xff]
    %s249 = scalar_lea.vmem [#allocation7], 8
    %v250 = vld [vmem:[%s249] sm:$0xff]
    %252 = vrot.lane.b32.xlu0 %v240, 32
    %v253 = vpop.permute.xlu0 %252
    %v255 = vsel %vm135, %v248, %v253
    %v257 = vsel %vm137, %v255, 0
    %259 = vmatprep.subr.mxu0 0.0
    %260 = vmatpush1.msra.mxu0 0.0
    %261 = vmatprep.subr.mxu0 0.0
    %262 = vmatpush1.msra.mxu0 0.0
    %263 = vmatprep.subr.mxu0 0.0
    %264 = vmatpush1.msra.mxu0 0.0
    %265 = vmatprep.subr.mxu0 0.0
    %266 = vmatpush1.msra.mxu0 0.0
    %267 = vmatprep.subr.mxu0 0.0
    %268 = vmatpush1.msra.mxu0 0.0
    %269 = vmatprep.subr.mxu0 0.0
    %270 = vmatpush1.msra.mxu0 0.0
    %271 = vmatprep.subr.mxu0 0.0
    %272 = vmatpush1.msra.mxu0 0.0
    %273 = vmatprep.subr.mxu0 0.0
    %274 = vmatpush1.msra.mxu0 0.0
    %275 = vmatprep.subr.mxu0 0.0
    %276 = vmatpush1.msra.mxu0 %v125
    %277 = vmatprep.subr.mxu0 0.0
    %278 = vmatpush1.msra.mxu0 %v124
    %279 = vmatprep.subr.mxu0 0.0
    %280 = vmatpush1.msra.mxu0 %v123
    %281 = vmatprep.subr.mxu0 0.0
    %282 = vmatpush1.msra.mxu0 %v122
    %283 = vmatprep.subr.mxu0 0.0
    %284 = vmatpush1.msra.mxu0 %v121
    %285 = vmatprep.subr.mxu0 0.0
    %286 = vmatpush1.msra.mxu0 %v120
    %287 = vmatprep.subr.mxu0 0.0
    %288 = vmatpush1.msra.mxu0 %v119
    %289 = vmatprep.subr.mxu0 0.0
    %290 = vmatpush1.msra.mxu0 %v118
    %291 = vmatprep.subr.mxu0 0.0
    %292 = vmatpush2.msra.mxu0 0.0
    %293 = vmatprep.subr.mxu0 0.0
    %294 = vmatpush2.msra.mxu0 0.0
    %295 = vmatprep.subr.mxu0 0.0
    %296 = vmatpush2.msra.mxu0 0.0
    %297 = vmatprep.subr.mxu0 0.0
    %298 = vmatpush2.msra.mxu0 0.0
    %299 = vmatprep.subr.mxu0 0.0
    %300 = vmatpush2.msra.mxu0 0.0
    %301 = vmatprep.subr.mxu0 0.0
    %302 = vmatpush2.msra.mxu0 0.0
    %303 = vmatprep.subr.mxu0 0.0
    %304 = vmatpush2.msra.mxu0 0.0
    %305 = vmatprep.subr.mxu0 0.0
    %306 = vmatpush2.msra.mxu0 0.0
    %307 = vmatprep.subr.mxu0 0.0
    %308 = vmatpush2.msra.mxu0 0.0
    %309 = vmatprep.subr.mxu0 0.0
    %310 = vmatpush2.msra.mxu0 0.0
    %311 = vmatprep.subr.mxu0 0.0
    %312 = vmatpush2.msra.mxu0 0.0
    %313 = vmatprep.subr.mxu0 0.0
    %314 = vmatpush2.msra.mxu0 0.0
    %315 = vmatprep.subr.mxu0 0.0
    %316 = vmatpush2.msra.mxu0 0.0
    %317 = vmatprep.subr.mxu0 0.0
    %318 = vmatpush2.msra.mxu0 0.0
    %319 = vmatprep.subr.mxu0 0.0
    %320 = vmatpush2.msra.mxu0 0.0
    %321 = vmatprep.subr.mxu0 0.0
    %322 = vmatpush2.msra.mxu0 0.0
    %323 = vmatprep.mubr.f32.mxu0 0.0
    %324 = vmatmul.mubr.f32.gmra.mxu0 %v257
    %v325 = vpop.f32.mrf.mxu0
    %v326 = vadd.f32 %v131, %v325
    %v327 = vpop.f32.mrf.mxu0
    %328 = vdwg.mxu0
    %v329 = vxor.u32 %v326, 2147483648
    %v330 = vmul.f32 %v329, 1.442695
    %v331 = vpow.pop %v330
    %v332 = vadd.f32 %v331, 1.0
    %v333 = vrcp.pop %v332
    %v334 = vmul.f32 1.0, %v333
    %v335 = vtanh.pop %v326
    %337 = vrot.lane.b32.xlu0 %v245, 32
    %v338 = vpop.permute.xlu0 %337
    %v340 = vmul.f32 %v334, %v338
    %342 = vrot.lane.b32.xlu0 %v335, 64
    %v343 = vpop.permute.xlu0 %342
    %v345 = vmul.f32 %v334, %v343
    %347 = vrot.lane.b32.xlu0 %v345, 32
    %v348 = vpop.permute.xlu0 %347
    %v350 = vadd.f32 %v340, %v348
    %v351 = vtanh.pop %v350
    %353 = vrot.lane.b32.xlu0 %v351, 64
    %v354 = vpop.permute.xlu0 %353
    %v356 = vmul.f32 %v334, %v354
    %vm357 = vcmp.gt.f32.partialorder %v250, 0.5
    %359 = vrot.lane.b32.xlu0 %v356, 32
    %v360 = vpop.permute.xlu0 %359
    %v362 = vsel %vm357, %v360, %v240
    %364 = vrot.lane.b32.xlu0 %v350, 96
    %v365 = vpop.permute.xlu0 %364
    %v367 = vsel %vm357, %v365, %v245
    %s368 = scalar_lea.vmem [#allocation2], 8
    %369 = vst.msk [vmem:[%s368] sm:$0xff] %vm135, %v362
    %s370 = scalar_lea.vmem [#allocation4], 16
    %v371 = vld [vmem:[%s370] sm:$0xff]
    %s372 = scalar_lea.vmem [#allocation7], 16
    %v373 = vld [vmem:[%s372] sm:$0xff]
    %375 = vrot.lane.b32.xlu0 %v362, 32
    %v376 = vpop.permute.xlu0 %375
    %v378 = vsel %vm135, %v371, %v376
    %v380 = vsel %vm137, %v378, 0
    %382 = vmatprep.subr.mxu0 0.0
    %383 = vmatpush1.msra.mxu0 0.0
    %384 = vmatprep.subr.mxu0 0.0
    %385 = vmatpush1.msra.mxu0 0.0
    %386 = vmatprep.subr.mxu0 0.0
    %387 = vmatpush1.msra.mxu0 0.0
    %388 = vmatprep.subr.mxu0 0.0
    %389 = vmatpush1.msra.mxu0 0.0
    %390 = vmatprep.subr.mxu0 0.0
    %391 = vmatpush1.msra.mxu0 0.0
    %392 = vmatprep.subr.mxu0 0.0
    %393 = vmatpush1.msra.mxu0 0.0
    %394 = vmatprep.subr.mxu0 0.0
    %395 = vmatpush1.msra.mxu0 0.0
    %396 = vmatprep.subr.mxu0 0.0
    %397 = vmatpush1.msra.mxu0 0.0
    %398 = vmatprep.subr.mxu0 0.0
    %399 = vmatpush1.msra.mxu0 %v125
    %400 = vmatprep.subr.mxu0 0.0
    %401 = vmatpush1.msra.mxu0 %v124
    %402 = vmatprep.subr.mxu0 0.0
    %403 = vmatpush1.msra.mxu0 %v123
    %404 = vmatprep.subr.mxu0 0.0
    %405 = vmatpush1.msra.mxu0 %v122
    %406 = vmatprep.subr.mxu0 0.0
    %407 = vmatpush1.msra.mxu0 %v121
    %408 = vmatprep.subr.mxu0 0.0
    %409 = vmatpush1.msra.mxu0 %v120
    %410 = vmatprep.subr.mxu0 0.0
    %411 = vmatpush1.msra.mxu0 %v119
    %412 = vmatprep.subr.mxu0 0.0
    %413 = vmatpush1.msra.mxu0 %v118
    %414 = vmatprep.subr.mxu0 0.0
    %415 = vmatpush2.msra.mxu0 0.0
    %416 = vmatprep.subr.mxu0 0.0
    %417 = vmatpush2.msra.mxu0 0.0
    %418 = vmatprep.subr.mxu0 0.0
    %419 = vmatpush2.msra.mxu0 0.0
    %420 = vmatprep.subr.mxu0 0.0
    %421 = vmatpush2.msra.mxu0 0.0
    %422 = vmatprep.subr.mxu0 0.0
    %423 = vmatpush2.msra.mxu0 0.0
    %424 = vmatprep.subr.mxu0 0.0
    %425 = vmatpush2.msra.mxu0 0.0
    %426 = vmatprep.subr.mxu0 0.0
    %427 = vmatpush2.msra.mxu0 0.0
    %428 = vmatprep.subr.mxu0 0.0
    %429 = vmatpush2.msra.mxu0 0.0
    %430 = vmatprep.subr.mxu0 0.0
    %431 = vmatpush2.msra.mxu0 0.0
    %432 = vmatprep.subr.mxu0 0.0
    %433 = vmatpush2.msra.mxu0 0.0
    %434 = vmatprep.subr.mxu0 0.0
    %435 = vmatpush2.msra.mxu0 0.0
    %436 = vmatprep.subr.mxu0 0.0
    %437 = vmatpush2.msra.mxu0 0.0
    %438 = vmatprep.subr.mxu0 0.0
    %439 = vmatpush2.msra.mxu0 0.0
    %440 = vmatprep.subr.mxu0 0.0
    %441 = vmatpush2.msra.mxu0 0.0
    %442 = vmatprep.subr.mxu0 0.0
    %443 = vmatpush2.msra.mxu0 0.0
    %444 = vmatprep.subr.mxu0 0.0
    %445 = vmatpush2.msra.mxu0 0.0
    %446 = vmatprep.mubr.f32.mxu0 0.0
    %447 = vmatmul.mubr.f32.gmra.mxu0 %v380
    %v448 = vpop.f32.mrf.mxu0
    %v449 = vadd.f32 %v131, %v448
    %v450 = vpop.f32.mrf.mxu0
    %451 = vdwg.mxu0
    %v452 = vxor.u32 %v449, 2147483648
    %v453 = vmul.f32 %v452, 1.442695
    %v454 = vpow.pop %v453
    %v455 = vadd.f32 %v454, 1.0
    %v456 = vrcp.pop %v455
    %v457 = vmul.f32 1.0, %v456
    %v458 = vtanh.pop %v449
    %460 = vrot.lane.b32.xlu0 %v367, 32
    %v461 = vpop.permute.xlu0 %460
    %v463 = vmul.f32 %v457, %v461
    %465 = vrot.lane.b32.xlu0 %v458, 64
    %v466 = vpop.permute.xlu0 %465
    %v468 = vmul.f32 %v457, %v466
    %470 = vrot.lane.b32.xlu0 %v468, 32
    %v471 = vpop.permute.xlu0 %470
    %v473 = vadd.f32 %v463, %v471
    %v474 = vtanh.pop %v473
    %476 = vrot.lane.b32.xlu0 %v474, 64
    %v477 = vpop.permute.xlu0 %476
    %v479 = vmul.f32 %v457, %v477
    %vm480 = vcmp.gt.f32.partialorder %v373, 0.5
    %482 = vrot.lane.b32.xlu0 %v479, 32
    %v483 = vpop.permute.xlu0 %482
    %v485 = vsel %vm480, %v483, %v362
    %487 = vrot.lane.b32.xlu0 %v473, 96
    %v488 = vpop.permute.xlu0 %487
    %v490 = vsel %vm480, %v488, %v367
    %s491 = scalar_lea.vmem [#allocation2], 16
    %492 = vst.msk [vmem:[%s491] sm:$0xff] %vm135, %v485
    %s493 = scalar_lea.vmem [#allocation4], 24
    %v494 = vld [vmem:[%s493] sm:$0xff]
    %s495 = scalar_lea.vmem [#allocation7], 24
    %v496 = vld [vmem:[%s495] sm:$0xff]
    %498 = vrot.lane.b32.xlu0 %v485, 32
    %v499 = vpop.permute.xlu0 %498
    %v501 = vsel %vm135, %v494, %v499
    %v503 = vsel %vm137, %v501, 0
    %505 = vmatprep.subr.mxu0 0.0
    %506 = vmatpush1.msra.mxu0 0.0
    %507 = vmatprep.subr.mxu0 0.0
    %508 = vmatpush1.msra.mxu0 0.0
    %509 = vmatprep.subr.mxu0 0.0
    %510 = vmatpush1.msra.mxu0 0.0
    %511 = vmatprep.subr.mxu0 0.0
    %512 = vmatpush1.msra.mxu0 0.0
    %513 = vmatprep.subr.mxu0 0.0
    %514 = vmatpush1.msra.mxu0 0.0
    %515 = vmatprep.subr.mxu0 0.0
    %516 = vmatpush1.msra.mxu0 0.0
    %517 = vmatprep.subr.mxu0 0.0
    %518 = vmatpush1.msra.mxu0 0.0
    %519 = vmatprep.subr.mxu0 0.0
    %520 = vmatpush1.msra.mxu0 0.0
    %521 = vmatprep.subr.mxu0 0.0
    %522 = vmatpush1.msra.mxu0 %v125
    %523 = vmatprep.subr.mxu0 0.0
    %524 = vmatpush1.msra.mxu0 %v124
    %525 = vmatprep.subr.mxu0 0.0
    %526 = vmatpush1.msra.mxu0 %v123
    %527 = vmatprep.subr.mxu0 0.0
    %528 = vmatpush1.msra.mxu0 %v122
    %529 = vmatprep.subr.mxu0 0.0
    %530 = vmatpush1.msra.mxu0 %v121
    %531 = vmatprep.subr.mxu0 0.0
    %532 = vmatpush1.msra.mxu0 %v120
    %533 = vmatprep.subr.mxu0 0.0
    %534 = vmatpush1.msra.mxu0 %v119
    %535 = vmatprep.subr.mxu0 0.0
    %536 = vmatpush1.msra.mxu0 %v118
    %537 = vmatprep.subr.mxu0 0.0
    %538 = vmatpush2.msra.mxu0 0.0
    %539 = vmatprep.subr.mxu0 0.0
    %540 = vmatpush2.msra.mxu0 0.0
    %541 = vmatprep.subr.mxu0 0.0
    %542 = vmatpush2.msra.mxu0 0.0
    %543 = vmatprep.subr.mxu0 0.0
    %544 = vmatpush2.msra.mxu0 0.0
    %545 = vmatprep.subr.mxu0 0.0
    %546 = vmatpush2.msra.mxu0 0.0
    %547 = vmatprep.subr.mxu0 0.0
    %548 = vmatpush2.msra.mxu0 0.0
    %549 = vmatprep.subr.mxu0 0.0
    %550 = vmatpush2.msra.mxu0 0.0
    %551 = vmatprep.subr.mxu0 0.0
    %552 = vmatpush2.msra.mxu0 0.0
    %553 = vmatprep.subr.mxu0 0.0
    %554 = vmatpush2.msra.mxu0 0.0
    %555 = vmatprep.subr.mxu0 0.0
    %556 = vmatpush2.msra.mxu0 0.0
    %557 = vmatprep.subr.mxu0 0.0
    %558 = vmatpush2.msra.mxu0 0.0
    %559 = vmatprep.subr.mxu0 0.0
    %560 = vmatpush2.msra.mxu0 0.0
    %561 = vmatprep.subr.mxu0 0.0
    %562 = vmatpush2.msra.mxu0 0.0
    %563 = vmatprep.subr.mxu0 0.0
    %564 = vmatpush2.msra.mxu0 0.0
    %565 = vmatprep.subr.mxu0 0.0
    %566 = vmatpush2.msra.mxu0 0.0
    %567 = vmatprep.subr.mxu0 0.0
    %568 = vmatpush2.msra.mxu0 0.0
    %569 = vmatprep.mubr.f32.mxu0 0.0
    %570 = vmatmul.mubr.f32.gmra.mxu0 %v503
    %v571 = vpop.f32.mrf.mxu0
    %v572 = vadd.f32 %v131, %v571
    %v573 = vpop.f32.mrf.mxu0
    %574 = vdwg.mxu0
    %v575 = vxor.u32 %v572, 2147483648
    %v576 = vmul.f32 %v575, 1.442695
    %v577 = vpow.pop %v576
    %v578 = vadd.f32 %v577, 1.0
    %v579 = vrcp.pop %v578
    %v580 = vmul.f32 1.0, %v579
    %v581 = vtanh.pop %v572
    %583 = vrot.lane.b32.xlu0 %v490, 32
    %v584 = vpop.permute.xlu0 %583
    %v586 = vmul.f32 %v580, %v584
    %588 = vrot.lane.b32.xlu0 %v581, 64
    %v589 = vpop.permute.xlu0 %588
    %v591 = vmul.f32 %v580, %v589
    %593 = vrot.lane.b32.xlu0 %v591, 32
    %v594 = vpop.permute.xlu0 %593
    %v596 = vadd.f32 %v586, %v594
    %v597 = vtanh.pop %v596
    %599 = vrot.lane.b32.xlu0 %v597, 64
    %v600 = vpop.permute.xlu0 %599
    %v602 = vmul.f32 %v580, %v600
    %vm603 = vcmp.gt.f32.partialorder %v496, 0.5
    %605 = vrot.lane.b32.xlu0 %v602, 32
    %v606 = vpop.permute.xlu0 %605
    %v608 = vsel %vm603, %v606, %v485
    %610 = vrot.lane.b32.xlu0 %v596, 96
    %v611 = vpop.permute.xlu0 %610
    %v613 = vsel %vm603, %v611, %v490
    %s614 = scalar_lea.vmem [#allocation2], 24
    %615 = vst.msk [vmem:[%s614] sm:$0xff] %vm135, %v608
    %s616 = scalar_lea.vmem [#allocation4], 32
    %v617 = vld [vmem:[%s616] sm:$0xff]
    %s618 = scalar_lea.vmem [#allocation7], 32
    %v619 = vld [vmem:[%s618] sm:$0xff]
    %621 = vrot.lane.b32.xlu0 %v608, 32
    %v622 = vpop.permute.xlu0 %621
    %v624 = vsel %vm135, %v617, %v622
    %v626 = vsel %vm137, %v624, 0
    %628 = vmatprep.subr.mxu0 0.0
    %629 = vmatpush1.msra.mxu0 0.0
    %630 = vmatprep.subr.mxu0 0.0
    %631 = vmatpush1.msra.mxu0 0.0
    %632 = vmatprep.subr.mxu0 0.0
    %633 = vmatpush1.msra.mxu0 0.0
    %634 = vmatprep.subr.mxu0 0.0
    %635 = vmatpush1.msra.mxu0 0.0
    %636 = vmatprep.subr.mxu0 0.0
    %637 = vmatpush1.msra.mxu0 0.0
    %638 = vmatprep.subr.mxu0 0.0
    %639 = vmatpush1.msra.mxu0 0.0
    %640 = vmatprep.subr.mxu0 0.0
    %641 = vmatpush1.msra.mxu0 0.0
    %642 = vmatprep.subr.mxu0 0.0
    %643 = vmatpush1.msra.mxu0 0.0
    %644 = vmatprep.subr.mxu0 0.0
    %645 = vmatpush1.msra.mxu0 %v125
    %646 = vmatprep.subr.mxu0 0.0
    %647 = vmatpush1.msra.mxu0 %v124
    %648 = vmatprep.subr.mxu0 0.0
    %649 = vmatpush1.msra.mxu0 %v123
    %650 = vmatprep.subr.mxu0 0.0
    %651 = vmatpush1.msra.mxu0 %v122
    %652 = vmatprep.subr.mxu0 0.0
    %653 = vmatpush1.msra.mxu0 %v121
    %654 = vmatprep.subr.mxu0 0.0
    %655 = vmatpush1.msra.mxu0 %v120
    %656 = vmatprep.subr.mxu0 0.0
    %657 = vmatpush1.msra.mxu0 %v119
    %658 = vmatprep.subr.mxu0 0.0
    %659 = vmatpush1.msra.mxu0 %v118
    %660 = vmatprep.subr.mxu0 0.0
    %661 = vmatpush2.msra.mxu0 0.0
    %662 = vmatprep.subr.mxu0 0.0
    %663 = vmatpush2.msra.mxu0 0.0
    %664 = vmatprep.subr.mxu0 0.0
    %665 = vmatpush2.msra.mxu0 0.0
    %666 = vmatprep.subr.mxu0 0.0
    %667 = vmatpush2.msra.mxu0 0.0
    %668 = vmatprep.subr.mxu0 0.0
    %669 = vmatpush2.msra.mxu0 0.0
    %670 = vmatprep.subr.mxu0 0.0
    %671 = vmatpush2.msra.mxu0 0.0
    %672 = vmatprep.subr.mxu0 0.0
    %673 = vmatpush2.msra.mxu0 0.0
    %674 = vmatprep.subr.mxu0 0.0
    %675 = vmatpush2.msra.mxu0 0.0
    %676 = vmatprep.subr.mxu0 0.0
    %677 = vmatpush2.msra.mxu0 0.0
    %678 = vmatprep.subr.mxu0 0.0
    %679 = vmatpush2.msra.mxu0 0.0
    %680 = vmatprep.subr.mxu0 0.0
    %681 = vmatpush2.msra.mxu0 0.0
    %682 = vmatprep.subr.mxu0 0.0
    %683 = vmatpush2.msra.mxu0 0.0
    %684 = vmatprep.subr.mxu0 0.0
    %685 = vmatpush2.msra.mxu0 0.0
    %686 = vmatprep.subr.mxu0 0.0
    %687 = vmatpush2.msra.mxu0 0.0
    %688 = vmatprep.subr.mxu0 0.0
    %689 = vmatpush2.msra.mxu0 0.0
    %690 = vmatprep.subr.mxu0 0.0
    %691 = vmatpush2.msra.mxu0 0.0
    %692 = vmatprep.mubr.f32.mxu0 0.0
    %693 = vmatmul.mubr.f32.gmra.mxu0 %v626
    %v694 = vpop.f32.mrf.mxu0
    %v695 = vadd.f32 %v131, %v694
    %v696 = vpop.f32.mrf.mxu0
    %697 = vdwg.mxu0
    %v698 = vxor.u32 %v695, 2147483648
    %v699 = vmul.f32 %v698, 1.442695
    %v700 = vpow.pop %v699
    %v701 = vadd.f32 %v700, 1.0
    %v702 = vrcp.pop %v701
    %v703 = vmul.f32 1.0, %v702
    %v704 = vtanh.pop %v695
    %706 = vrot.lane.b32.xlu0 %v613, 32
    %v707 = vpop.permute.xlu0 %706
    %v709 = vmul.f32 %v703, %v707
    %711 = vrot.lane.b32.xlu0 %v704, 64
    %v712 = vpop.permute.xlu0 %711
    %v714 = vmul.f32 %v703, %v712
    %716 = vrot.lane.b32.xlu0 %v714, 32
    %v717 = vpop.permute.xlu0 %716
    %v719 = vadd.f32 %v709, %v717
    %v720 = vtanh.pop %v719
    %722 = vrot.lane.b32.xlu0 %v720, 64
    %v723 = vpop.permute.xlu0 %722
    %v725 = vmul.f32 %v703, %v723
    %vm726 = vcmp.gt.f32.partialorder %v619, 0.5
    %728 = vrot.lane.b32.xlu0 %v725, 32
    %v729 = vpop.permute.xlu0 %728
    %v731 = vsel %vm726, %v729, %v608
    %733 = vrot.lane.b32.xlu0 %v719, 96
    %v734 = vpop.permute.xlu0 %733
    %v736 = vsel %vm726, %v734, %v613
    %s737 = scalar_lea.vmem [#allocation2], 32
    %738 = vst.msk [vmem:[%s737] sm:$0xff] %vm135, %v731
    %s739 = scalar_lea.vmem [#allocation4], 40
    %v740 = vld [vmem:[%s739] sm:$0xff]
    %s741 = scalar_lea.vmem [#allocation7], 40
    %v742 = vld [vmem:[%s741] sm:$0xff]
    %744 = vrot.lane.b32.xlu0 %v731, 32
    %v745 = vpop.permute.xlu0 %744
    %v747 = vsel %vm135, %v740, %v745
    %v749 = vsel %vm137, %v747, 0
    %751 = vmatprep.subr.mxu0 0.0
    %752 = vmatpush1.msra.mxu0 0.0
    %753 = vmatprep.subr.mxu0 0.0
    %754 = vmatpush1.msra.mxu0 0.0
    %755 = vmatprep.subr.mxu0 0.0
    %756 = vmatpush1.msra.mxu0 0.0
    %757 = vmatprep.subr.mxu0 0.0
    %758 = vmatpush1.msra.mxu0 0.0
    %759 = vmatprep.subr.mxu0 0.0
    %760 = vmatpush1.msra.mxu0 0.0
    %761 = vmatprep.subr.mxu0 0.0
    %762 = vmatpush1.msra.mxu0 0.0
    %763 = vmatprep.subr.mxu0 0.0
    %764 = vmatpush1.msra.mxu0 0.0
    %765 = vmatprep.subr.mxu0 0.0
    %766 = vmatpush1.msra.mxu0 0.0
    %767 = vmatprep.subr.mxu0 0.0
    %768 = vmatpush1.msra.mxu0 %v125
    %769 = vmatprep.subr.mxu0 0.0
    %770 = vmatpush1.msra.mxu0 %v124
    %771 = vmatprep.subr.mxu0 0.0
    %772 = vmatpush1.msra.mxu0 %v123
    %773 = vmatprep.subr.mxu0 0.0
    %774 = vmatpush1.msra.mxu0 %v122
    %775 = vmatprep.subr.mxu0 0.0
    %776 = vmatpush1.msra.mxu0 %v121
    %777 = vmatprep.subr.mxu0 0.0
    %778 = vmatpush1.msra.mxu0 %v120
    %779 = vmatprep.subr.mxu0 0.0
    %780 = vmatpush1.msra.mxu0 %v119
    %781 = vmatprep.subr.mxu0 0.0
    %782 = vmatpush1.msra.mxu0 %v118
    %783 = vmatprep.subr.mxu0 0.0
    %784 = vmatpush2.msra.mxu0 0.0
    %785 = vmatprep.subr.mxu0 0.0
    %786 = vmatpush2.msra.mxu0 0.0
    %787 = vmatprep.subr.mxu0 0.0
    %788 = vmatpush2.msra.mxu0 0.0
    %789 = vmatprep.subr.mxu0 0.0
    %790 = vmatpush2.msra.mxu0 0.0
    %791 = vmatprep.subr.mxu0 0.0
    %792 = vmatpush2.msra.mxu0 0.0
    %793 = vmatprep.subr.mxu0 0.0
    %794 = vmatpush2.msra.mxu0 0.0
    %795 = vmatprep.subr.mxu0 0.0
    %796 = vmatpush2.msra.mxu0 0.0
    %797 = vmatprep.subr.mxu0 0.0
    %798 = vmatpush2.msra.mxu0 0.0
    %799 = vmatprep.subr.mxu0 0.0
    %800 = vmatpush2.msra.mxu0 0.0
    %801 = vmatprep.subr.mxu0 0.0
    %802 = vmatpush2.msra.mxu0 0.0
    %803 = vmatprep.subr.mxu0 0.0
    %804 = vmatpush2.msra.mxu0 0.0
    %805 = vmatprep.subr.mxu0 0.0
    %806 = vmatpush2.msra.mxu0 0.0
    %807 = vmatprep.subr.mxu0 0.0
    %808 = vmatpush2.msra.mxu0 0.0
    %809 = vmatprep.subr.mxu0 0.0
    %810 = vmatpush2.msra.mxu0 0.0
    %811 = vmatprep.subr.mxu0 0.0
    %812 = vmatpush2.msra.mxu0 0.0
    %813 = vmatprep.subr.mxu0 0.0
    %814 = vmatpush2.msra.mxu0 0.0
    %815 = vmatprep.mubr.f32.mxu0 0.0
    %816 = vmatmul.mubr.f32.gmra.mxu0 %v749
    %v817 = vpop.f32.mrf.mxu0
    %v818 = vadd.f32 %v131, %v817
    %v819 = vpop.f32.mrf.mxu0
    %820 = vdwg.mxu0
    %v821 = vxor.u32 %v818, 2147483648
    %v822 = vmul.f32 %v821, 1.442695
    %v823 = vpow.pop %v822
    %v824 = vadd.f32 %v823, 1.0
    %v825 = vrcp.pop %v824
    %v826 = vmul.f32 1.0, %v825
    %v827 = vtanh.pop %v818
    %829 = vrot.lane.b32.xlu0 %v736, 32
    %v830 = vpop.permute.xlu0 %829
    %v832 = vmul.f32 %v826, %v830
    %834 = vrot.lane.b32.xlu0 %v827, 64
    %v835 = vpop.permute.xlu0 %834
    %v837 = vmul.f32 %v826, %v835
    %839 = vrot.lane.b32.xlu0 %v837, 32
    %v840 = vpop.permute.xlu0 %839
    %v842 = vadd.f32 %v832, %v840
    %v843 = vtanh.pop %v842
    %845 = vrot.lane.b32.xlu0 %v843, 64
    %v846 = vpop.permute.xlu0 %845
    %v848 = vmul.f32 %v826, %v846
    %vm849 = vcmp.gt.f32.partialorder %v742, 0.5
    %851 = vrot.lane.b32.xlu0 %v848, 32
    %v852 = vpop.permute.xlu0 %851
    %v854 = vsel %vm849, %v852, %v731
    %856 = vrot.lane.b32.xlu0 %v842, 96
    %v857 = vpop.permute.xlu0 %856
    %v859 = vsel %vm849, %v857, %v736
    %s860 = scalar_lea.vmem [#allocation2], 40
    %861 = vst.msk [vmem:[%s860] sm:$0xff] %vm135, %v854
    %s862 = scalar_lea.vmem [#allocation4], 48
    %v863 = vld [vmem:[%s862] sm:$0xff]
    %s864 = scalar_lea.vmem [#allocation7], 48
    %v865 = vld [vmem:[%s864] sm:$0xff]
    %867 = vrot.lane.b32.xlu0 %v854, 32
    %v868 = vpop.permute.xlu0 %867
    %v870 = vsel %vm135, %v863, %v868
    %v872 = vsel %vm137, %v870, 0
    %874 = vmatprep.subr.mxu0 0.0
    %875 = vmatpush1.msra.mxu0 0.0
    %876 = vmatprep.subr.mxu0 0.0
    %877 = vmatpush1.msra.mxu0 0.0
    %878 = vmatprep.subr.mxu0 0.0
    %879 = vmatpush1.msra.mxu0 0.0
    %880 = vmatprep.subr.mxu0 0.0
    %881 = vmatpush1.msra.mxu0 0.0
    %882 = vmatprep.subr.mxu0 0.0
    %883 = vmatpush1.msra.mxu0 0.0
    %884 = vmatprep.subr.mxu0 0.0
    %885 = vmatpush1.msra.mxu0 0.0
    %886 = vmatprep.subr.mxu0 0.0
    %887 = vmatpush1.msra.mxu0 0.0
    %888 = vmatprep.subr.mxu0 0.0
    %889 = vmatpush1.msra.mxu0 0.0
    %890 = vmatprep.subr.mxu0 0.0
    %891 = vmatpush1.msra.mxu0 %v125
    %892 = vmatprep.subr.mxu0 0.0
    %893 = vmatpush1.msra.mxu0 %v124
    %894 = vmatprep.subr.mxu0 0.0
    %895 = vmatpush1.msra.mxu0 %v123
    %896 = vmatprep.subr.mxu0 0.0
    %897 = vmatpush1.msra.mxu0 %v122
    %898 = vmatprep.subr.mxu0 0.0
    %899 = vmatpush1.msra.mxu0 %v121
    %900 = vmatprep.subr.mxu0 0.0
    %901 = vmatpush1.msra.mxu0 %v120
    %902 = vmatprep.subr.mxu0 0.0
    %903 = vmatpush1.msra.mxu0 %v119
    %904 = vmatprep.subr.mxu0 0.0
    %905 = vmatpush1.msra.mxu0 %v118
    %906 = vmatprep.subr.mxu0 0.0
    %907 = vmatpush2.msra.mxu0 0.0
    %908 = vmatprep.subr.mxu0 0.0
    %909 = vmatpush2.msra.mxu0 0.0
    %910 = vmatprep.subr.mxu0 0.0
    %911 = vmatpush2.msra.mxu0 0.0
    %912 = vmatprep.subr.mxu0 0.0
    %913 = vmatpush2.msra.mxu0 0.0
    %914 = vmatprep.subr.mxu0 0.0
    %915 = vmatpush2.msra.mxu0 0.0
    %916 = vmatprep.subr.mxu0 0.0
    %917 = vmatpush2.msra.mxu0 0.0
    %918 = vmatprep.subr.mxu0 0.0
    %919 = vmatpush2.msra.mxu0 0.0
    %920 = vmatprep.subr.mxu0 0.0
    %921 = vmatpush2.msra.mxu0 0.0
    %922 = vmatprep.subr.mxu0 0.0
    %923 = vmatpush2.msra.mxu0 0.0
    %924 = vmatprep.subr.mxu0 0.0
    %925 = vmatpush2.msra.mxu0 0.0
    %926 = vmatprep.subr.mxu0 0.0
    %927 = vmatpush2.msra.mxu0 0.0
    %928 = vmatprep.subr.mxu0 0.0
    %929 = vmatpush2.msra.mxu0 0.0
    %930 = vmatprep.subr.mxu0 0.0
    %931 = vmatpush2.msra.mxu0 0.0
    %932 = vmatprep.subr.mxu0 0.0
    %933 = vmatpush2.msra.mxu0 0.0
    %934 = vmatprep.subr.mxu0 0.0
    %935 = vmatpush2.msra.mxu0 0.0
    %936 = vmatprep.subr.mxu0 0.0
    %937 = vmatpush2.msra.mxu0 0.0
    %938 = vmatprep.mubr.f32.mxu0 0.0
    %939 = vmatmul.mubr.f32.gmra.mxu0 %v872
    %v940 = vpop.f32.mrf.mxu0
    %v941 = vadd.f32 %v131, %v940
    %v942 = vpop.f32.mrf.mxu0
    %943 = vdwg.mxu0
    %v944 = vxor.u32 %v941, 2147483648
    %v945 = vmul.f32 %v944, 1.442695
    %v946 = vpow.pop %v945
    %v947 = vadd.f32 %v946, 1.0
    %v948 = vrcp.pop %v947
    %v949 = vmul.f32 1.0, %v948
    %v950 = vtanh.pop %v941
    %952 = vrot.lane.b32.xlu0 %v859, 32
    %v953 = vpop.permute.xlu0 %952
    %v955 = vmul.f32 %v949, %v953
    %957 = vrot.lane.b32.xlu0 %v950, 64
    %v958 = vpop.permute.xlu0 %957
    %v960 = vmul.f32 %v949, %v958
    %962 = vrot.lane.b32.xlu0 %v960, 32
    %v963 = vpop.permute.xlu0 %962
    %v965 = vadd.f32 %v955, %v963
    %v966 = vtanh.pop %v965
    %968 = vrot.lane.b32.xlu0 %v966, 64
    %v969 = vpop.permute.xlu0 %968
    %v971 = vmul.f32 %v949, %v969
    %vm972 = vcmp.gt.f32.partialorder %v865, 0.5
    %974 = vrot.lane.b32.xlu0 %v971, 32
    %v975 = vpop.permute.xlu0 %974
    %v977 = vsel %vm972, %v975, %v854
    %979 = vrot.lane.b32.xlu0 %v965, 96
    %v980 = vpop.permute.xlu0 %979
    %v982 = vsel %vm972, %v980, %v859
    %s983 = scalar_lea.vmem [#allocation2], 48
    %984 = vst.msk [vmem:[%s983] sm:$0xff] %vm135, %v977
    %s985 = scalar_lea.vmem [#allocation4], 56
    %v986 = vld [vmem:[%s985] sm:$0xff]
    %s987 = scalar_lea.vmem [#allocation7], 56
    %v988 = vld [vmem:[%s987] sm:$0xff]
    %990 = vrot.lane.b32.xlu0 %v977, 32
    %v991 = vpop.permute.xlu0 %990
    %v993 = vsel %vm135, %v986, %v991
    %v995 = vsel %vm137, %v993, 0
    %997 = vmatprep.subr.mxu0 0.0
    %998 = vmatpush1.msra.mxu0 0.0
    %999 = vmatprep.subr.mxu0 0.0
    %1000 = vmatpush1.msra.mxu0 0.0
    %1001 = vmatprep.subr.mxu0 0.0
    %1002 = vmatpush1.msra.mxu0 0.0
    %1003 = vmatprep.subr.mxu0 0.0
    %1004 = vmatpush1.msra.mxu0 0.0
    %1005 = vmatprep.subr.mxu0 0.0
    %1006 = vmatpush1.msra.mxu0 0.0
    %1007 = vmatprep.subr.mxu0 0.0
    %1008 = vmatpush1.msra.mxu0 0.0
    %1009 = vmatprep.subr.mxu0 0.0
    %1010 = vmatpush1.msra.mxu0 0.0
    %1011 = vmatprep.subr.mxu0 0.0
    %1012 = vmatpush1.msra.mxu0 0.0
    %1013 = vmatprep.subr.mxu0 0.0
    %1014 = vmatpush1.msra.mxu0 %v125
    %1015 = vmatprep.subr.mxu0 0.0
    %1016 = vmatpush1.msra.mxu0 %v124
    %1017 = vmatprep.subr.mxu0 0.0
    %1018 = vmatpush1.msra.mxu0 %v123
    %1019 = vmatprep.subr.mxu0 0.0
    %1020 = vmatpush1.msra.mxu0 %v122
    %1021 = vmatprep.subr.mxu0 0.0
    %1022 = vmatpush1.msra.mxu0 %v121
    %1023 = vmatprep.subr.mxu0 0.0
    %1024 = vmatpush1.msra.mxu0 %v120
    %1025 = vmatprep.subr.mxu0 0.0
    %1026 = vmatpush1.msra.mxu0 %v119
    %1027 = vmatprep.subr.mxu0 0.0
    %1028 = vmatpush1.msra.mxu0 %v118
    %1029 = vmatprep.subr.mxu0 0.0
    %1030 = vmatpush2.msra.mxu0 0.0
    %1031 = vmatprep.subr.mxu0 0.0
    %1032 = vmatpush2.msra.mxu0 0.0
    %1033 = vmatprep.subr.mxu0 0.0
    %1034 = vmatpush2.msra.mxu0 0.0
    %1035 = vmatprep.subr.mxu0 0.0
    %1036 = vmatpush2.msra.mxu0 0.0
    %1037 = vmatprep.subr.mxu0 0.0
    %1038 = vmatpush2.msra.mxu0 0.0
    %1039 = vmatprep.subr.mxu0 0.0
    %1040 = vmatpush2.msra.mxu0 0.0
    %1041 = vmatprep.subr.mxu0 0.0
    %1042 = vmatpush2.msra.mxu0 0.0
    %1043 = vmatprep.subr.mxu0 0.0
    %1044 = vmatpush2.msra.mxu0 0.0
    %1045 = vmatprep.subr.mxu0 0.0
    %1046 = vmatpush2.msra.mxu0 0.0
    %1047 = vmatprep.subr.mxu0 0.0
    %1048 = vmatpush2.msra.mxu0 0.0
    %1049 = vmatprep.subr.mxu0 0.0
    %1050 = vmatpush2.msra.mxu0 0.0
    %1051 = vmatprep.subr.mxu0 0.0
    %1052 = vmatpush2.msra.mxu0 0.0
    %1053 = vmatprep.subr.mxu0 0.0
    %1054 = vmatpush2.msra.mxu0 0.0
    %1055 = vmatprep.subr.mxu0 0.0
    %1056 = vmatpush2.msra.mxu0 0.0
    %1057 = vmatprep.subr.mxu0 0.0
    %1058 = vmatpush2.msra.mxu0 0.0
    %1059 = vmatprep.subr.mxu0 0.0
    %1060 = vmatpush2.msra.mxu0 0.0
    %1061 = vmatprep.mubr.f32.mxu0 0.0
    %1062 = vmatmul.mubr.f32.gmra.mxu0 %v995
    %v1063 = vpop.f32.mrf.mxu0
    %v1064 = vadd.f32 %v131, %v1063
    %v1065 = vpop.f32.mrf.mxu0
    %1066 = vdwg.mxu0
    %v1067 = vxor.u32 %v1064, 2147483648
    %v1068 = vmul.f32 %v1067, 1.442695
    %v1069 = vpow.pop %v1068
    %v1070 = vadd.f32 %v1069, 1.0
    %v1071 = vrcp.pop %v1070
    %v1072 = vmul.f32 1.0, %v1071
    %v1073 = vtanh.pop %v1064
    %1075 = vrot.lane.b32.xlu0 %v982, 32
    %v1076 = vpop.permute.xlu0 %1075
    %v1078 = vmul.f32 %v1072, %v1076
    %1080 = vrot.lane.b32.xlu0 %v1073, 64
    %v1081 = vpop.permute.xlu0 %1080
    %v1083 = vmul.f32 %v1072, %v1081
    %1085 = vrot.lane.b32.xlu0 %v1083, 32
    %v1086 = vpop.permute.xlu0 %1085
    %v1088 = vadd.f32 %v1078, %v1086
    %v1089 = vtanh.pop %v1088
    %1091 = vrot.lane.b32.xlu0 %v1089, 64
    %v1092 = vpop.permute.xlu0 %1091
    %v1094 = vmul.f32 %v1072, %v1092
    %vm1095 = vcmp.gt.f32.partialorder %v988, 0.5
    %1097 = vrot.lane.b32.xlu0 %v1094, 32
    %v1098 = vpop.permute.xlu0 %1097
    %v1100 = vsel %vm1095, %v1098, %v977
    %s1101 = scalar_lea.vmem [#allocation2], 56
    %1102 = vst.msk [vmem:[%s1101] sm:$0xff] %vm135, %v1100
    %v1103 = vld [vmem:[#allocation10] sm:$0xff]
    %v1104 = vld [vmem:[#allocation10 + $0x8] sm:$0xff]
    %v1105 = vld [vmem:[#allocation10 + $0x10] sm:$0xff]
    %v1106 = vld [vmem:[#allocation10 + $0x18] sm:$0xff]
    %v1107 = vld [vmem:[#allocation10 + $0x20] sm:$0xff]
    %v1108 = vld [vmem:[#allocation10 + $0x28] sm:$0xff]
    %v1109 = vld [vmem:[#allocation10 + $0x30] sm:$0xff]
    %v1110 = vld [vmem:[#allocation10 + $0x38] sm:$0xff]
    %v1111 = vld [vmem:[%s5] sm:$0x1]
    %v1113 = vlaneseq
    %v1114 = vshrl.u32 %v1113, 7
    %v1115 = vsub.s32 0, %v1114
    %v1116 = vrot.slane %v1111, %v1115
    %v1118 = vld [vmem:[%s985] sm:$0xff]
    %v1119 = vld [vmem:[%s987] sm:$0xff]
    %v1120 = vsel %vm135, %v1118, 0.0
    %v1122 = vsel %vm137, %v1120, 0
    %1124 = vmatprep.subr.mxu0 0.0
    %1125 = vmatpush1.msra.mxu0 0.0
    %1126 = vmatprep.subr.mxu0 0.0
    %1127 = vmatpush1.msra.mxu0 0.0
    %1128 = vmatprep.subr.mxu0 0.0
    %1129 = vmatpush1.msra.mxu0 0.0
    %1130 = vmatprep.subr.mxu0 0.0
    %1131 = vmatpush1.msra.mxu0 0.0
    %1132 = vmatprep.subr.mxu0 0.0
    %1133 = vmatpush1.msra.mxu0 0.0
    %1134 = vmatprep.subr.mxu0 0.0
    %1135 = vmatpush1.msra.mxu0 0.0
    %1136 = vmatprep.subr.mxu0 0.0
    %1137 = vmatpush1.msra.mxu0 0.0
    %1138 = vmatprep.subr.mxu0 0.0
    %1139 = vmatpush1.msra.mxu0 0.0
    %1140 = vmatprep.subr.mxu0 0.0
    %1141 = vmatpush1.msra.mxu0 %v1110
    %1142 = vmatprep.subr.mxu0 0.0
    %1143 = vmatpush1.msra.mxu0 %v1109
    %1144 = vmatprep.subr.mxu0 0.0
    %1145 = vmatpush1.msra.mxu0 %v1108
    %1146 = vmatprep.subr.mxu0 0.0
    %1147 = vmatpush1.msra.mxu0 %v1107
    %1148 = vmatprep.subr.mxu0 0.0
    %1149 = vmatpush1.msra.mxu0 %v1106
    %1150 = vmatprep.subr.mxu0 0.0
    %1151 = vmatpush1.msra.mxu0 %v1105
    %1152 = vmatprep.subr.mxu0 0.0
    %1153 = vmatpush1.msra.mxu0 %v1104
    %1154 = vmatprep.subr.mxu0 0.0
    %1155 = vmatpush1.msra.mxu0 %v1103
    %1156 = vmatprep.subr.mxu0 0.0
    %1157 = vmatpush2.msra.mxu0 0.0
    %1158 = vmatprep.subr.mxu0 0.0
    %1159 = vmatpush2.msra.mxu0 0.0
    %1160 = vmatprep.subr.mxu0 0.0
    %1161 = vmatpush2.msra.mxu0 0.0
    %1162 = vmatprep.subr.mxu0 0.0
    %1163 = vmatpush2.msra.mxu0 0.0
    %1164 = vmatprep.subr.mxu0 0.0
    %1165 = vmatpush2.msra.mxu0 0.0
    %1166 = vmatprep.subr.mxu0 0.0
    %1167 = vmatpush2.msra.mxu0 0.0
    %1168 = vmatprep.subr.mxu0 0.0
    %1169 = vmatpush2.msra.mxu0 0.0
    %1170 = vmatprep.subr.mxu0 0.0
    %1171 = vmatpush2.msra.mxu0 0.0
    %1172 = vmatprep.subr.mxu0 0.0
    %1173 = vmatpush2.msra.mxu0 0.0
    %1174 = vmatprep.subr.mxu0 0.0
    %1175 = vmatpush2.msra.mxu0 0.0
    %1176 = vmatprep.subr.mxu0 0.0
    %1177 = vmatpush2.msra.mxu0 0.0
    %1178 = vmatprep.subr.mxu0 0.0
    %1179 = vmatpush2.msra.mxu0 0.0
    %1180 = vmatprep.subr.mxu0 0.0
    %1181 = vmatpush2.msra.mxu0 0.0
    %1182 = vmatprep.subr.mxu0 0.0
    %1183 = vmatpush2.msra.mxu0 0.0
    %1184 = vmatprep.subr.mxu0 0.0
    %1185 = vmatpush2.msra.mxu0 0.0
    %1186 = vmatprep.subr.mxu0 0.0
    %1187 = vmatpush2.msra.mxu0 0.0
    %1188 = vmatprep.mubr.f32.mxu0 0.0
    %1189 = vmatmul.mubr.f32.gmra.mxu0 %v1122
    %v1190 = vpop.f32.mrf.mxu0
    %v1191 = vadd.f32 %v1116, %v1190
    %v1192 = vpop.f32.mrf.mxu0
    %1193 = vdwg.mxu0
    %v1194 = vxor.u32 %v1191, 2147483648
    %v1195 = vmul.f32 %v1194, 1.442695
    %v1196 = vpow.pop %v1195
    %v1197 = vadd.f32 %v1196, 1.0
    %v1198 = vrcp.pop %v1197
    %v1199 = vmul.f32 1.0, %v1198
    %v1200 = vtanh.pop %v1191
    %v1201 = vmul.f32 %v1199, 0.0
    %1203 = vrot.lane.b32.xlu0 %v1200, 64
    %v1204 = vpop.permute.xlu0 %1203
    %v1206 = vmul.f32 %v1199, %v1204
    %1208 = vrot.lane.b32.xlu0 %v1206, 32
    %v1209 = vpop.permute.xlu0 %1208
    %v1211 = vadd.f32 %v1201, %v1209
    %v1212 = vtanh.pop %v1211
    %1214 = vrot.lane.b32.xlu0 %v1212, 64
    %v1215 = vpop.permute.xlu0 %1214
    %v1217 = vmul.f32 %v1199, %v1215
    %vm1218 = vcmp.gt.f32.partialorder %v1119, 0.5
    %1220 = vrot.lane.b32.xlu0 %v1217, 32
    %v1221 = vpop.permute.xlu0 %1220
    %v1223 = vsel %vm1218, %v1221, 0.0
    %1225 = vrot.lane.b32.xlu0 %v1211, 96
    %v1226 = vpop.permute.xlu0 %1225
    %v1228 = vsel %vm1218, %v1226, 0.0
    %1230 = vrot.lane.b32.xlu0 %v1223, 32
    %v1231 = vpop.permute.xlu0 %1230
    %vm1233 = vcmask 523520
    %1234 = vst.msk [vmem:[%s1101] sm:$0xff] %vm1233, %v1231
    %v1235 = vld [vmem:[%s862] sm:$0xff]
    %v1236 = vld [vmem:[%s864] sm:$0xff]
    %v1237 = vsel %vm135, %v1235, %v1231
    %v1239 = vsel %vm137, %v1237, 0
    %1241 = vmatprep.subr.mxu0 0.0
    %1242 = vmatpush1.msra.mxu0 0.0
    %1243 = vmatprep.subr.mxu0 0.0
    %1244 = vmatpush1.msra.mxu0 0.0
    %1245 = vmatprep.subr.mxu0 0.0
    %1246 = vmatpush1.msra.mxu0 0.0
    %1247 = vmatprep.subr.mxu0 0.0
    %1248 = vmatpush1.msra.mxu0 0.0
    %1249 = vmatprep.subr.mxu0 0.0
    %1250 = vmatpush1.msra.mxu0 0.0
    %1251 = vmatprep.subr.mxu0 0.0
    %1252 = vmatpush1.msra.mxu0 0.0
    %1253 = vmatprep.subr.mxu0 0.0
    %1254 = vmatpush1.msra.mxu0 0.0
    %1255 = vmatprep.subr.mxu0 0.0
    %1256 = vmatpush1.msra.mxu0 0.0
    %1257 = vmatprep.subr.mxu0 0.0
    %1258 = vmatpush1.msra.mxu0 %v1110
    %1259 = vmatprep.subr.mxu0 0.0
    %1260 = vmatpush1.msra.mxu0 %v1109
    %1261 = vmatprep.subr.mxu0 0.0
    %1262 = vmatpush1.msra.mxu0 %v1108
    %1263 = vmatprep.subr.mxu0 0.0
    %1264 = vmatpush1.msra.mxu0 %v1107
    %1265 = vmatprep.subr.mxu0 0.0
    %1266 = vmatpush1.msra.mxu0 %v1106
    %1267 = vmatprep.subr.mxu0 0.0
    %1268 = vmatpush1.msra.mxu0 %v1105
    %1269 = vmatprep.subr.mxu0 0.0
    %1270 = vmatpush1.msra.mxu0 %v1104
    %1271 = vmatprep.subr.mxu0 0.0
    %1272 = vmatpush1.msra.mxu0 %v1103
    %1273 = vmatprep.subr.mxu0 0.0
    %1274 = vmatpush2.msra.mxu0 0.0
    %1275 = vmatprep.subr.mxu0 0.0
    %1276 = vmatpush2.msra.mxu0 0.0
    %1277 = vmatprep.subr.mxu0 0.0
    %1278 = vmatpush2.msra.mxu0 0.0
    %1279 = vmatprep.subr.mxu0 0.0
    %1280 = vmatpush2.msra.mxu0 0.0
    %1281 = vmatprep.subr.mxu0 0.0
    %1282 = vmatpush2.msra.mxu0 0.0
    %1283 = vmatprep.subr.mxu0 0.0
    %1284 = vmatpush2.msra.mxu0 0.0
    %1285 = vmatprep.subr.mxu0 0.0
    %1286 = vmatpush2.msra.mxu0 0.0
    %1287 = vmatprep.subr.mxu0 0.0
    %1288 = vmatpush2.msra.mxu0 0.0
    %1289 = vmatprep.subr.mxu0 0.0
    %1290 = vmatpush2.msra.mxu0 0.0
    %1291 = vmatprep.subr.mxu0 0.0
    %1292 = vmatpush2.msra.mxu0 0.0
    %1293 = vmatprep.subr.mxu0 0.0
    %1294 = vmatpush2.msra.mxu0 0.0
    %1295 = vmatprep.subr.mxu0 0.0
    %1296 = vmatpush2.msra.mxu0 0.0
    %1297 = vmatprep.subr.mxu0 0.0
    %1298 = vmatpush2.msra.mxu0 0.0
    %1299 = vmatprep.subr.mxu0 0.0
    %1300 = vmatpush2.msra.mxu0 0.0
    %1301 = vmatprep.subr.mxu0 0.0
    %1302 = vmatpush2.msra.mxu0 0.0
    %1303 = vmatprep.subr.mxu0 0.0
    %1304 = vmatpush2.msra.mxu0 0.0
    %1305 = vmatprep.mubr.f32.mxu0 0.0
    %1306 = vmatmul.mubr.f32.gmra.mxu0 %v1239
    %v1307 = vpop.f32.mrf.mxu0
    %v1308 = vadd.f32 %v1116, %v1307
    %v1309 = vpop.f32.mrf.mxu0
    %1310 = vdwg.mxu0
    %v1311 = vxor.u32 %v1308, 2147483648
    %v1312 = vmul.f32 %v1311, 1.442695
    %v1313 = vpow.pop %v1312
    %v1314 = vadd.f32 %v1313, 1.0
    %v1315 = vrcp.pop %v1314
    %v1316 = vmul.f32 1.0, %v1315
    %v1317 = vtanh.pop %v1308
    %1319 = vrot.lane.b32.xlu0 %v1228, 32
    %v1320 = vpop.permute.xlu0 %1319
    %v1322 = vmul.f32 %v1316, %v1320
    %1324 = vrot.lane.b32.xlu0 %v1317, 64
    %v1325 = vpop.permute.xlu0 %1324
    %v1327 = vmul.f32 %v1316, %v1325
    %1329 = vrot.lane.b32.xlu0 %v1327, 32
    %v1330 = vpop.permute.xlu0 %1329
    %v1332 = vadd.f32 %v1322, %v1330
    %v1333 = vtanh.pop %v1332
    %1335 = vrot.lane.b32.xlu0 %v1333, 64
    %v1336 = vpop.permute.xlu0 %1335
    %v1338 = vmul.f32 %v1316, %v1336
    %vm1339 = vcmp.gt.f32.partialorder %v1236, 0.5
    %1341 = vrot.lane.b32.xlu0 %v1338, 32
    %v1342 = vpop.permute.xlu0 %1341
    %v1344 = vsel %vm1339, %v1342, %v1223
    %1346 = vrot.lane.b32.xlu0 %v1332, 96
    %v1347 = vpop.permute.xlu0 %1346
    %v1349 = vsel %vm1339, %v1347, %v1228
    %1351 = vrot.lane.b32.xlu0 %v1344, 32
    %v1352 = vpop.permute.xlu0 %1351
    %1354 = vst.msk [vmem:[%s983] sm:$0xff] %vm1233, %v1352
    %v1355 = vld [vmem:[%s739] sm:$0xff]
    %v1356 = vld [vmem:[%s741] sm:$0xff]
    %v1357 = vsel %vm135, %v1355, %v1352
    %v1359 = vsel %vm137, %v1357, 0
    %1361 = vmatprep.subr.mxu0 0.0
    %1362 = vmatpush1.msra.mxu0 0.0
    %1363 = vmatprep.subr.mxu0 0.0
    %1364 = vmatpush1.msra.mxu0 0.0
    %1365 = vmatprep.subr.mxu0 0.0
    %1366 = vmatpush1.msra.mxu0 0.0
    %1367 = vmatprep.subr.mxu0 0.0
    %1368 = vmatpush1.msra.mxu0 0.0
    %1369 = vmatprep.subr.mxu0 0.0
    %1370 = vmatpush1.msra.mxu0 0.0
    %1371 = vmatprep.subr.mxu0 0.0
    %1372 = vmatpush1.msra.mxu0 0.0
    %1373 = vmatprep.subr.mxu0 0.0
    %1374 = vmatpush1.msra.mxu0 0.0
    %1375 = vmatprep.subr.mxu0 0.0
    %1376 = vmatpush1.msra.mxu0 0.0
    %1377 = vmatprep.subr.mxu0 0.0
    %1378 = vmatpush1.msra.mxu0 %v1110
    %1379 = vmatprep.subr.mxu0 0.0
    %1380 = vmatpush1.msra.mxu0 %v1109
    %1381 = vmatprep.subr.mxu0 0.0
    %1382 = vmatpush1.msra.mxu0 %v1108
    %1383 = vmatprep.subr.mxu0 0.0
    %1384 = vmatpush1.msra.mxu0 %v1107
    %1385 = vmatprep.subr.mxu0 0.0
    %1386 = vmatpush1.msra.mxu0 %v1106
    %1387 = vmatprep.subr.mxu0 0.0
    %1388 = vmatpush1.msra.mxu0 %v1105
    %1389 = vmatprep.subr.mxu0 0.0
    %1390 = vmatpush1.msra.mxu0 %v1104
    %1391 = vmatprep.subr.mxu0 0.0
    %1392 = vmatpush1.msra.mxu0 %v1103
    %1393 = vmatprep.subr.mxu0 0.0
    %1394 = vmatpush2.msra.mxu0 0.0
    %1395 = vmatprep.subr.mxu0 0.0
    %1396 = vmatpush2.msra.mxu0 0.0
    %1397 = vmatprep.subr.mxu0 0.0
    %1398 = vmatpush2.msra.mxu0 0.0
    %1399 = vmatprep.subr.mxu0 0.0
    %1400 = vmatpush2.msra.mxu0 0.0
    %1401 = vmatprep.subr.mxu0 0.0
    %1402 = vmatpush2.msra.mxu0 0.0
    %1403 = vmatprep.subr.mxu0 0.0
    %1404 = vmatpush2.msra.mxu0 0.0
    %1405 = vmatprep.subr.mxu0 0.0
    %1406 = vmatpush2.msra.mxu0 0.0
    %1407 = vmatprep.subr.mxu0 0.0
    %1408 = vmatpush2.msra.mxu0 0.0
    %1409 = vmatprep.subr.mxu0 0.0
    %1410 = vmatpush2.msra.mxu0 0.0
    %1411 = vmatprep.subr.mxu0 0.0
    %1412 = vmatpush2.msra.mxu0 0.0
    %1413 = vmatprep.subr.mxu0 0.0
    %1414 = vmatpush2.msra.mxu0 0.0
    %1415 = vmatprep.subr.mxu0 0.0
    %1416 = vmatpush2.msra.mxu0 0.0
    %1417 = vmatprep.subr.mxu0 0.0
    %1418 = vmatpush2.msra.mxu0 0.0
    %1419 = vmatprep.subr.mxu0 0.0
    %1420 = vmatpush2.msra.mxu0 0.0
    %1421 = vmatprep.subr.mxu0 0.0
    %1422 = vmatpush2.msra.mxu0 0.0
    %1423 = vmatprep.subr.mxu0 0.0
    %1424 = vmatpush2.msra.mxu0 0.0
    %1425 = vmatprep.mubr.f32.mxu0 0.0
    %1426 = vmatmul.mubr.f32.gmra.mxu0 %v1359
    %v1427 = vpop.f32.mrf.mxu0
    %v1428 = vadd.f32 %v1116, %v1427
    %v1429 = vpop.f32.mrf.mxu0
    %1430 = vdwg.mxu0
    %v1431 = vxor.u32 %v1428, 2147483648
    %v1432 = vmul.f32 %v1431, 1.442695
    %v1433 = vpow.pop %v1432
    %v1434 = vadd.f32 %v1433, 1.0
    %v1435 = vrcp.pop %v1434
    %v1436 = vmul.f32 1.0, %v1435
    %v1437 = vtanh.pop %v1428
    %1439 = vrot.lane.b32.xlu0 %v1349, 32
    %v1440 = vpop.permute.xlu0 %1439
    %v1442 = vmul.f32 %v1436, %v1440
    %1444 = vrot.lane.b32.xlu0 %v1437, 64
    %v1445 = vpop.permute.xlu0 %1444
    %v1447 = vmul.f32 %v1436, %v1445
    %1449 = vrot.lane.b32.xlu0 %v1447, 32
    %v1450 = vpop.permute.xlu0 %1449
    %v1452 = vadd.f32 %v1442, %v1450
    %v1453 = vtanh.pop %v1452
    %1455 = vrot.lane.b32.xlu0 %v1453, 64
    %v1456 = vpop.permute.xlu0 %1455
    %v1458 = vmul.f32 %v1436, %v1456
    %vm1459 = vcmp.gt.f32.partialorder %v1356, 0.5
    %1461 = vrot.lane.b32.xlu0 %v1458, 32
    %v1462 = vpop.permute.xlu0 %1461
    %v1464 = vsel %vm1459, %v1462, %v1344
    %1466 = vrot.lane.b32.xlu0 %v1452, 96
    %v1467 = vpop.permute.xlu0 %1466
    %v1469 = vsel %vm1459, %v1467, %v1349
    %1471 = vrot.lane.b32.xlu0 %v1464, 32
    %v1472 = vpop.permute.xlu0 %1471
    %1474 = vst.msk [vmem:[%s860] sm:$0xff] %vm1233, %v1472
    %v1475 = vld [vmem:[%s616] sm:$0xff]
    %v1476 = vld [vmem:[%s618] sm:$0xff]
    %v1477 = vsel %vm135, %v1475, %v1472
    %v1479 = vsel %vm137, %v1477, 0
    %1481 = vmatprep.subr.mxu0 0.0
    %1482 = vmatpush1.msra.mxu0 0.0
    %1483 = vmatprep.subr.mxu0 0.0
    %1484 = vmatpush1.msra.mxu0 0.0
    %1485 = vmatprep.subr.mxu0 0.0
    %1486 = vmatpush1.msra.mxu0 0.0
    %1487 = vmatprep.subr.mxu0 0.0
    %1488 = vmatpush1.msra.mxu0 0.0
    %1489 = vmatprep.subr.mxu0 0.0
    %1490 = vmatpush1.msra.mxu0 0.0
    %1491 = vmatprep.subr.mxu0 0.0
    %1492 = vmatpush1.msra.mxu0 0.0
    %1493 = vmatprep.subr.mxu0 0.0
    %1494 = vmatpush1.msra.mxu0 0.0
    %1495 = vmatprep.subr.mxu0 0.0
    %1496 = vmatpush1.msra.mxu0 0.0
    %1497 = vmatprep.subr.mxu0 0.0
    %1498 = vmatpush1.msra.mxu0 %v1110
    %1499 = vmatprep.subr.mxu0 0.0
    %1500 = vmatpush1.msra.mxu0 %v1109
    %1501 = vmatprep.subr.mxu0 0.0
    %1502 = vmatpush1.msra.mxu0 %v1108
    %1503 = vmatprep.subr.mxu0 0.0
    %1504 = vmatpush1.msra.mxu0 %v1107
    %1505 = vmatprep.subr.mxu0 0.0
    %1506 = vmatpush1.msra.mxu0 %v1106
    %1507 = vmatprep.subr.mxu0 0.0
    %1508 = vmatpush1.msra.mxu0 %v1105
    %1509 = vmatprep.subr.mxu0 0.0
    %1510 = vmatpush1.msra.mxu0 %v1104
    %1511 = vmatprep.subr.mxu0 0.0
    %1512 = vmatpush1.msra.mxu0 %v1103
    %1513 = vmatprep.subr.mxu0 0.0
    %1514 = vmatpush2.msra.mxu0 0.0
    %1515 = vmatprep.subr.mxu0 0.0
    %1516 = vmatpush2.msra.mxu0 0.0
    %1517 = vmatprep.subr.mxu0 0.0
    %1518 = vmatpush2.msra.mxu0 0.0
    %1519 = vmatprep.subr.mxu0 0.0
    %1520 = vmatpush2.msra.mxu0 0.0
    %1521 = vmatprep.subr.mxu0 0.0
    %1522 = vmatpush2.msra.mxu0 0.0
    %1523 = vmatprep.subr.mxu0 0.0
    %1524 = vmatpush2.msra.mxu0 0.0
    %1525 = vmatprep.subr.mxu0 0.0
    %1526 = vmatpush2.msra.mxu0 0.0
    %1527 = vmatprep.subr.mxu0 0.0
    %1528 = vmatpush2.msra.mxu0 0.0
    %1529 = vmatprep.subr.mxu0 0.0
    %1530 = vmatpush2.msra.mxu0 0.0
    %1531 = vmatprep.subr.mxu0 0.0
    %1532 = vmatpush2.msra.mxu0 0.0
    %1533 = vmatprep.subr.mxu0 0.0
    %1534 = vmatpush2.msra.mxu0 0.0
    %1535 = vmatprep.subr.mxu0 0.0
    %1536 = vmatpush2.msra.mxu0 0.0
    %1537 = vmatprep.subr.mxu0 0.0
    %1538 = vmatpush2.msra.mxu0 0.0
    %1539 = vmatprep.subr.mxu0 0.0
    %1540 = vmatpush2.msra.mxu0 0.0
    %1541 = vmatprep.subr.mxu0 0.0
    %1542 = vmatpush2.msra.mxu0 0.0
    %1543 = vmatprep.subr.mxu0 0.0
    %1544 = vmatpush2.msra.mxu0 0.0
    %1545 = vmatprep.mubr.f32.mxu0 0.0
    %1546 = vmatmul.mubr.f32.gmra.mxu0 %v1479
    %v1547 = vpop.f32.mrf.mxu0
    %v1548 = vadd.f32 %v1116, %v1547
    %v1549 = vpop.f32.mrf.mxu0
    %1550 = vdwg.mxu0
    %v1551 = vxor.u32 %v1548, 2147483648
    %v1552 = vmul.f32 %v1551, 1.442695
    %v1553 = vpow.pop %v1552
    %v1554 = vadd.f32 %v1553, 1.0
    %v1555 = vrcp.pop %v1554
    %v1556 = vmul.f32 1.0, %v1555
    %v1557 = vtanh.pop %v1548
    %1559 = vrot.lane.b32.xlu0 %v1469, 32
    %v1560 = vpop.permute.xlu0 %1559
    %v1562 = vmul.f32 %v1556, %v1560
    %1564 = vrot.lane.b32.xlu0 %v1557, 64
    %v1565 = vpop.permute.xlu0 %1564
    %v1567 = vmul.f32 %v1556, %v1565
    %1569 = vrot.lane.b32.xlu0 %v1567, 32
    %v1570 = vpop.permute.xlu0 %1569
    %v1572 = vadd.f32 %v1562, %v1570
    %v1573 = vtanh.pop %v1572
    %1575 = vrot.lane.b32.xlu0 %v1573, 64
    %v1576 = vpop.permute.xlu0 %1575
    %v1578 = vmul.f32 %v1556, %v1576
    %vm1579 = vcmp.gt.f32.partialorder %v1476, 0.5
    %1581 = vrot.lane.b32.xlu0 %v1578, 32
    %v1582 = vpop.permute.xlu0 %1581
    %v1584 = vsel %vm1579, %v1582, %v1464
    %1586 = vrot.lane.b32.xlu0 %v1572, 96
    %v1587 = vpop.permute.xlu0 %1586
    %v1589 = vsel %vm1579, %v1587, %v1469
    %1591 = vrot.lane.b32.xlu0 %v1584, 32
    %v1592 = vpop.permute.xlu0 %1591
    %1594 = vst.msk [vmem:[%s737] sm:$0xff] %vm1233, %v1592
    %v1595 = vld [vmem:[%s493] sm:$0xff]
    %v1596 = vld [vmem:[%s495] sm:$0xff]
    %v1597 = vsel %vm135, %v1595, %v1592
    %v1599 = vsel %vm137, %v1597, 0
    %1601 = vmatprep.subr.mxu0 0.0
    %1602 = vmatpush1.msra.mxu0 0.0
    %1603 = vmatprep.subr.mxu0 0.0
    %1604 = vmatpush1.msra.mxu0 0.0
    %1605 = vmatprep.subr.mxu0 0.0
    %1606 = vmatpush1.msra.mxu0 0.0
    %1607 = vmatprep.subr.mxu0 0.0
    %1608 = vmatpush1.msra.mxu0 0.0
    %1609 = vmatprep.subr.mxu0 0.0
    %1610 = vmatpush1.msra.mxu0 0.0
    %1611 = vmatprep.subr.mxu0 0.0
    %1612 = vmatpush1.msra.mxu0 0.0
    %1613 = vmatprep.subr.mxu0 0.0
    %1614 = vmatpush1.msra.mxu0 0.0
    %1615 = vmatprep.subr.mxu0 0.0
    %1616 = vmatpush1.msra.mxu0 0.0
    %1617 = vmatprep.subr.mxu0 0.0
    %1618 = vmatpush1.msra.mxu0 %v1110
    %1619 = vmatprep.subr.mxu0 0.0
    %1620 = vmatpush1.msra.mxu0 %v1109
    %1621 = vmatprep.subr.mxu0 0.0
    %1622 = vmatpush1.msra.mxu0 %v1108
    %1623 = vmatprep.subr.mxu0 0.0
    %1624 = vmatpush1.msra.mxu0 %v1107
    %1625 = vmatprep.subr.mxu0 0.0
    %1626 = vmatpush1.msra.mxu0 %v1106
    %1627 = vmatprep.subr.mxu0 0.0
    %1628 = vmatpush1.msra.mxu0 %v1105
    %1629 = vmatprep.subr.mxu0 0.0
    %1630 = vmatpush1.msra.mxu0 %v1104
    %1631 = vmatprep.subr.mxu0 0.0
    %1632 = vmatpush1.msra.mxu0 %v1103
    %1633 = vmatprep.subr.mxu0 0.0
    %1634 = vmatpush2.msra.mxu0 0.0
    %1635 = vmatprep.subr.mxu0 0.0
    %1636 = vmatpush2.msra.mxu0 0.0
    %1637 = vmatprep.subr.mxu0 0.0
    %1638 = vmatpush2.msra.mxu0 0.0
    %1639 = vmatprep.subr.mxu0 0.0
    %1640 = vmatpush2.msra.mxu0 0.0
    %1641 = vmatprep.subr.mxu0 0.0
    %1642 = vmatpush2.msra.mxu0 0.0
    %1643 = vmatprep.subr.mxu0 0.0
    %1644 = vmatpush2.msra.mxu0 0.0
    %1645 = vmatprep.subr.mxu0 0.0
    %1646 = vmatpush2.msra.mxu0 0.0
    %1647 = vmatprep.subr.mxu0 0.0
    %1648 = vmatpush2.msra.mxu0 0.0
    %1649 = vmatprep.subr.mxu0 0.0
    %1650 = vmatpush2.msra.mxu0 0.0
    %1651 = vmatprep.subr.mxu0 0.0
    %1652 = vmatpush2.msra.mxu0 0.0
    %1653 = vmatprep.subr.mxu0 0.0
    %1654 = vmatpush2.msra.mxu0 0.0
    %1655 = vmatprep.subr.mxu0 0.0
    %1656 = vmatpush2.msra.mxu0 0.0
    %1657 = vmatprep.subr.mxu0 0.0
    %1658 = vmatpush2.msra.mxu0 0.0
    %1659 = vmatprep.subr.mxu0 0.0
    %1660 = vmatpush2.msra.mxu0 0.0
    %1661 = vmatprep.subr.mxu0 0.0
    %1662 = vmatpush2.msra.mxu0 0.0
    %1663 = vmatprep.subr.mxu0 0.0
    %1664 = vmatpush2.msra.mxu0 0.0
    %1665 = vmatprep.mubr.f32.mxu0 0.0
    %1666 = vmatmul.mubr.f32.gmra.mxu0 %v1599
    %v1667 = vpop.f32.mrf.mxu0
    %v1668 = vadd.f32 %v1116, %v1667
    %v1669 = vpop.f32.mrf.mxu0
    %1670 = vdwg.mxu0
    %v1671 = vxor.u32 %v1668, 2147483648
    %v1672 = vmul.f32 %v1671, 1.442695
    %v1673 = vpow.pop %v1672
    %v1674 = vadd.f32 %v1673, 1.0
    %v1675 = vrcp.pop %v1674
    %v1676 = vmul.f32 1.0, %v1675
    %v1677 = vtanh.pop %v1668
    %1679 = vrot.lane.b32.xlu0 %v1589, 32
    %v1680 = vpop.permute.xlu0 %1679
    %v1682 = vmul.f32 %v1676, %v1680
    %1684 = vrot.lane.b32.xlu0 %v1677, 64
    %v1685 = vpop.permute.xlu0 %1684
    %v1687 = vmul.f32 %v1676, %v1685
    %1689 = vrot.lane.b32.xlu0 %v1687, 32
    %v1690 = vpop.permute.xlu0 %1689
    %v1692 = vadd.f32 %v1682, %v1690
    %v1693 = vtanh.pop %v1692
    %1695 = vrot.lane.b32.xlu0 %v1693, 64
    %v1696 = vpop.permute.xlu0 %1695
    %v1698 = vmul.f32 %v1676, %v1696
    %vm1699 = vcmp.gt.f32.partialorder %v1596, 0.5
    %1701 = vrot.lane.b32.xlu0 %v1698, 32
    %v1702 = vpop.permute.xlu0 %1701
    %v1704 = vsel %vm1699, %v1702, %v1584
    %1706 = vrot.lane.b32.xlu0 %v1692, 96
    %v1707 = vpop.permute.xlu0 %1706
    %v1709 = vsel %vm1699, %v1707, %v1589
    %1711 = vrot.lane.b32.xlu0 %v1704, 32
    %v1712 = vpop.permute.xlu0 %1711
    %1714 = vst.msk [vmem:[%s614] sm:$0xff] %vm1233, %v1712
    %v1715 = vld [vmem:[%s370] sm:$0xff]
    %v1716 = vld [vmem:[%s372] sm:$0xff]
    %v1717 = vsel %vm135, %v1715, %v1712
    %v1719 = vsel %vm137, %v1717, 0
    %1721 = vmatprep.subr.mxu0 0.0
    %1722 = vmatpush1.msra.mxu0 0.0
    %1723 = vmatprep.subr.mxu0 0.0
    %1724 = vmatpush1.msra.mxu0 0.0
    %1725 = vmatprep.subr.mxu0 0.0
    %1726 = vmatpush1.msra.mxu0 0.0
    %1727 = vmatprep.subr.mxu0 0.0
    %1728 = vmatpush1.msra.mxu0 0.0
    %1729 = vmatprep.subr.mxu0 0.0
    %1730 = vmatpush1.msra.mxu0 0.0
    %1731 = vmatprep.subr.mxu0 0.0
    %1732 = vmatpush1.msra.mxu0 0.0
    %1733 = vmatprep.subr.mxu0 0.0
    %1734 = vmatpush1.msra.mxu0 0.0
    %1735 = vmatprep.subr.mxu0 0.0
    %1736 = vmatpush1.msra.mxu0 0.0
    %1737 = vmatprep.subr.mxu0 0.0
    %1738 = vmatpush1.msra.mxu0 %v1110
    %1739 = vmatprep.subr.mxu0 0.0
    %1740 = vmatpush1.msra.mxu0 %v1109
    %1741 = vmatprep.subr.mxu0 0.0
    %1742 = vmatpush1.msra.mxu0 %v1108
    %1743 = vmatprep.subr.mxu0 0.0
    %1744 = vmatpush1.msra.mxu0 %v1107
    %1745 = vmatprep.subr.mxu0 0.0
    %1746 = vmatpush1.msra.mxu0 %v1106
    %1747 = vmatprep.subr.mxu0 0.0
    %1748 = vmatpush1.msra.mxu0 %v1105
    %1749 = vmatprep.subr.mxu0 0.0
    %1750 = vmatpush1.msra.mxu0 %v1104
    %1751 = vmatprep.subr.mxu0 0.0
    %1752 = vmatpush1.msra.mxu0 %v1103
    %1753 = vmatprep.subr.mxu0 0.0
    %1754 = vmatpush2.msra.mxu0 0.0
    %1755 = vmatprep.subr.mxu0 0.0
    %1756 = vmatpush2.msra.mxu0 0.0
    %1757 = vmatprep.subr.mxu0 0.0
    %1758 = vmatpush2.msra.mxu0 0.0
    %1759 = vmatprep.subr.mxu0 0.0
    %1760 = vmatpush2.msra.mxu0 0.0
    %1761 = vmatprep.subr.mxu0 0.0
    %1762 = vmatpush2.msra.mxu0 0.0
    %1763 = vmatprep.subr.mxu0 0.0
    %1764 = vmatpush2.msra.mxu0 0.0
    %1765 = vmatprep.subr.mxu0 0.0
    %1766 = vmatpush2.msra.mxu0 0.0
    %1767 = vmatprep.subr.mxu0 0.0
    %1768 = vmatpush2.msra.mxu0 0.0
    %1769 = vmatprep.subr.mxu0 0.0
    %1770 = vmatpush2.msra.mxu0 0.0
    %1771 = vmatprep.subr.mxu0 0.0
    %1772 = vmatpush2.msra.mxu0 0.0
    %1773 = vmatprep.subr.mxu0 0.0
    %1774 = vmatpush2.msra.mxu0 0.0
    %1775 = vmatprep.subr.mxu0 0.0
    %1776 = vmatpush2.msra.mxu0 0.0
    %1777 = vmatprep.subr.mxu0 0.0
    %1778 = vmatpush2.msra.mxu0 0.0
    %1779 = vmatprep.subr.mxu0 0.0
    %1780 = vmatpush2.msra.mxu0 0.0
    %1781 = vmatprep.subr.mxu0 0.0
    %1782 = vmatpush2.msra.mxu0 0.0
    %1783 = vmatprep.subr.mxu0 0.0
    %1784 = vmatpush2.msra.mxu0 0.0
    %1785 = vmatprep.mubr.f32.mxu0 0.0
    %1786 = vmatmul.mubr.f32.gmra.mxu0 %v1719
    %v1787 = vpop.f32.mrf.mxu0
    %v1788 = vadd.f32 %v1116, %v1787
    %v1789 = vpop.f32.mrf.mxu0
    %1790 = vdwg.mxu0
    %v1791 = vxor.u32 %v1788, 2147483648
    %v1792 = vmul.f32 %v1791, 1.442695
    %v1793 = vpow.pop %v1792
    %v1794 = vadd.f32 %v1793, 1.0
    %v1795 = vrcp.pop %v1794
    %v1796 = vmul.f32 1.0, %v1795
    %v1797 = vtanh.pop %v1788
    %1799 = vrot.lane.b32.xlu0 %v1709, 32
    %v1800 = vpop.permute.xlu0 %1799
    %v1802 = vmul.f32 %v1796, %v1800
    %1804 = vrot.lane.b32.xlu0 %v1797, 64
    %v1805 = vpop.permute.xlu0 %1804
    %v1807 = vmul.f32 %v1796, %v1805
    %1809 = vrot.lane.b32.xlu0 %v1807, 32
    %v1810 = vpop.permute.xlu0 %1809
    %v1812 = vadd.f32 %v1802, %v1810
    %v1813 = vtanh.pop %v1812
    %1815 = vrot.lane.b32.xlu0 %v1813, 64
    %v1816 = vpop.permute.xlu0 %1815
    %v1818 = vmul.f32 %v1796, %v1816
    %vm1819 = vcmp.gt.f32.partialorder %v1716, 0.5
    %1821 = vrot.lane.b32.xlu0 %v1818, 32
    %v1822 = vpop.permute.xlu0 %1821
    %v1824 = vsel %vm1819, %v1822, %v1704
    %1826 = vrot.lane.b32.xlu0 %v1812, 96
    %v1827 = vpop.permute.xlu0 %1826
    %v1829 = vsel %vm1819, %v1827, %v1709
    %1831 = vrot.lane.b32.xlu0 %v1824, 32
    %v1832 = vpop.permute.xlu0 %1831
    %1834 = vst.msk [vmem:[%s491] sm:$0xff] %vm1233, %v1832
    %v1835 = vld [vmem:[%s247] sm:$0xff]
    %v1836 = vld [vmem:[%s249] sm:$0xff]
    %v1837 = vsel %vm135, %v1835, %v1832
    %v1839 = vsel %vm137, %v1837, 0
    %1841 = vmatprep.subr.mxu0 0.0
    %1842 = vmatpush1.msra.mxu0 0.0
    %1843 = vmatprep.subr.mxu0 0.0
    %1844 = vmatpush1.msra.mxu0 0.0
    %1845 = vmatprep.subr.mxu0 0.0
    %1846 = vmatpush1.msra.mxu0 0.0
    %1847 = vmatprep.subr.mxu0 0.0
    %1848 = vmatpush1.msra.mxu0 0.0
    %1849 = vmatprep.subr.mxu0 0.0
    %1850 = vmatpush1.msra.mxu0 0.0
    %1851 = vmatprep.subr.mxu0 0.0
    %1852 = vmatpush1.msra.mxu0 0.0
    %1853 = vmatprep.subr.mxu0 0.0
    %1854 = vmatpush1.msra.mxu0 0.0
    %1855 = vmatprep.subr.mxu0 0.0
    %1856 = vmatpush1.msra.mxu0 0.0
    %1857 = vmatprep.subr.mxu0 0.0
    %1858 = vmatpush1.msra.mxu0 %v1110
    %1859 = vmatprep.subr.mxu0 0.0
    %1860 = vmatpush1.msra.mxu0 %v1109
    %1861 = vmatprep.subr.mxu0 0.0
    %1862 = vmatpush1.msra.mxu0 %v1108
    %1863 = vmatprep.subr.mxu0 0.0
    %1864 = vmatpush1.msra.mxu0 %v1107
    %1865 = vmatprep.subr.mxu0 0.0
    %1866 = vmatpush1.msra.mxu0 %v1106
    %1867 = vmatprep.subr.mxu0 0.0
    %1868 = vmatpush1.msra.mxu0 %v1105
    %1869 = vmatprep.subr.mxu0 0.0
    %1870 = vmatpush1.msra.mxu0 %v1104
    %1871 = vmatprep.subr.mxu0 0.0
    %1872 = vmatpush1.msra.mxu0 %v1103
    %1873 = vmatprep.subr.mxu0 0.0
    %1874 = vmatpush2.msra.mxu0 0.0
    %1875 = vmatprep.subr.mxu0 0.0
    %1876 = vmatpush2.msra.mxu0 0.0
    %1877 = vmatprep.subr.mxu0 0.0
    %1878 = vmatpush2.msra.mxu0 0.0
    %1879 = vmatprep.subr.mxu0 0.0
    %1880 = vmatpush2.msra.mxu0 0.0
    %1881 = vmatprep.subr.mxu0 0.0
    %1882 = vmatpush2.msra.mxu0 0.0
    %1883 = vmatprep.subr.mxu0 0.0
    %1884 = vmatpush2.msra.mxu0 0.0
    %1885 = vmatprep.subr.mxu0 0.0
    %1886 = vmatpush2.msra.mxu0 0.0
    %1887 = vmatprep.subr.mxu0 0.0
    %1888 = vmatpush2.msra.mxu0 0.0
    %1889 = vmatprep.subr.mxu0 0.0
    %1890 = vmatpush2.msra.mxu0 0.0
    %1891 = vmatprep.subr.mxu0 0.0
    %1892 = vmatpush2.msra.mxu0 0.0
    %1893 = vmatprep.subr.mxu0 0.0
    %1894 = vmatpush2.msra.mxu0 0.0
    %1895 = vmatprep.subr.mxu0 0.0
    %1896 = vmatpush2.msra.mxu0 0.0
    %1897 = vmatprep.subr.mxu0 0.0
    %1898 = vmatpush2.msra.mxu0 0.0
    %1899 = vmatprep.subr.mxu0 0.0
    %1900 = vmatpush2.msra.mxu0 0.0
    %1901 = vmatprep.subr.mxu0 0.0
    %1902 = vmatpush2.msra.mxu0 0.0
    %1903 = vmatprep.subr.mxu0 0.0
    %1904 = vmatpush2.msra.mxu0 0.0
    %1905 = vmatprep.mubr.f32.mxu0 0.0
    %1906 = vmatmul.mubr.f32.gmra.mxu0 %v1839
    %v1907 = vpop.f32.mrf.mxu0
    %v1908 = vadd.f32 %v1116, %v1907
    %v1909 = vpop.f32.mrf.mxu0
    %1910 = vdwg.mxu0
    %v1911 = vxor.u32 %v1908, 2147483648
    %v1912 = vmul.f32 %v1911, 1.442695
    %v1913 = vpow.pop %v1912
    %v1914 = vadd.f32 %v1913, 1.0
    %v1915 = vrcp.pop %v1914
    %v1916 = vmul.f32 1.0, %v1915
    %v1917 = vtanh.pop %v1908
    %1919 = vrot.lane.b32.xlu0 %v1829, 32
    %v1920 = vpop.permute.xlu0 %1919
    %v1922 = vmul.f32 %v1916, %v1920
    %1924 = vrot.lane.b32.xlu0 %v1917, 64
    %v1925 = vpop.permute.xlu0 %1924
    %v1927 = vmul.f32 %v1916, %v1925
    %1929 = vrot.lane.b32.xlu0 %v1927, 32
    %v1930 = vpop.permute.xlu0 %1929
    %v1932 = vadd.f32 %v1922, %v1930
    %v1933 = vtanh.pop %v1932
    %1935 = vrot.lane.b32.xlu0 %v1933, 64
    %v1936 = vpop.permute.xlu0 %1935
    %v1938 = vmul.f32 %v1916, %v1936
    %vm1939 = vcmp.gt.f32.partialorder %v1836, 0.5
    %1941 = vrot.lane.b32.xlu0 %v1938, 32
    %v1942 = vpop.permute.xlu0 %1941
    %v1944 = vsel %vm1939, %v1942, %v1824
    %1946 = vrot.lane.b32.xlu0 %v1932, 96
    %v1947 = vpop.permute.xlu0 %1946
    %v1949 = vsel %vm1939, %v1947, %v1829
    %1951 = vrot.lane.b32.xlu0 %v1944, 32
    %v1952 = vpop.permute.xlu0 %1951
    %1954 = vst.msk [vmem:[%s368] sm:$0xff] %vm1233, %v1952
    %v1955 = vld [vmem:[#allocation4] sm:$0xff]
    %v1956 = vld [vmem:[#allocation7] sm:$0xff]
    %v1957 = vsel %vm135, %v1955, %v1952
    %v1959 = vsel %vm137, %v1957, 0
    %1961 = vmatprep.subr.mxu0 0.0
    %1962 = vmatpush1.msra.mxu0 0.0
    %1963 = vmatprep.subr.mxu0 0.0
    %1964 = vmatpush1.msra.mxu0 0.0
    %1965 = vmatprep.subr.mxu0 0.0
    %1966 = vmatpush1.msra.mxu0 0.0
    %1967 = vmatprep.subr.mxu0 0.0
    %1968 = vmatpush1.msra.mxu0 0.0
    %1969 = vmatprep.subr.mxu0 0.0
    %1970 = vmatpush1.msra.mxu0 0.0
    %1971 = vmatprep.subr.mxu0 0.0
    %1972 = vmatpush1.msra.mxu0 0.0
    %1973 = vmatprep.subr.mxu0 0.0
    %1974 = vmatpush1.msra.mxu0 0.0
    %1975 = vmatprep.subr.mxu0 0.0
    %1976 = vmatpush1.msra.mxu0 0.0
    %1977 = vmatprep.subr.mxu0 0.0
    %1978 = vmatpush1.msra.mxu0 %v1110
    %1979 = vmatprep.subr.mxu0 0.0
    %1980 = vmatpush1.msra.mxu0 %v1109
    %1981 = vmatprep.subr.mxu0 0.0
    %1982 = vmatpush1.msra.mxu0 %v1108
    %1983 = vmatprep.subr.mxu0 0.0
    %1984 = vmatpush1.msra.mxu0 %v1107
    %1985 = vmatprep.subr.mxu0 0.0
    %1986 = vmatpush1.msra.mxu0 %v1106
    %1987 = vmatprep.subr.mxu0 0.0
    %1988 = vmatpush1.msra.mxu0 %v1105
    %1989 = vmatprep.subr.mxu0 0.0
    %1990 = vmatpush1.msra.mxu0 %v1104
    %1991 = vmatprep.subr.mxu0 0.0
    %1992 = vmatpush1.msra.mxu0 %v1103
    %1993 = vmatprep.subr.mxu0 0.0
    %1994 = vmatpush2.msra.mxu0 0.0
    %1995 = vmatprep.subr.mxu0 0.0
    %1996 = vmatpush2.msra.mxu0 0.0
    %1997 = vmatprep.subr.mxu0 0.0
    %1998 = vmatpush2.msra.mxu0 0.0
    %1999 = vmatprep.subr.mxu0 0.0
    %2000 = vmatpush2.msra.mxu0 0.0
    %2001 = vmatprep.subr.mxu0 0.0
    %2002 = vmatpush2.msra.mxu0 0.0
    %2003 = vmatprep.subr.mxu0 0.0
    %2004 = vmatpush2.msra.mxu0 0.0
    %2005 = vmatprep.subr.mxu0 0.0
    %2006 = vmatpush2.msra.mxu0 0.0
    %2007 = vmatprep.subr.mxu0 0.0
    %2008 = vmatpush2.msra.mxu0 0.0
    %2009 = vmatprep.subr.mxu0 0.0
    %2010 = vmatpush2.msra.mxu0 0.0
    %2011 = vmatprep.subr.mxu0 0.0
    %2012 = vmatpush2.msra.mxu0 0.0
    %2013 = vmatprep.subr.mxu0 0.0
    %2014 = vmatpush2.msra.mxu0 0.0
    %2015 = vmatprep.subr.mxu0 0.0
    %2016 = vmatpush2.msra.mxu0 0.0
    %2017 = vmatprep.subr.mxu0 0.0
    %2018 = vmatpush2.msra.mxu0 0.0
    %2019 = vmatprep.subr.mxu0 0.0
    %2020 = vmatpush2.msra.mxu0 0.0
    %2021 = vmatprep.subr.mxu0 0.0
    %2022 = vmatpush2.msra.mxu0 0.0
    %2023 = vmatprep.subr.mxu0 0.0
    %2024 = vmatpush2.msra.mxu0 0.0
    %2025 = vmatprep.mubr.f32.mxu0 0.0
    %2026 = vmatmul.mubr.f32.gmra.mxu0 %v1959
    %v2027 = vpop.f32.mrf.mxu0
    %v2028 = vadd.f32 %v1116, %v2027
    %v2029 = vpop.f32.mrf.mxu0
    %2030 = vdwg.mxu0
    %v2031 = vxor.u32 %v2028, 2147483648
    %v2032 = vmul.f32 %v2031, 1.442695
    %v2033 = vpow.pop %v2032
    %v2034 = vadd.f32 %v2033, 1.0
    %v2035 = vrcp.pop %v2034
    %v2036 = vmul.f32 1.0, %v2035
    %v2037 = vtanh.pop %v2028
    %2039 = vrot.lane.b32.xlu0 %v1949, 32
    %v2040 = vpop.permute.xlu0 %2039
    %v2042 = vmul.f32 %v2036, %v2040
    %2044 = vrot.lane.b32.xlu0 %v2037, 64
    %v2045 = vpop.permute.xlu0 %2044
    %v2047 = vmul.f32 %v2036, %v2045
    %2049 = vrot.lane.b32.xlu0 %v2047, 32
    %v2050 = vpop.permute.xlu0 %2049
    %v2052 = vadd.f32 %v2042, %v2050
    %v2053 = vtanh.pop %v2052
    %2055 = vrot.lane.b32.xlu0 %v2053, 64
    %v2056 = vpop.permute.xlu0 %2055
    %v2058 = vmul.f32 %v2036, %v2056
    %vm2059 = vcmp.gt.f32.partialorder %v1956, 0.5
    %2061 = vrot.lane.b32.xlu0 %v2058, 32
    %v2062 = vpop.permute.xlu0 %2061
    %v2064 = vsel %vm2059, %v2062, %v1944
    %2066 = vrot.lane.b32.xlu0 %v2064, 32
    %v2067 = vpop.permute.xlu0 %2066
    %2069 = vst.msk [vmem:[#allocation2] sm:$0xff] %vm1233, %v2067
    %v2070 = vld [vmem:[#allocation12] sm:$0xff]
    %v2071 = vld [vmem:[#allocation12 + $0x8] sm:$0xff]
    %v2072 = vld [vmem:[#allocation12 + $0x10] sm:$0xff]
    %v2073 = vld [vmem:[#allocation12 + $0x18] sm:$0xff]
    %v2074 = vld [vmem:[#allocation12 + $0x20] sm:$0xff]
    %v2075 = vld [vmem:[#allocation12 + $0x28] sm:$0xff]
    %v2076 = vld [vmem:[#allocation12 + $0x30] sm:$0xff]
    %v2077 = vld [vmem:[#allocation12 + $0x38] sm:$0xff]
    %v2078 = vld [vmem:[#allocation12 + $0x40] sm:$0xff]
    %v2079 = vld [vmem:[#allocation12 + $0x48] sm:$0xff]
    %v2080 = vld [vmem:[#allocation12 + $0x50] sm:$0xff]
    %v2081 = vld [vmem:[#allocation12 + $0x58] sm:$0xff]
    %v2082 = vld [vmem:[%s7] sm:$0x1]
    %v2084 = vlaneseq
    %v2085 = vshrl.u32 %v2084, 7
    %v2086 = vsub.s32 0, %v2085
    %v2087 = vrot.slane %v2082, %v2086
    %v2089 = vld [vmem:[#allocation2] sm:$0xff]
    %v2090 = vld [vmem:[#allocation7] sm:$0xff]
    %v2091 = vsel %vm137, %v2089, 0.0
    %vm2092 = vcmask 785408
    %v2094 = vsel %vm2092, %v2091, 0
    %2096 = vmatprep.subr.mxu0 0.0
    %2097 = vmatpush1.msra.mxu0 0.0
    %2098 = vmatprep.subr.mxu0 0.0
    %2099 = vmatpush1.msra.mxu0 0.0
    %2100 = vmatprep.subr.mxu0 0.0
    %2101 = vmatpush1.msra.mxu0 0.0
    %2102 = vmatprep.subr.mxu0 0.0
    %2103 = vmatpush1.msra.mxu0 0.0
    %2104 = vmatprep.subr.mxu0 0.0
    %2105 = vmatpush1.msra.mxu0 %v2081
    %2106 = vmatprep.subr.mxu0 0.0
    %2107 = vmatpush1.msra.mxu0 %v2080
    %2108 = vmatprep.subr.mxu0 0.0
    %2109 = vmatpush1.msra.mxu0 %v2079
    %2110 = vmatprep.subr.mxu0 0.0
    %2111 = vmatpush1.msra.mxu0 %v2078
    %2112 = vmatprep.subr.mxu0 0.0
    %2113 = vmatpush1.msra.mxu0 %v2077
    %2114 = vmatprep.subr.mxu0 0.0
    %2115 = vmatpush1.msra.mxu0 %v2076
    %2116 = vmatprep.subr.mxu0 0.0
    %2117 = vmatpush1.msra.mxu0 %v2075
    %2118 = vmatprep.subr.mxu0 0.0
    %2119 = vmatpush1.msra.mxu0 %v2074
    %2120 = vmatprep.subr.mxu0 0.0
    %2121 = vmatpush1.msra.mxu0 %v2073
    %2122 = vmatprep.subr.mxu0 0.0
    %2123 = vmatpush1.msra.mxu0 %v2072
    %2124 = vmatprep.subr.mxu0 0.0
    %2125 = vmatpush1.msra.mxu0 %v2071
    %2126 = vmatprep.subr.mxu0 0.0
    %2127 = vmatpush1.msra.mxu0 %v2070
    %2128 = vmatprep.subr.mxu0 0.0
    %2129 = vmatpush2.msra.mxu0 0.0
    %2130 = vmatprep.subr.mxu0 0.0
    %2131 = vmatpush2.msra.mxu0 0.0
    %2132 = vmatprep.subr.mxu0 0.0
    %2133 = vmatpush2.msra.mxu0 0.0
    %2134 = vmatprep.subr.mxu0 0.0
    %2135 = vmatpush2.msra.mxu0 0.0
    %2136 = vmatprep.subr.mxu0 0.0
    %2137 = vmatpush2.msra.mxu0 0.0
    %2138 = vmatprep.subr.mxu0 0.0
    %2139 = vmatpush2.msra.mxu0 0.0
    %2140 = vmatprep.subr.mxu0 0.0
    %2141 = vmatpush2.msra.mxu0 0.0
    %2142 = vmatprep.subr.mxu0 0.0
    %2143 = vmatpush2.msra.mxu0 0.0
    %2144 = vmatprep.subr.mxu0 0.0
    %2145 = vmatpush2.msra.mxu0 0.0
    %2146 = vmatprep.subr.mxu0 0.0
    %2147 = vmatpush2.msra.mxu0 0.0
    %2148 = vmatprep.subr.mxu0 0.0
    %2149 = vmatpush2.msra.mxu0 0.0
    %2150 = vmatprep.subr.mxu0 0.0
    %2151 = vmatpush2.msra.mxu0 0.0
    %2152 = vmatprep.subr.mxu0 0.0
    %2153 = vmatpush2.msra.mxu0 0.0
    %2154 = vmatprep.subr.mxu0 0.0
    %2155 = vmatpush2.msra.mxu0 0.0
    %2156 = vmatprep.subr.mxu0 0.0
    %2157 = vmatpush2.msra.mxu0 0.0
    %2158 = vmatprep.subr.mxu0 0.0
    %2159 = vmatpush2.msra.mxu0 0.0
    %2160 = vmatprep.mubr.f32.mxu0 0.0
    %2161 = vmatmul.mubr.f32.gmra.mxu0 %v2094
    %v2162 = vpop.f32.mrf.mxu0
    %v2163 = vadd.f32 %v2087, %v2162
    %v2164 = vpop.f32.mrf.mxu0
    %2165 = vdwg.mxu0
    %v2166 = vxor.u32 %v2163, 2147483648
    %v2167 = vmul.f32 %v2166, 1.442695
    %v2168 = vpow.pop %v2167
    %v2169 = vadd.f32 %v2168, 1.0
    %v2170 = vrcp.pop %v2169
    %v2171 = vmul.f32 1.0, %v2170
    %v2172 = vtanh.pop %v2163
    %v2173 = vmul.f32 %v2171, 0.0
    %2175 = vrot.lane.b32.xlu0 %v2172, 64
    %v2176 = vpop.permute.xlu0 %2175
    %v2178 = vmul.f32 %v2171, %v2176
    %2180 = vrot.lane.b32.xlu0 %v2178, 32
    %v2181 = vpop.permute.xlu0 %2180
    %v2183 = vadd.f32 %v2173, %v2181
    %v2184 = vtanh.pop %v2183
    %2186 = vrot.lane.b32.xlu0 %v2184, 64
    %v2187 = vpop.permute.xlu0 %2186
    %v2189 = vmul.f32 %v2171, %v2187
    %vm2190 = vcmp.gt.f32.partialorder %v2090, 0.5
    %2192 = vrot.lane.b32.xlu0 %v2189, 32
    %v2193 = vpop.permute.xlu0 %2192
    %v2195 = vsel %vm2190, %v2193, 0.0
    %2197 = vrot.lane.b32.xlu0 %v2183, 96
    %v2198 = vpop.permute.xlu0 %2197
    %v2200 = vsel %vm2190, %v2198, 0.0
    %2201 = vst.msk [vmem:[#allocation15] sm:$0xff] %vm135, %v2195
    %v2202 = vld [vmem:[%s368] sm:$0xff]
    %v2203 = vld [vmem:[%s249] sm:$0xff]
    %2205 = vrot.lane.b32.xlu0 %v2195, 64
    %v2206 = vpop.permute.xlu0 %2205
    %v2208 = vsel %vm137, %v2202, %v2206
    %v2210 = vsel %vm2092, %v2208, 0
    %2212 = vmatprep.subr.mxu0 0.0
    %2213 = vmatpush1.msra.mxu0 0.0
    %2214 = vmatprep.subr.mxu0 0.0
    %2215 = vmatpush1.msra.mxu0 0.0
    %2216 = vmatprep.subr.mxu0 0.0
    %2217 = vmatpush1.msra.mxu0 0.0
    %2218 = vmatprep.subr.mxu0 0.0
    %2219 = vmatpush1.msra.mxu0 0.0
    %2220 = vmatprep.subr.mxu0 0.0
    %2221 = vmatpush1.msra.mxu0 %v2081
    %2222 = vmatprep.subr.mxu0 0.0
    %2223 = vmatpush1.msra.mxu0 %v2080
    %2224 = vmatprep.subr.mxu0 0.0
    %2225 = vmatpush1.msra.mxu0 %v2079
    %2226 = vmatprep.subr.mxu0 0.0
    %2227 = vmatpush1.msra.mxu0 %v2078
    %2228 = vmatprep.subr.mxu0 0.0
    %2229 = vmatpush1.msra.mxu0 %v2077
    %2230 = vmatprep.subr.mxu0 0.0
    %2231 = vmatpush1.msra.mxu0 %v2076
    %2232 = vmatprep.subr.mxu0 0.0
    %2233 = vmatpush1.msra.mxu0 %v2075
    %2234 = vmatprep.subr.mxu0 0.0
    %2235 = vmatpush1.msra.mxu0 %v2074
    %2236 = vmatprep.subr.mxu0 0.0
    %2237 = vmatpush1.msra.mxu0 %v2073
    %2238 = vmatprep.subr.mxu0 0.0
    %2239 = vmatpush1.msra.mxu0 %v2072
    %2240 = vmatprep.subr.mxu0 0.0
    %2241 = vmatpush1.msra.mxu0 %v2071
    %2242 = vmatprep.subr.mxu0 0.0
    %2243 = vmatpush1.msra.mxu0 %v2070
    %2244 = vmatprep.subr.mxu0 0.0
    %2245 = vmatpush2.msra.mxu0 0.0
    %2246 = vmatprep.subr.mxu0 0.0
    %2247 = vmatpush2.msra.mxu0 0.0
    %2248 = vmatprep.subr.mxu0 0.0
    %2249 = vmatpush2.msra.mxu0 0.0
    %2250 = vmatprep.subr.mxu0 0.0
    %2251 = vmatpush2.msra.mxu0 0.0
    %2252 = vmatprep.subr.mxu0 0.0
    %2253 = vmatpush2.msra.mxu0 0.0
    %2254 = vmatprep.subr.mxu0 0.0
    %2255 = vmatpush2.msra.mxu0 0.0
    %2256 = vmatprep.subr.mxu0 0.0
    %2257 = vmatpush2.msra.mxu0 0.0
    %2258 = vmatprep.subr.mxu0 0.0
    %2259 = vmatpush2.msra.mxu0 0.0
    %2260 = vmatprep.subr.mxu0 0.0
    %2261 = vmatpush2.msra.mxu0 0.0
    %2262 = vmatprep.subr.mxu0 0.0
    %2263 = vmatpush2.msra.mxu0 0.0
    %2264 = vmatprep.subr.mxu0 0.0
    %2265 = vmatpush2.msra.mxu0 0.0
    %2266 = vmatprep.subr.mxu0 0.0
    %2267 = vmatpush2.msra.mxu0 0.0
    %2268 = vmatprep.subr.mxu0 0.0
    %2269 = vmatpush2.msra.mxu0 0.0
    %2270 = vmatprep.subr.mxu0 0.0
    %2271 = vmatpush2.msra.mxu0 0.0
    %2272 = vmatprep.subr.mxu0 0.0
    %2273 = vmatpush2.msra.mxu0 0.0
    %2274 = vmatprep.subr.mxu0 0.0
    %2275 = vmatpush2.msra.mxu0 0.0
    %2276 = vmatprep.mubr.f32.mxu0 0.0
    %2277 = vmatmul.mubr.f32.gmra.mxu0 %v2210
    %v2278 = vpop.f32.mrf.mxu0
    %v2279 = vadd.f32 %v2087, %v2278
    %v2280 = vpop.f32.mrf.mxu0
    %2281 = vdwg.mxu0
    %v2282 = vxor.u32 %v2279, 2147483648
    %v2283 = vmul.f32 %v2282, 1.442695
    %v2284 = vpow.pop %v2283
    %v2285 = vadd.f32 %v2284, 1.0
    %v2286 = vrcp.pop %v2285
    %v2287 = vmul.f32 1.0, %v2286
    %v2288 = vtanh.pop %v2279
    %2290 = vrot.lane.b32.xlu0 %v2200, 32
    %v2291 = vpop.permute.xlu0 %2290
    %v2293 = vmul.f32 %v2287, %v2291
    %2295 = vrot.lane.b32.xlu0 %v2288, 64
    %v2296 = vpop.permute.xlu0 %2295
    %v2298 = vmul.f32 %v2287, %v2296
    %2300 = vrot.lane.b32.xlu0 %v2298, 32
    %v2301 = vpop.permute.xlu0 %2300
    %v2303 = vadd.f32 %v2293, %v2301
    %v2304 = vtanh.pop %v2303
    %2306 = vrot.lane.b32.xlu0 %v2304, 64
    %v2307 = vpop.permute.xlu0 %2306
    %v2309 = vmul.f32 %v2287, %v2307
    %vm2310 = vcmp.gt.f32.partialorder %v2203, 0.5
    %2312 = vrot.lane.b32.xlu0 %v2309, 32
    %v2313 = vpop.permute.xlu0 %2312
    %v2315 = vsel %vm2310, %v2313, %v2195
    %2317 = vrot.lane.b32.xlu0 %v2303, 96
    %v2318 = vpop.permute.xlu0 %2317
    %v2320 = vsel %vm2310, %v2318, %v2200
    %s2321 = scalar_lea.vmem [#allocation15], 8
    %2322 = vst.msk [vmem:[%s2321] sm:$0xff] %vm135, %v2315
    %v2323 = vld [vmem:[%s491] sm:$0xff]
    %v2324 = vld [vmem:[%s372] sm:$0xff]
    %2326 = vrot.lane.b32.xlu0 %v2315, 64
    %v2327 = vpop.permute.xlu0 %2326
    %v2329 = vsel %vm137, %v2323, %v2327
    %v2331 = vsel %vm2092, %v2329, 0
    %2333 = vmatprep.subr.mxu0 0.0
    %2334 = vmatpush1.msra.mxu0 0.0
    %2335 = vmatprep.subr.mxu0 0.0
    %2336 = vmatpush1.msra.mxu0 0.0
    %2337 = vmatprep.subr.mxu0 0.0
    %2338 = vmatpush1.msra.mxu0 0.0
    %2339 = vmatprep.subr.mxu0 0.0
    %2340 = vmatpush1.msra.mxu0 0.0
    %2341 = vmatprep.subr.mxu0 0.0
    %2342 = vmatpush1.msra.mxu0 %v2081
    %2343 = vmatprep.subr.mxu0 0.0
    %2344 = vmatpush1.msra.mxu0 %v2080
    %2345 = vmatprep.subr.mxu0 0.0
    %2346 = vmatpush1.msra.mxu0 %v2079
    %2347 = vmatprep.subr.mxu0 0.0
    %2348 = vmatpush1.msra.mxu0 %v2078
    %2349 = vmatprep.subr.mxu0 0.0
    %2350 = vmatpush1.msra.mxu0 %v2077
    %2351 = vmatprep.subr.mxu0 0.0
    %2352 = vmatpush1.msra.mxu0 %v2076
    %2353 = vmatprep.subr.mxu0 0.0
    %2354 = vmatpush1.msra.mxu0 %v2075
    %2355 = vmatprep.subr.mxu0 0.0
    %2356 = vmatpush1.msra.mxu0 %v2074
    %2357 = vmatprep.subr.mxu0 0.0
    %2358 = vmatpush1.msra.mxu0 %v2073
    %2359 = vmatprep.subr.mxu0 0.0
    %2360 = vmatpush1.msra.mxu0 %v2072
    %2361 = vmatprep.subr.mxu0 0.0
    %2362 = vmatpush1.msra.mxu0 %v2071
    %2363 = vmatprep.subr.mxu0 0.0
    %2364 = vmatpush1.msra.mxu0 %v2070
    %2365 = vmatprep.subr.mxu0 0.0
    %2366 = vmatpush2.msra.mxu0 0.0
    %2367 = vmatprep.subr.mxu0 0.0
    %2368 = vmatpush2.msra.mxu0 0.0
    %2369 = vmatprep.subr.mxu0 0.0
    %2370 = vmatpush2.msra.mxu0 0.0
    %2371 = vmatprep.subr.mxu0 0.0
    %2372 = vmatpush2.msra.mxu0 0.0
    %2373 = vmatprep.subr.mxu0 0.0
    %2374 = vmatpush2.msra.mxu0 0.0
    %2375 = vmatprep.subr.mxu0 0.0
    %2376 = vmatpush2.msra.mxu0 0.0
    %2377 = vmatprep.subr.mxu0 0.0
    %2378 = vmatpush2.msra.mxu0 0.0
    %2379 = vmatprep.subr.mxu0 0.0
    %2380 = vmatpush2.msra.mxu0 0.0
    %2381 = vmatprep.subr.mxu0 0.0
    %2382 = vmatpush2.msra.mxu0 0.0
    %2383 = vmatprep.subr.mxu0 0.0
    %2384 = vmatpush2.msra.mxu0 0.0
    %2385 = vmatprep.subr.mxu0 0.0
    %2386 = vmatpush2.msra.mxu0 0.0
    %2387 = vmatprep.subr.mxu0 0.0
    %2388 = vmatpush2.msra.mxu0 0.0
    %2389 = vmatprep.subr.mxu0 0.0
    %2390 = vmatpush2.msra.mxu0 0.0
    %2391 = vmatprep.subr.mxu0 0.0
    %2392 = vmatpush2.msra.mxu0 0.0
    %2393 = vmatprep.subr.mxu0 0.0
    %2394 = vmatpush2.msra.mxu0 0.0
    %2395 = vmatprep.subr.mxu0 0.0
    %2396 = vmatpush2.msra.mxu0 0.0
    %2397 = vmatprep.mubr.f32.mxu0 0.0
    %2398 = vmatmul.mubr.f32.gmra.mxu0 %v2331
    %v2399 = vpop.f32.mrf.mxu0
    %v2400 = vadd.f32 %v2087, %v2399
    %v2401 = vpop.f32.mrf.mxu0
    %2402 = vdwg.mxu0
    %v2403 = vxor.u32 %v2400, 2147483648
    %v2404 = vmul.f32 %v2403, 1.442695
    %v2405 = vpow.pop %v2404
    %v2406 = vadd.f32 %v2405, 1.0
    %v2407 = vrcp.pop %v2406
    %v2408 = vmul.f32 1.0, %v2407
    %v2409 = vtanh.pop %v2400
    %2411 = vrot.lane.b32.xlu0 %v2320, 32
    %v2412 = vpop.permute.xlu0 %2411
    %v2414 = vmul.f32 %v2408, %v2412
    %2416 = vrot.lane.b32.xlu0 %v2409, 64
    %v2417 = vpop.permute.xlu0 %2416
    %v2419 = vmul.f32 %v2408, %v2417
    %2421 = vrot.lane.b32.xlu0 %v2419, 32
    %v2422 = vpop.permute.xlu0 %2421
    %v2424 = vadd.f32 %v2414, %v2422
    %v2425 = vtanh.pop %v2424
    %2427 = vrot.lane.b32.xlu0 %v2425, 64
    %v2428 = vpop.permute.xlu0 %2427
    %v2430 = vmul.f32 %v2408, %v2428
    %vm2431 = vcmp.gt.f32.partialorder %v2324, 0.5
    %2433 = vrot.lane.b32.xlu0 %v2430, 32
    %v2434 = vpop.permute.xlu0 %2433
    %v2436 = vsel %vm2431, %v2434, %v2315
    %2438 = vrot.lane.b32.xlu0 %v2424, 96
    %v2439 = vpop.permute.xlu0 %2438
    %v2441 = vsel %vm2431, %v2439, %v2320
    %s2442 = scalar_lea.vmem [#allocation15], 16
    %2443 = vst.msk [vmem:[%s2442] sm:$0xff] %vm135, %v2436
    %v2444 = vld [vmem:[%s614] sm:$0xff]
    %v2445 = vld [vmem:[%s495] sm:$0xff]
    %2447 = vrot.lane.b32.xlu0 %v2436, 64
    %v2448 = vpop.permute.xlu0 %2447
    %v2450 = vsel %vm137, %v2444, %v2448
    %v2452 = vsel %vm2092, %v2450, 0
    %2454 = vmatprep.subr.mxu0 0.0
    %2455 = vmatpush1.msra.mxu0 0.0
    %2456 = vmatprep.subr.mxu0 0.0
    %2457 = vmatpush1.msra.mxu0 0.0
    %2458 = vmatprep.subr.mxu0 0.0
    %2459 = vmatpush1.msra.mxu0 0.0
    %2460 = vmatprep.subr.mxu0 0.0
    %2461 = vmatpush1.msra.mxu0 0.0
    %2462 = vmatprep.subr.mxu0 0.0
    %2463 = vmatpush1.msra.mxu0 %v2081
    %2464 = vmatprep.subr.mxu0 0.0
    %2465 = vmatpush1.msra.mxu0 %v2080
    %2466 = vmatprep.subr.mxu0 0.0
    %2467 = vmatpush1.msra.mxu0 %v2079
    %2468 = vmatprep.subr.mxu0 0.0
    %2469 = vmatpush1.msra.mxu0 %v2078
    %2470 = vmatprep.subr.mxu0 0.0
    %2471 = vmatpush1.msra.mxu0 %v2077
    %2472 = vmatprep.subr.mxu0 0.0
    %2473 = vmatpush1.msra.mxu0 %v2076
    %2474 = vmatprep.subr.mxu0 0.0
    %2475 = vmatpush1.msra.mxu0 %v2075
    %2476 = vmatprep.subr.mxu0 0.0
    %2477 = vmatpush1.msra.mxu0 %v2074
    %2478 = vmatprep.subr.mxu0 0.0
    %2479 = vmatpush1.msra.mxu0 %v2073
    %2480 = vmatprep.subr.mxu0 0.0
    %2481 = vmatpush1.msra.mxu0 %v2072
    %2482 = vmatprep.subr.mxu0 0.0
    %2483 = vmatpush1.msra.mxu0 %v2071
    %2484 = vmatprep.subr.mxu0 0.0
    %2485 = vmatpush1.msra.mxu0 %v2070
    %2486 = vmatprep.subr.mxu0 0.0
    %2487 = vmatpush2.msra.mxu0 0.0
    %2488 = vmatprep.subr.mxu0 0.0
    %2489 = vmatpush2.msra.mxu0 0.0
    %2490 = vmatprep.subr.mxu0 0.0
    %2491 = vmatpush2.msra.mxu0 0.0
    %2492 = vmatprep.subr.mxu0 0.0
    %2493 = vmatpush2.msra.mxu0 0.0
    %2494 = vmatprep.subr.mxu0 0.0
    %2495 = vmatpush2.msra.mxu0 0.0
    %2496 = vmatprep.subr.mxu0 0.0
    %2497 = vmatpush2.msra.mxu0 0.0
    %2498 = vmatprep.subr.mxu0 0.0
    %2499 = vmatpush2.msra.mxu0 0.0
    %2500 = vmatprep.subr.mxu0 0.0
    %2501 = vmatpush2.msra.mxu0 0.0
    %2502 = vmatprep.subr.mxu0 0.0
    %2503 = vmatpush2.msra.mxu0 0.0
    %2504 = vmatprep.subr.mxu0 0.0
    %2505 = vmatpush2.msra.mxu0 0.0
    %2506 = vmatprep.subr.mxu0 0.0
    %2507 = vmatpush2.msra.mxu0 0.0
    %2508 = vmatprep.subr.mxu0 0.0
    %2509 = vmatpush2.msra.mxu0 0.0
    %2510 = vmatprep.subr.mxu0 0.0
    %2511 = vmatpush2.msra.mxu0 0.0
    %2512 = vmatprep.subr.mxu0 0.0
    %2513 = vmatpush2.msra.mxu0 0.0
    %2514 = vmatprep.subr.mxu0 0.0
    %2515 = vmatpush2.msra.mxu0 0.0
    %2516 = vmatprep.subr.mxu0 0.0
    %2517 = vmatpush2.msra.mxu0 0.0
    %2518 = vmatprep.mubr.f32.mxu0 0.0
    %2519 = vmatmul.mubr.f32.gmra.mxu0 %v2452
    %v2520 = vpop.f32.mrf.mxu0
    %v2521 = vadd.f32 %v2087, %v2520
    %v2522 = vpop.f32.mrf.mxu0
    %2523 = vdwg.mxu0
    %v2524 = vxor.u32 %v2521, 2147483648
    %v2525 = vmul.f32 %v2524, 1.442695
    %v2526 = vpow.pop %v2525
    %v2527 = vadd.f32 %v2526, 1.0
    %v2528 = vrcp.pop %v2527
    %v2529 = vmul.f32 1.0, %v2528
    %v2530 = vtanh.pop %v2521
    %2532 = vrot.lane.b32.xlu0 %v2441, 32
    %v2533 = vpop.permute.xlu0 %2532
    %v2535 = vmul.f32 %v2529, %v2533
    %2537 = vrot.lane.b32.xlu0 %v2530, 64
    %v2538 = vpop.permute.xlu0 %2537
    %v2540 = vmul.f32 %v2529, %v2538
    %2542 = vrot.lane.b32.xlu0 %v2540, 32
    %v2543 = vpop.permute.xlu0 %2542
    %v2545 = vadd.f32 %v2535, %v2543
    %v2546 = vtanh.pop %v2545
    %2548 = vrot.lane.b32.xlu0 %v2546, 64
    %v2549 = vpop.permute.xlu0 %2548
    %v2551 = vmul.f32 %v2529, %v2549
    %vm2552 = vcmp.gt.f32.partialorder %v2445, 0.5
    %2554 = vrot.lane.b32.xlu0 %v2551, 32
    %v2555 = vpop.permute.xlu0 %2554
    %v2557 = vsel %vm2552, %v2555, %v2436
    %2559 = vrot.lane.b32.xlu0 %v2545, 96
    %v2560 = vpop.permute.xlu0 %2559
    %v2562 = vsel %vm2552, %v2560, %v2441
    %s2563 = scalar_lea.vmem [#allocation15], 24
    %2564 = vst.msk [vmem:[%s2563] sm:$0xff] %vm135, %v2557
    %v2565 = vld [vmem:[%s737] sm:$0xff]
    %v2566 = vld [vmem:[%s618] sm:$0xff]
    %2568 = vrot.lane.b32.xlu0 %v2557, 64
    %v2569 = vpop.permute.xlu0 %2568
    %v2571 = vsel %vm137, %v2565, %v2569
    %v2573 = vsel %vm2092, %v2571, 0
    %2575 = vmatprep.subr.mxu0 0.0
    %2576 = vmatpush1.msra.mxu0 0.0
    %2577 = vmatprep.subr.mxu0 0.0
    %2578 = vmatpush1.msra.mxu0 0.0
    %2579 = vmatprep.subr.mxu0 0.0
    %2580 = vmatpush1.msra.mxu0 0.0
    %2581 = vmatprep.subr.mxu0 0.0
    %2582 = vmatpush1.msra.mxu0 0.0
    %2583 = vmatprep.subr.mxu0 0.0
    %2584 = vmatpush1.msra.mxu0 %v2081
    %2585 = vmatprep.subr.mxu0 0.0
    %2586 = vmatpush1.msra.mxu0 %v2080
    %2587 = vmatprep.subr.mxu0 0.0
    %2588 = vmatpush1.msra.mxu0 %v2079
    %2589 = vmatprep.subr.mxu0 0.0
    %2590 = vmatpush1.msra.mxu0 %v2078
    %2591 = vmatprep.subr.mxu0 0.0
    %2592 = vmatpush1.msra.mxu0 %v2077
    %2593 = vmatprep.subr.mxu0 0.0
    %2594 = vmatpush1.msra.mxu0 %v2076
    %2595 = vmatprep.subr.mxu0 0.0
    %2596 = vmatpush1.msra.mxu0 %v2075
    %2597 = vmatprep.subr.mxu0 0.0
    %2598 = vmatpush1.msra.mxu0 %v2074
    %2599 = vmatprep.subr.mxu0 0.0
    %2600 = vmatpush1.msra.mxu0 %v2073
    %2601 = vmatprep.subr.mxu0 0.0
    %2602 = vmatpush1.msra.mxu0 %v2072
    %2603 = vmatprep.subr.mxu0 0.0
    %2604 = vmatpush1.msra.mxu0 %v2071
    %2605 = vmatprep.subr.mxu0 0.0
    %2606 = vmatpush1.msra.mxu0 %v2070
    %2607 = vmatprep.subr.mxu0 0.0
    %2608 = vmatpush2.msra.mxu0 0.0
    %2609 = vmatprep.subr.mxu0 0.0
    %2610 = vmatpush2.msra.mxu0 0.0
    %2611 = vmatprep.subr.mxu0 0.0
    %2612 = vmatpush2.msra.mxu0 0.0
    %2613 = vmatprep.subr.mxu0 0.0
    %2614 = vmatpush2.msra.mxu0 0.0
    %2615 = vmatprep.subr.mxu0 0.0
    %2616 = vmatpush2.msra.mxu0 0.0
    %2617 = vmatprep.subr.mxu0 0.0
    %2618 = vmatpush2.msra.mxu0 0.0
    %2619 = vmatprep.subr.mxu0 0.0
    %2620 = vmatpush2.msra.mxu0 0.0
    %2621 = vmatprep.subr.mxu0 0.0
    %2622 = vmatpush2.msra.mxu0 0.0
    %2623 = vmatprep.subr.mxu0 0.0
    %2624 = vmatpush2.msra.mxu0 0.0
    %2625 = vmatprep.subr.mxu0 0.0
    %2626 = vmatpush2.msra.mxu0 0.0
    %2627 = vmatprep.subr.mxu0 0.0
    %2628 = vmatpush2.msra.mxu0 0.0
    %2629 = vmatprep.subr.mxu0 0.0
    %2630 = vmatpush2.msra.mxu0 0.0
    %2631 = vmatprep.subr.mxu0 0.0
    %2632 = vmatpush2.msra.mxu0 0.0
    %2633 = vmatprep.subr.mxu0 0.0
    %2634 = vmatpush2.msra.mxu0 0.0
    %2635 = vmatprep.subr.mxu0 0.0
    %2636 = vmatpush2.msra.mxu0 0.0
    %2637 = vmatprep.subr.mxu0 0.0
    %2638 = vmatpush2.msra.mxu0 0.0
    %2639 = vmatprep.mubr.f32.mxu0 0.0
    %2640 = vmatmul.mubr.f32.gmra.mxu0 %v2573
    %v2641 = vpop.f32.mrf.mxu0
    %v2642 = vadd.f32 %v2087, %v2641
    %v2643 = vpop.f32.mrf.mxu0
    %2644 = vdwg.mxu0
    %v2645 = vxor.u32 %v2642, 2147483648
    %v2646 = vmul.f32 %v2645, 1.442695
    %v2647 = vpow.pop %v2646
    %v2648 = vadd.f32 %v2647, 1.0
    %v2649 = vrcp.pop %v2648
    %v2650 = vmul.f32 1.0, %v2649
    %v2651 = vtanh.pop %v2642
    %2653 = vrot.lane.b32.xlu0 %v2562, 32
    %v2654 = vpop.permute.xlu0 %2653
    %v2656 = vmul.f32 %v2650, %v2654
    %2658 = vrot.lane.b32.xlu0 %v2651, 64
    %v2659 = vpop.permute.xlu0 %2658
    %v2661 = vmul.f32 %v2650, %v2659
    %2663 = vrot.lane.b32.xlu0 %v2661, 32
    %v2664 = vpop.permute.xlu0 %2663
    %v2666 = vadd.f32 %v2656, %v2664
    %v2667 = vtanh.pop %v2666
    %2669 = vrot.lane.b32.xlu0 %v2667, 64
    %v2670 = vpop.permute.xlu0 %2669
    %v2672 = vmul.f32 %v2650, %v2670
    %vm2673 = vcmp.gt.f32.partialorder %v2566, 0.5
    %2675 = vrot.lane.b32.xlu0 %v2672, 32
    %v2676 = vpop.permute.xlu0 %2675
    %v2678 = vsel %vm2673, %v2676, %v2557
    %2680 = vrot.lane.b32.xlu0 %v2666, 96
    %v2681 = vpop.permute.xlu0 %2680
    %v2683 = vsel %vm2673, %v2681, %v2562
    %s2684 = scalar_lea.vmem [#allocation15], 32
    %2685 = vst.msk [vmem:[%s2684] sm:$0xff] %vm135, %v2678
    %v2686 = vld [vmem:[%s860] sm:$0xff]
    %v2687 = vld [vmem:[%s741] sm:$0xff]
    %2689 = vrot.lane.b32.xlu0 %v2678, 64
    %v2690 = vpop.permute.xlu0 %2689
    %v2692 = vsel %vm137, %v2686, %v2690
    %v2694 = vsel %vm2092, %v2692, 0
    %2696 = vmatprep.subr.mxu0 0.0
    %2697 = vmatpush1.msra.mxu0 0.0
    %2698 = vmatprep.subr.mxu0 0.0
    %2699 = vmatpush1.msra.mxu0 0.0
    %2700 = vmatprep.subr.mxu0 0.0
    %2701 = vmatpush1.msra.mxu0 0.0
    %2702 = vmatprep.subr.mxu0 0.0
    %2703 = vmatpush1.msra.mxu0 0.0
    %2704 = vmatprep.subr.mxu0 0.0
    %2705 = vmatpush1.msra.mxu0 %v2081
    %2706 = vmatprep.subr.mxu0 0.0
    %2707 = vmatpush1.msra.mxu0 %v2080
    %2708 = vmatprep.subr.mxu0 0.0
    %2709 = vmatpush1.msra.mxu0 %v2079
    %2710 = vmatprep.subr.mxu0 0.0
    %2711 = vmatpush1.msra.mxu0 %v2078
    %2712 = vmatprep.subr.mxu0 0.0
    %2713 = vmatpush1.msra.mxu0 %v2077
    %2714 = vmatprep.subr.mxu0 0.0
    %2715 = vmatpush1.msra.mxu0 %v2076
    %2716 = vmatprep.subr.mxu0 0.0
    %2717 = vmatpush1.msra.mxu0 %v2075
    %2718 = vmatprep.subr.mxu0 0.0
    %2719 = vmatpush1.msra.mxu0 %v2074
    %2720 = vmatprep.subr.mxu0 0.0
    %2721 = vmatpush1.msra.mxu0 %v2073
    %2722 = vmatprep.subr.mxu0 0.0
    %2723 = vmatpush1.msra.mxu0 %v2072
    %2724 = vmatprep.subr.mxu0 0.0
    %2725 = vmatpush1.msra.mxu0 %v2071
    %2726 = vmatprep.subr.mxu0 0.0
    %2727 = vmatpush1.msra.mxu0 %v2070
    %2728 = vmatprep.subr.mxu0 0.0
    %2729 = vmatpush2.msra.mxu0 0.0
    %2730 = vmatprep.subr.mxu0 0.0
    %2731 = vmatpush2.msra.mxu0 0.0
    %2732 = vmatprep.subr.mxu0 0.0
    %2733 = vmatpush2.msra.mxu0 0.0
    %2734 = vmatprep.subr.mxu0 0.0
    %2735 = vmatpush2.msra.mxu0 0.0
    %2736 = vmatprep.subr.mxu0 0.0
    %2737 = vmatpush2.msra.mxu0 0.0
    %2738 = vmatprep.subr.mxu0 0.0
    %2739 = vmatpush2.msra.mxu0 0.0
    %2740 = vmatprep.subr.mxu0 0.0
    %2741 = vmatpush2.msra.mxu0 0.0
    %2742 = vmatprep.subr.mxu0 0.0
    %2743 = vmatpush2.msra.mxu0 0.0
    %2744 = vmatprep.subr.mxu0 0.0
    %2745 = vmatpush2.msra.mxu0 0.0
    %2746 = vmatprep.subr.mxu0 0.0
    %2747 = vmatpush2.msra.mxu0 0.0
    %2748 = vmatprep.subr.mxu0 0.0
    %2749 = vmatpush2.msra.mxu0 0.0
    %2750 = vmatprep.subr.mxu0 0.0
    %2751 = vmatpush2.msra.mxu0 0.0
    %2752 = vmatprep.subr.mxu0 0.0
    %2753 = vmatpush2.msra.mxu0 0.0
    %2754 = vmatprep.subr.mxu0 0.0
    %2755 = vmatpush2.msra.mxu0 0.0
    %2756 = vmatprep.subr.mxu0 0.0
    %2757 = vmatpush2.msra.mxu0 0.0
    %2758 = vmatprep.subr.mxu0 0.0
    %2759 = vmatpush2.msra.mxu0 0.0
    %2760 = vmatprep.mubr.f32.mxu0 0.0
    %2761 = vmatmul.mubr.f32.gmra.mxu0 %v2694
    %v2762 = vpop.f32.mrf.mxu0
    %v2763 = vadd.f32 %v2087, %v2762
    %v2764 = vpop.f32.mrf.mxu0
    %2765 = vdwg.mxu0
    %v2766 = vxor.u32 %v2763, 2147483648
    %v2767 = vmul.f32 %v2766, 1.442695
    %v2768 = vpow.pop %v2767
    %v2769 = vadd.f32 %v2768, 1.0
    %v2770 = vrcp.pop %v2769
    %v2771 = vmul.f32 1.0, %v2770
    %v2772 = vtanh.pop %v2763
    %2774 = vrot.lane.b32.xlu0 %v2683, 32
    %v2775 = vpop.permute.xlu0 %2774
    %v2777 = vmul.f32 %v2771, %v2775
    %2779 = vrot.lane.b32.xlu0 %v2772, 64
    %v2780 = vpop.permute.xlu0 %2779
    %v2782 = vmul.f32 %v2771, %v2780
    %2784 = vrot.lane.b32.xlu0 %v2782, 32
    %v2785 = vpop.permute.xlu0 %2784
    %v2787 = vadd.f32 %v2777, %v2785
    %v2788 = vtanh.pop %v2787
    %2790 = vrot.lane.b32.xlu0 %v2788, 64
    %v2791 = vpop.permute.xlu0 %2790
    %v2793 = vmul.f32 %v2771, %v2791
    %vm2794 = vcmp.gt.f32.partialorder %v2687, 0.5
    %2796 = vrot.lane.b32.xlu0 %v2793, 32
    %v2797 = vpop.permute.xlu0 %2796
    %v2799 = vsel %vm2794, %v2797, %v2678
    %2801 = vrot.lane.b32.xlu0 %v2787, 96
    %v2802 = vpop.permute.xlu0 %2801
    %v2804 = vsel %vm2794, %v2802, %v2683
    %s2805 = scalar_lea.vmem [#allocation15], 40
    %2806 = vst.msk [vmem:[%s2805] sm:$0xff] %vm135, %v2799
    %v2807 = vld [vmem:[%s983] sm:$0xff]
    %v2808 = vld [vmem:[%s864] sm:$0xff]
    %2810 = vrot.lane.b32.xlu0 %v2799, 64
    %v2811 = vpop.permute.xlu0 %2810
    %v2813 = vsel %vm137, %v2807, %v2811
    %v2815 = vsel %vm2092, %v2813, 0
    %2817 = vmatprep.subr.mxu0 0.0
    %2818 = vmatpush1.msra.mxu0 0.0
    %2819 = vmatprep.subr.mxu0 0.0
    %2820 = vmatpush1.msra.mxu0 0.0
    %2821 = vmatprep.subr.mxu0 0.0
    %2822 = vmatpush1.msra.mxu0 0.0
    %2823 = vmatprep.subr.mxu0 0.0
    %2824 = vmatpush1.msra.mxu0 0.0
    %2825 = vmatprep.subr.mxu0 0.0
    %2826 = vmatpush1.msra.mxu0 %v2081
    %2827 = vmatprep.subr.mxu0 0.0
    %2828 = vmatpush1.msra.mxu0 %v2080
    %2829 = vmatprep.subr.mxu0 0.0
    %2830 = vmatpush1.msra.mxu0 %v2079
    %2831 = vmatprep.subr.mxu0 0.0
    %2832 = vmatpush1.msra.mxu0 %v2078
    %2833 = vmatprep.subr.mxu0 0.0
    %2834 = vmatpush1.msra.mxu0 %v2077
    %2835 = vmatprep.subr.mxu0 0.0
    %2836 = vmatpush1.msra.mxu0 %v2076
    %2837 = vmatprep.subr.mxu0 0.0
    %2838 = vmatpush1.msra.mxu0 %v2075
    %2839 = vmatprep.subr.mxu0 0.0
    %2840 = vmatpush1.msra.mxu0 %v2074
    %2841 = vmatprep.subr.mxu0 0.0
    %2842 = vmatpush1.msra.mxu0 %v2073
    %2843 = vmatprep.subr.mxu0 0.0
    %2844 = vmatpush1.msra.mxu0 %v2072
    %2845 = vmatprep.subr.mxu0 0.0
    %2846 = vmatpush1.msra.mxu0 %v2071
    %2847 = vmatprep.subr.mxu0 0.0
    %2848 = vmatpush1.msra.mxu0 %v2070
    %2849 = vmatprep.subr.mxu0 0.0
    %2850 = vmatpush2.msra.mxu0 0.0
    %2851 = vmatprep.subr.mxu0 0.0
    %2852 = vmatpush2.msra.mxu0 0.0
    %2853 = vmatprep.subr.mxu0 0.0
    %2854 = vmatpush2.msra.mxu0 0.0
    %2855 = vmatprep.subr.mxu0 0.0
    %2856 = vmatpush2.msra.mxu0 0.0
    %2857 = vmatprep.subr.mxu0 0.0
    %2858 = vmatpush2.msra.mxu0 0.0
    %2859 = vmatprep.subr.mxu0 0.0
    %2860 = vmatpush2.msra.mxu0 0.0
    %2861 = vmatprep.subr.mxu0 0.0
    %2862 = vmatpush2.msra.mxu0 0.0
    %2863 = vmatprep.subr.mxu0 0.0
    %2864 = vmatpush2.msra.mxu0 0.0
    %2865 = vmatprep.subr.mxu0 0.0
    %2866 = vmatpush2.msra.mxu0 0.0
    %2867 = vmatprep.subr.mxu0 0.0
    %2868 = vmatpush2.msra.mxu0 0.0
    %2869 = vmatprep.subr.mxu0 0.0
    %2870 = vmatpush2.msra.mxu0 0.0
    %2871 = vmatprep.subr.mxu0 0.0
    %2872 = vmatpush2.msra.mxu0 0.0
    %2873 = vmatprep.subr.mxu0 0.0
    %2874 = vmatpush2.msra.mxu0 0.0
    %2875 = vmatprep.subr.mxu0 0.0
    %2876 = vmatpush2.msra.mxu0 0.0
    %2877 = vmatprep.subr.mxu0 0.0
    %2878 = vmatpush2.msra.mxu0 0.0
    %2879 = vmatprep.subr.mxu0 0.0
    %2880 = vmatpush2.msra.mxu0 0.0
    %2881 = vmatprep.mubr.f32.mxu0 0.0
    %2882 = vmatmul.mubr.f32.gmra.mxu0 %v2815
    %v2883 = vpop.f32.mrf.mxu0
    %v2884 = vadd.f32 %v2087, %v2883
    %v2885 = vpop.f32.mrf.mxu0
    %2886 = vdwg.mxu0
    %v2887 = vxor.u32 %v2884, 2147483648
    %v2888 = vmul.f32 %v2887, 1.442695
    %v2889 = vpow.pop %v2888
    %v2890 = vadd.f32 %v2889, 1.0
    %v2891 = vrcp.pop %v2890
    %v2892 = vmul.f32 1.0, %v2891
    %v2893 = vtanh.pop %v2884
    %2895 = vrot.lane.b32.xlu0 %v2804, 32
    %v2896 = vpop.permute.xlu0 %2895
    %v2898 = vmul.f32 %v2892, %v2896
    %2900 = vrot.lane.b32.xlu0 %v2893, 64
    %v2901 = vpop.permute.xlu0 %2900
    %v2903 = vmul.f32 %v2892, %v2901
    %2905 = vrot.lane.b32.xlu0 %v2903, 32
    %v2906 = vpop.permute.xlu0 %2905
    %v2908 = vadd.f32 %v2898, %v2906
    %v2909 = vtanh.pop %v2908
    %2911 = vrot.lane.b32.xlu0 %v2909, 64
    %v2912 = vpop.permute.xlu0 %2911
    %v2914 = vmul.f32 %v2892, %v2912
    %vm2915 = vcmp.gt.f32.partialorder %v2808, 0.5
    %2917 = vrot.lane.b32.xlu0 %v2914, 32
    %v2918 = vpop.permute.xlu0 %2917
    %v2920 = vsel %vm2915, %v2918, %v2799
    %2922 = vrot.lane.b32.xlu0 %v2908, 96
    %v2923 = vpop.permute.xlu0 %2922
    %v2925 = vsel %vm2915, %v2923, %v2804
    %s2926 = scalar_lea.vmem [#allocation15], 48
    %2927 = vst.msk [vmem:[%s2926] sm:$0xff] %vm135, %v2920
    %v2928 = vld [vmem:[%s1101] sm:$0xff]
    %v2929 = vld [vmem:[%s987] sm:$0xff]
    %2931 = vrot.lane.b32.xlu0 %v2920, 64
    %v2932 = vpop.permute.xlu0 %2931
    %v2934 = vsel %vm137, %v2928, %v2932
    %v2936 = vsel %vm2092, %v2934, 0
    %2938 = vmatprep.subr.mxu0 0.0
    %2939 = vmatpush1.msra.mxu0 0.0
    %2940 = vmatprep.subr.mxu0 0.0
    %2941 = vmatpush1.msra.mxu0 0.0
    %2942 = vmatprep.subr.mxu0 0.0
    %2943 = vmatpush1.msra.mxu0 0.0
    %2944 = vmatprep.subr.mxu0 0.0
    %2945 = vmatpush1.msra.mxu0 0.0
    %2946 = vmatprep.subr.mxu0 0.0
    %2947 = vmatpush1.msra.mxu0 %v2081
    %2948 = vmatprep.subr.mxu0 0.0
    %2949 = vmatpush1.msra.mxu0 %v2080
    %2950 = vmatprep.subr.mxu0 0.0
    %2951 = vmatpush1.msra.mxu0 %v2079
    %2952 = vmatprep.subr.mxu0 0.0
    %2953 = vmatpush1.msra.mxu0 %v2078
    %2954 = vmatprep.subr.mxu0 0.0
    %2955 = vmatpush1.msra.mxu0 %v2077
    %2956 = vmatprep.subr.mxu0 0.0
    %2957 = vmatpush1.msra.mxu0 %v2076
    %2958 = vmatprep.subr.mxu0 0.0
    %2959 = vmatpush1.msra.mxu0 %v2075
    %2960 = vmatprep.subr.mxu0 0.0
    %2961 = vmatpush1.msra.mxu0 %v2074
    %2962 = vmatprep.subr.mxu0 0.0
    %2963 = vmatpush1.msra.mxu0 %v2073
    %2964 = vmatprep.subr.mxu0 0.0
    %2965 = vmatpush1.msra.mxu0 %v2072
    %2966 = vmatprep.subr.mxu0 0.0
    %2967 = vmatpush1.msra.mxu0 %v2071
    %2968 = vmatprep.subr.mxu0 0.0
    %2969 = vmatpush1.msra.mxu0 %v2070
    %2970 = vmatprep.subr.mxu0 0.0
    %2971 = vmatpush2.msra.mxu0 0.0
    %2972 = vmatprep.subr.mxu0 0.0
    %2973 = vmatpush2.msra.mxu0 0.0
    %2974 = vmatprep.subr.mxu0 0.0
    %2975 = vmatpush2.msra.mxu0 0.0
    %2976 = vmatprep.subr.mxu0 0.0
    %2977 = vmatpush2.msra.mxu0 0.0
    %2978 = vmatprep.subr.mxu0 0.0
    %2979 = vmatpush2.msra.mxu0 0.0
    %2980 = vmatprep.subr.mxu0 0.0
    %2981 = vmatpush2.msra.mxu0 0.0
    %2982 = vmatprep.subr.mxu0 0.0
    %2983 = vmatpush2.msra.mxu0 0.0
    %2984 = vmatprep.subr.mxu0 0.0
    %2985 = vmatpush2.msra.mxu0 0.0
    %2986 = vmatprep.subr.mxu0 0.0
    %2987 = vmatpush2.msra.mxu0 0.0
    %2988 = vmatprep.subr.mxu0 0.0
    %2989 = vmatpush2.msra.mxu0 0.0
    %2990 = vmatprep.subr.mxu0 0.0
    %2991 = vmatpush2.msra.mxu0 0.0
    %2992 = vmatprep.subr.mxu0 0.0
    %2993 = vmatpush2.msra.mxu0 0.0
    %2994 = vmatprep.subr.mxu0 0.0
    %2995 = vmatpush2.msra.mxu0 0.0
    %2996 = vmatprep.subr.mxu0 0.0
    %2997 = vmatpush2.msra.mxu0 0.0
    %2998 = vmatprep.subr.mxu0 0.0
    %2999 = vmatpush2.msra.mxu0 0.0
    %3000 = vmatprep.subr.mxu0 0.0
    %3001 = vmatpush2.msra.mxu0 0.0
    %3002 = vmatprep.mubr.f32.mxu0 0.0
    %3003 = vmatmul.mubr.f32.gmra.mxu0 %v2936
    %v3004 = vpop.f32.mrf.mxu0
    %v3005 = vadd.f32 %v2087, %v3004
    %v3006 = vpop.f32.mrf.mxu0
    %3007 = vdwg.mxu0
    %v3008 = vxor.u32 %v3005, 2147483648
    %v3009 = vmul.f32 %v3008, 1.442695
    %v3010 = vpow.pop %v3009
    %v3011 = vadd.f32 %v3010, 1.0
    %v3012 = vrcp.pop %v3011
    %v3013 = vmul.f32 1.0, %v3012
    %v3014 = vtanh.pop %v3005
    %3016 = vrot.lane.b32.xlu0 %v2925, 32
    %v3017 = vpop.permute.xlu0 %3016
    %v3019 = vmul.f32 %v3013, %v3017
    %3021 = vrot.lane.b32.xlu0 %v3014, 64
    %v3022 = vpop.permute.xlu0 %3021
    %v3024 = vmul.f32 %v3013, %v3022
    %3026 = vrot.lane.b32.xlu0 %v3024, 32
    %v3027 = vpop.permute.xlu0 %3026
    %v3029 = vadd.f32 %v3019, %v3027
    %v3030 = vtanh.pop %v3029
    %3032 = vrot.lane.b32.xlu0 %v3030, 64
    %v3033 = vpop.permute.xlu0 %3032
    %v3035 = vmul.f32 %v3013, %v3033
    %vm3036 = vcmp.gt.f32.partialorder %v2929, 0.5
    %3038 = vrot.lane.b32.xlu0 %v3035, 32
    %v3039 = vpop.permute.xlu0 %3038
    %v3041 = vsel %vm3036, %v3039, %v2920
    %s3042 = scalar_lea.vmem [#allocation15], 56
    %3043 = vst.msk [vmem:[%s3042] sm:$0xff] %vm135, %v3041
    %v3044 = vld [vmem:[#allocation13] sm:$0xff]
    %v3045 = vld [vmem:[#allocation13 + $0x8] sm:$0xff]
    %v3046 = vld [vmem:[#allocation13 + $0x10] sm:$0xff]
    %v3047 = vld [vmem:[#allocation13 + $0x18] sm:$0xff]
    %v3048 = vld [vmem:[#allocation13 + $0x20] sm:$0xff]
    %v3049 = vld [vmem:[#allocation13 + $0x28] sm:$0xff]
    %v3050 = vld [vmem:[#allocation13 + $0x30] sm:$0xff]
    %v3051 = vld [vmem:[#allocation13 + $0x38] sm:$0xff]
    %v3052 = vld [vmem:[#allocation13 + $0x40] sm:$0xff]
    %v3053 = vld [vmem:[#allocation13 + $0x48] sm:$0xff]
    %v3054 = vld [vmem:[#allocation13 + $0x50] sm:$0xff]
    %v3055 = vld [vmem:[#allocation13 + $0x58] sm:$0xff]
    %v3056 = vld [vmem:[%s9] sm:$0x1]
    %v3058 = vlaneseq
    %v3059 = vshrl.u32 %v3058, 7
    %v3060 = vsub.s32 0, %v3059
    %v3061 = vrot.slane %v3056, %v3060
    %v3063 = vld [vmem:[%s1101] sm:$0xff]
    %v3064 = vld [vmem:[%s987] sm:$0xff]
    %v3065 = vsel %vm137, %v3063, 0.0
    %v3067 = vsel %vm2092, %v3065, 0
    %3069 = vmatprep.subr.mxu0 0.0
    %3070 = vmatpush1.msra.mxu0 0.0
    %3071 = vmatprep.subr.mxu0 0.0
    %3072 = vmatpush1.msra.mxu0 0.0
    %3073 = vmatprep.subr.mxu0 0.0
    %3074 = vmatpush1.msra.mxu0 0.0
    %3075 = vmatprep.subr.mxu0 0.0
    %3076 = vmatpush1.msra.mxu0 0.0
    %3077 = vmatprep.subr.mxu0 0.0
    %3078 = vmatpush1.msra.mxu0 %v3055
    %3079 = vmatprep.subr.mxu0 0.0
    %3080 = vmatpush1.msra.mxu0 %v3054
    %3081 = vmatprep.subr.mxu0 0.0
    %3082 = vmatpush1.msra.mxu0 %v3053
    %3083 = vmatprep.subr.mxu0 0.0
    %3084 = vmatpush1.msra.mxu0 %v3052
    %3085 = vmatprep.subr.mxu0 0.0
    %3086 = vmatpush1.msra.mxu0 %v3051
    %3087 = vmatprep.subr.mxu0 0.0
    %3088 = vmatpush1.msra.mxu0 %v3050
    %3089 = vmatprep.subr.mxu0 0.0
    %3090 = vmatpush1.msra.mxu0 %v3049
    %3091 = vmatprep.subr.mxu0 0.0
    %3092 = vmatpush1.msra.mxu0 %v3048
    %3093 = vmatprep.subr.mxu0 0.0
    %3094 = vmatpush1.msra.mxu0 %v3047
    %3095 = vmatprep.subr.mxu0 0.0
    %3096 = vmatpush1.msra.mxu0 %v3046
    %3097 = vmatprep.subr.mxu0 0.0
    %3098 = vmatpush1.msra.mxu0 %v3045
    %3099 = vmatprep.subr.mxu0 0.0
    %3100 = vmatpush1.msra.mxu0 %v3044
    %3101 = vmatprep.subr.mxu0 0.0
    %3102 = vmatpush2.msra.mxu0 0.0
    %3103 = vmatprep.subr.mxu0 0.0
    %3104 = vmatpush2.msra.mxu0 0.0
    %3105 = vmatprep.subr.mxu0 0.0
    %3106 = vmatpush2.msra.mxu0 0.0
    %3107 = vmatprep.subr.mxu0 0.0
    %3108 = vmatpush2.msra.mxu0 0.0
    %3109 = vmatprep.subr.mxu0 0.0
    %3110 = vmatpush2.msra.mxu0 0.0
    %3111 = vmatprep.subr.mxu0 0.0
    %3112 = vmatpush2.msra.mxu0 0.0
    %3113 = vmatprep.subr.mxu0 0.0
    %3114 = vmatpush2.msra.mxu0 0.0
    %3115 = vmatprep.subr.mxu0 0.0
    %3116 = vmatpush2.msra.mxu0 0.0
    %3117 = vmatprep.subr.mxu0 0.0
    %3118 = vmatpush2.msra.mxu0 0.0
    %3119 = vmatprep.subr.mxu0 0.0
    %3120 = vmatpush2.msra.mxu0 0.0
    %3121 = vmatprep.subr.mxu0 0.0
    %3122 = vmatpush2.msra.mxu0 0.0
    %3123 = vmatprep.subr.mxu0 0.0
    %3124 = vmatpush2.msra.mxu0 0.0
    %3125 = vmatprep.subr.mxu0 0.0
    %3126 = vmatpush2.msra.mxu0 0.0
    %3127 = vmatprep.subr.mxu0 0.0
    %3128 = vmatpush2.msra.mxu0 0.0
    %3129 = vmatprep.subr.mxu0 0.0
    %3130 = vmatpush2.msra.mxu0 0.0
    %3131 = vmatprep.subr.mxu0 0.0
    %3132 = vmatpush2.msra.mxu0 0.0
    %3133 = vmatprep.mubr.f32.mxu0 0.0
    %3134 = vmatmul.mubr.f32.gmra.mxu0 %v3067
    %v3135 = vpop.f32.mrf.mxu0
    %v3136 = vadd.f32 %v3061, %v3135
    %v3137 = vpop.f32.mrf.mxu0
    %3138 = vdwg.mxu0
    %v3139 = vxor.u32 %v3136, 2147483648
    %v3140 = vmul.f32 %v3139, 1.442695
    %v3141 = vpow.pop %v3140
    %v3142 = vadd.f32 %v3141, 1.0
    %v3143 = vrcp.pop %v3142
    %v3144 = vmul.f32 1.0, %v3143
    %v3145 = vtanh.pop %v3136
    %v3146 = vmul.f32 %v3144, 0.0
    %3148 = vrot.lane.b32.xlu0 %v3145, 64
    %v3149 = vpop.permute.xlu0 %3148
    %v3151 = vmul.f32 %v3144, %v3149
    %3153 = vrot.lane.b32.xlu0 %v3151, 32
    %v3154 = vpop.permute.xlu0 %3153
    %v3156 = vadd.f32 %v3146, %v3154
    %v3157 = vtanh.pop %v3156
    %3159 = vrot.lane.b32.xlu0 %v3157, 64
    %v3160 = vpop.permute.xlu0 %3159
    %v3162 = vmul.f32 %v3144, %v3160
    %vm3163 = vcmp.gt.f32.partialorder %v3064, 0.5
    %3165 = vrot.lane.b32.xlu0 %v3162, 32
    %v3166 = vpop.permute.xlu0 %3165
    %v3168 = vsel %vm3163, %v3166, 0.0
    %3170 = vrot.lane.b32.xlu0 %v3156, 96
    %v3171 = vpop.permute.xlu0 %3170
    %v3173 = vsel %vm3163, %v3171, 0.0
    %3175 = vrot.lane.b32.xlu0 %v3168, 32
    %v3176 = vpop.permute.xlu0 %3175
    %3178 = vst.msk [vmem:[%s3042] sm:$0xff] %vm1233, %v3176
    %v3179 = vld [vmem:[%s983] sm:$0xff]
    %v3180 = vld [vmem:[%s864] sm:$0xff]
    %3181 = vrot.lane.b32.xlu0 %v3168, 64
    %v3182 = vpop.permute.xlu0 %3181
    %v3184 = vsel %vm137, %v3179, %v3182
    %v3186 = vsel %vm2092, %v3184, 0
    %3188 = vmatprep.subr.mxu0 0.0
    %3189 = vmatpush1.msra.mxu0 0.0
    %3190 = vmatprep.subr.mxu0 0.0
    %3191 = vmatpush1.msra.mxu0 0.0
    %3192 = vmatprep.subr.mxu0 0.0
    %3193 = vmatpush1.msra.mxu0 0.0
    %3194 = vmatprep.subr.mxu0 0.0
    %3195 = vmatpush1.msra.mxu0 0.0
    %3196 = vmatprep.subr.mxu0 0.0
    %3197 = vmatpush1.msra.mxu0 %v3055
    %3198 = vmatprep.subr.mxu0 0.0
    %3199 = vmatpush1.msra.mxu0 %v3054
    %3200 = vmatprep.subr.mxu0 0.0
    %3201 = vmatpush1.msra.mxu0 %v3053
    %3202 = vmatprep.subr.mxu0 0.0
    %3203 = vmatpush1.msra.mxu0 %v3052
    %3204 = vmatprep.subr.mxu0 0.0
    %3205 = vmatpush1.msra.mxu0 %v3051
    %3206 = vmatprep.subr.mxu0 0.0
    %3207 = vmatpush1.msra.mxu0 %v3050
    %3208 = vmatprep.subr.mxu0 0.0
    %3209 = vmatpush1.msra.mxu0 %v3049
    %3210 = vmatprep.subr.mxu0 0.0
    %3211 = vmatpush1.msra.mxu0 %v3048
    %3212 = vmatprep.subr.mxu0 0.0
    %3213 = vmatpush1.msra.mxu0 %v3047
    %3214 = vmatprep.subr.mxu0 0.0
    %3215 = vmatpush1.msra.mxu0 %v3046
    %3216 = vmatprep.subr.mxu0 0.0
    %3217 = vmatpush1.msra.mxu0 %v3045
    %3218 = vmatprep.subr.mxu0 0.0
    %3219 = vmatpush1.msra.mxu0 %v3044
    %3220 = vmatprep.subr.mxu0 0.0
    %3221 = vmatpush2.msra.mxu0 0.0
    %3222 = vmatprep.subr.mxu0 0.0
    %3223 = vmatpush2.msra.mxu0 0.0
    %3224 = vmatprep.subr.mxu0 0.0
    %3225 = vmatpush2.msra.mxu0 0.0
    %3226 = vmatprep.subr.mxu0 0.0
    %3227 = vmatpush2.msra.mxu0 0.0
    %3228 = vmatprep.subr.mxu0 0.0
    %3229 = vmatpush2.msra.mxu0 0.0
    %3230 = vmatprep.subr.mxu0 0.0
    %3231 = vmatpush2.msra.mxu0 0.0
    %3232 = vmatprep.subr.mxu0 0.0
    %3233 = vmatpush2.msra.mxu0 0.0
    %3234 = vmatprep.subr.mxu0 0.0
    %3235 = vmatpush2.msra.mxu0 0.0
    %3236 = vmatprep.subr.mxu0 0.0
    %3237 = vmatpush2.msra.mxu0 0.0
    %3238 = vmatprep.subr.mxu0 0.0
    %3239 = vmatpush2.msra.mxu0 0.0
    %3240 = vmatprep.subr.mxu0 0.0
    %3241 = vmatpush2.msra.mxu0 0.0
    %3242 = vmatprep.subr.mxu0 0.0
    %3243 = vmatpush2.msra.mxu0 0.0
    %3244 = vmatprep.subr.mxu0 0.0
    %3245 = vmatpush2.msra.mxu0 0.0
    %3246 = vmatprep.subr.mxu0 0.0
    %3247 = vmatpush2.msra.mxu0 0.0
    %3248 = vmatprep.subr.mxu0 0.0
    %3249 = vmatpush2.msra.mxu0 0.0
    %3250 = vmatprep.subr.mxu0 0.0
    %3251 = vmatpush2.msra.mxu0 0.0
    %3252 = vmatprep.mubr.f32.mxu0 0.0
    %3253 = vmatmul.mubr.f32.gmra.mxu0 %v3186
    %v3254 = vpop.f32.mrf.mxu0
    %v3255 = vadd.f32 %v3061, %v3254
    %v3256 = vpop.f32.mrf.mxu0
    %3257 = vdwg.mxu0
    %v3258 = vxor.u32 %v3255, 2147483648
    %v3259 = vmul.f32 %v3258, 1.442695
    %v3260 = vpow.pop %v3259
    %v3261 = vadd.f32 %v3260, 1.0
    %v3262 = vrcp.pop %v3261
    %v3263 = vmul.f32 1.0, %v3262
    %v3264 = vtanh.pop %v3255
    %3266 = vrot.lane.b32.xlu0 %v3173, 32
    %v3267 = vpop.permute.xlu0 %3266
    %v3269 = vmul.f32 %v3263, %v3267
    %3271 = vrot.lane.b32.xlu0 %v3264, 64
    %v3272 = vpop.permute.xlu0 %3271
    %v3274 = vmul.f32 %v3263, %v3272
    %3276 = vrot.lane.b32.xlu0 %v3274, 32
    %v3277 = vpop.permute.xlu0 %3276
    %v3279 = vadd.f32 %v3269, %v3277
    %v3280 = vtanh.pop %v3279
    %3282 = vrot.lane.b32.xlu0 %v3280, 64
    %v3283 = vpop.permute.xlu0 %3282
    %v3285 = vmul.f32 %v3263, %v3283
    %vm3286 = vcmp.gt.f32.partialorder %v3180, 0.5
    %3288 = vrot.lane.b32.xlu0 %v3285, 32
    %v3289 = vpop.permute.xlu0 %3288
    %v3291 = vsel %vm3286, %v3289, %v3168
    %3293 = vrot.lane.b32.xlu0 %v3279, 96
    %v3294 = vpop.permute.xlu0 %3293
    %v3296 = vsel %vm3286, %v3294, %v3173
    %3298 = vrot.lane.b32.xlu0 %v3291, 32
    %v3299 = vpop.permute.xlu0 %3298
    %3301 = vst.msk [vmem:[%s2926] sm:$0xff] %vm1233, %v3299
    %v3302 = vld [vmem:[%s860] sm:$0xff]
    %v3303 = vld [vmem:[%s741] sm:$0xff]
    %3304 = vrot.lane.b32.xlu0 %v3291, 64
    %v3305 = vpop.permute.xlu0 %3304
    %v3307 = vsel %vm137, %v3302, %v3305
    %v3309 = vsel %vm2092, %v3307, 0
    %3311 = vmatprep.subr.mxu0 0.0
    %3312 = vmatpush1.msra.mxu0 0.0
    %3313 = vmatprep.subr.mxu0 0.0
    %3314 = vmatpush1.msra.mxu0 0.0
    %3315 = vmatprep.subr.mxu0 0.0
    %3316 = vmatpush1.msra.mxu0 0.0
    %3317 = vmatprep.subr.mxu0 0.0
    %3318 = vmatpush1.msra.mxu0 0.0
    %3319 = vmatprep.subr.mxu0 0.0
    %3320 = vmatpush1.msra.mxu0 %v3055
    %3321 = vmatprep.subr.mxu0 0.0
    %3322 = vmatpush1.msra.mxu0 %v3054
    %3323 = vmatprep.subr.mxu0 0.0
    %3324 = vmatpush1.msra.mxu0 %v3053
    %3325 = vmatprep.subr.mxu0 0.0
    %3326 = vmatpush1.msra.mxu0 %v3052
    %3327 = vmatprep.subr.mxu0 0.0
    %3328 = vmatpush1.msra.mxu0 %v3051
    %3329 = vmatprep.subr.mxu0 0.0
    %3330 = vmatpush1.msra.mxu0 %v3050
    %3331 = vmatprep.subr.mxu0 0.0
    %3332 = vmatpush1.msra.mxu0 %v3049
    %3333 = vmatprep.subr.mxu0 0.0
    %3334 = vmatpush1.msra.mxu0 %v3048
    %3335 = vmatprep.subr.mxu0 0.0
    %3336 = vmatpush1.msra.mxu0 %v3047
    %3337 = vmatprep.subr.mxu0 0.0
    %3338 = vmatpush1.msra.mxu0 %v3046
    %3339 = vmatprep.subr.mxu0 0.0
    %3340 = vmatpush1.msra.mxu0 %v3045
    %3341 = vmatprep.subr.mxu0 0.0
    %3342 = vmatpush1.msra.mxu0 %v3044
    %3343 = vmatprep.subr.mxu0 0.0
    %3344 = vmatpush2.msra.mxu0 0.0
    %3345 = vmatprep.subr.mxu0 0.0
    %3346 = vmatpush2.msra.mxu0 0.0
    %3347 = vmatprep.subr.mxu0 0.0
    %3348 = vmatpush2.msra.mxu0 0.0
    %3349 = vmatprep.subr.mxu0 0.0
    %3350 = vmatpush2.msra.mxu0 0.0
    %3351 = vmatprep.subr.mxu0 0.0
    %3352 = vmatpush2.msra.mxu0 0.0
    %3353 = vmatprep.subr.mxu0 0.0
    %3354 = vmatpush2.msra.mxu0 0.0
    %3355 = vmatprep.subr.mxu0 0.0
    %3356 = vmatpush2.msra.mxu0 0.0
    %3357 = vmatprep.subr.mxu0 0.0
    %3358 = vmatpush2.msra.mxu0 0.0
    %3359 = vmatprep.subr.mxu0 0.0
    %3360 = vmatpush2.msra.mxu0 0.0
    %3361 = vmatprep.subr.mxu0 0.0
    %3362 = vmatpush2.msra.mxu0 0.0
    %3363 = vmatprep.subr.mxu0 0.0
    %3364 = vmatpush2.msra.mxu0 0.0
    %3365 = vmatprep.subr.mxu0 0.0
    %3366 = vmatpush2.msra.mxu0 0.0
    %3367 = vmatprep.subr.mxu0 0.0
    %3368 = vmatpush2.msra.mxu0 0.0
    %3369 = vmatprep.subr.mxu0 0.0
    %3370 = vmatpush2.msra.mxu0 0.0
    %3371 = vmatprep.subr.mxu0 0.0
    %3372 = vmatpush2.msra.mxu0 0.0
    %3373 = vmatprep.subr.mxu0 0.0
    %3374 = vmatpush2.msra.mxu0 0.0
    %3375 = vmatprep.mubr.f32.mxu0 0.0
    %3376 = vmatmul.mubr.f32.gmra.mxu0 %v3309
    %v3377 = vpop.f32.mrf.mxu0
    %v3378 = vadd.f32 %v3061, %v3377
    %v3379 = vpop.f32.mrf.mxu0
    %3380 = vdwg.mxu0
    %v3381 = vxor.u32 %v3378, 2147483648
    %v3382 = vmul.f32 %v3381, 1.442695
    %v3383 = vpow.pop %v3382
    %v3384 = vadd.f32 %v3383, 1.0
    %v3385 = vrcp.pop %v3384
    %v3386 = vmul.f32 1.0, %v3385
    %v3387 = vtanh.pop %v3378
    %3389 = vrot.lane.b32.xlu0 %v3296, 32
    %v3390 = vpop.permute.xlu0 %3389
    %v3392 = vmul.f32 %v3386, %v3390
    %3394 = vrot.lane.b32.xlu0 %v3387, 64
    %v3395 = vpop.permute.xlu0 %3394
    %v3397 = vmul.f32 %v3386, %v3395
    %3399 = vrot.lane.b32.xlu0 %v3397, 32
    %v3400 = vpop.permute.xlu0 %3399
    %v3402 = vadd.f32 %v3392, %v3400
    %v3403 = vtanh.pop %v3402
    %3405 = vrot.lane.b32.xlu0 %v3403, 64
    %v3406 = vpop.permute.xlu0 %3405
    %v3408 = vmul.f32 %v3386, %v3406
    %vm3409 = vcmp.gt.f32.partialorder %v3303, 0.5
    %3411 = vrot.lane.b32.xlu0 %v3408, 32
    %v3412 = vpop.permute.xlu0 %3411
    %v3414 = vsel %vm3409, %v3412, %v3291
    %3416 = vrot.lane.b32.xlu0 %v3402, 96
    %v3417 = vpop.permute.xlu0 %3416
    %v3419 = vsel %vm3409, %v3417, %v3296
    %3421 = vrot.lane.b32.xlu0 %v3414, 32
    %v3422 = vpop.permute.xlu0 %3421
    %3424 = vst.msk [vmem:[%s2805] sm:$0xff] %vm1233, %v3422
    %v3425 = vld [vmem:[%s737] sm:$0xff]
    %v3426 = vld [vmem:[%s618] sm:$0xff]
    %3427 = vrot.lane.b32.xlu0 %v3414, 64
    %v3428 = vpop.permute.xlu0 %3427
    %v3430 = vsel %vm137, %v3425, %v3428
    %v3432 = vsel %vm2092, %v3430, 0
    %3434 = vmatprep.subr.mxu0 0.0
    %3435 = vmatpush1.msra.mxu0 0.0
    %3436 = vmatprep.subr.mxu0 0.0
    %3437 = vmatpush1.msra.mxu0 0.0
    %3438 = vmatprep.subr.mxu0 0.0
    %3439 = vmatpush1.msra.mxu0 0.0
    %3440 = vmatprep.subr.mxu0 0.0
    %3441 = vmatpush1.msra.mxu0 0.0
    %3442 = vmatprep.subr.mxu0 0.0
    %3443 = vmatpush1.msra.mxu0 %v3055
    %3444 = vmatprep.subr.mxu0 0.0
    %3445 = vmatpush1.msra.mxu0 %v3054
    %3446 = vmatprep.subr.mxu0 0.0
    %3447 = vmatpush1.msra.mxu0 %v3053
    %3448 = vmatprep.subr.mxu0 0.0
    %3449 = vmatpush1.msra.mxu0 %v3052
    %3450 = vmatprep.subr.mxu0 0.0
    %3451 = vmatpush1.msra.mxu0 %v3051
    %3452 = vmatprep.subr.mxu0 0.0
    %3453 = vmatpush1.msra.mxu0 %v3050
    %3454 = vmatprep.subr.mxu0 0.0
    %3455 = vmatpush1.msra.mxu0 %v3049
    %3456 = vmatprep.subr.mxu0 0.0
    %3457 = vmatpush1.msra.mxu0 %v3048
    %3458 = vmatprep.subr.mxu0 0.0
    %3459 = vmatpush1.msra.mxu0 %v3047
    %3460 = vmatprep.subr.mxu0 0.0
    %3461 = vmatpush1.msra.mxu0 %v3046
    %3462 = vmatprep.subr.mxu0 0.0
    %3463 = vmatpush1.msra.mxu0 %v3045
    %3464 = vmatprep.subr.mxu0 0.0
    %3465 = vmatpush1.msra.mxu0 %v3044
    %3466 = vmatprep.subr.mxu0 0.0
    %3467 = vmatpush2.msra.mxu0 0.0
    %3468 = vmatprep.subr.mxu0 0.0
    %3469 = vmatpush2.msra.mxu0 0.0
    %3470 = vmatprep.subr.mxu0 0.0
    %3471 = vmatpush2.msra.mxu0 0.0
    %3472 = vmatprep.subr.mxu0 0.0
    %3473 = vmatpush2.msra.mxu0 0.0
    %3474 = vmatprep.subr.mxu0 0.0
    %3475 = vmatpush2.msra.mxu0 0.0
    %3476 = vmatprep.subr.mxu0 0.0
    %3477 = vmatpush2.msra.mxu0 0.0
    %3478 = vmatprep.subr.mxu0 0.0
    %3479 = vmatpush2.msra.mxu0 0.0
    %3480 = vmatprep.subr.mxu0 0.0
    %3481 = vmatpush2.msra.mxu0 0.0
    %3482 = vmatprep.subr.mxu0 0.0
    %3483 = vmatpush2.msra.mxu0 0.0
    %3484 = vmatprep.subr.mxu0 0.0
    %3485 = vmatpush2.msra.mxu0 0.0
    %3486 = vmatprep.subr.mxu0 0.0
    %3487 = vmatpush2.msra.mxu0 0.0
    %3488 = vmatprep.subr.mxu0 0.0
    %3489 = vmatpush2.msra.mxu0 0.0
    %3490 = vmatprep.subr.mxu0 0.0
    %3491 = vmatpush2.msra.mxu0 0.0
    %3492 = vmatprep.subr.mxu0 0.0
    %3493 = vmatpush2.msra.mxu0 0.0
    %3494 = vmatprep.subr.mxu0 0.0
    %3495 = vmatpush2.msra.mxu0 0.0
    %3496 = vmatprep.subr.mxu0 0.0
    %3497 = vmatpush2.msra.mxu0 0.0
    %3498 = vmatprep.mubr.f32.mxu0 0.0
    %3499 = vmatmul.mubr.f32.gmra.mxu0 %v3432
    %v3500 = vpop.f32.mrf.mxu0
    %v3501 = vadd.f32 %v3061, %v3500
    %v3502 = vpop.f32.mrf.mxu0
    %3503 = vdwg.mxu0
    %v3504 = vxor.u32 %v3501, 2147483648
    %v3505 = vmul.f32 %v3504, 1.442695
    %v3506 = vpow.pop %v3505
    %v3507 = vadd.f32 %v3506, 1.0
    %v3508 = vrcp.pop %v3507
    %v3509 = vmul.f32 1.0, %v3508
    %v3510 = vtanh.pop %v3501
    %3512 = vrot.lane.b32.xlu0 %v3419, 32
    %v3513 = vpop.permute.xlu0 %3512
    %v3515 = vmul.f32 %v3509, %v3513
    %3517 = vrot.lane.b32.xlu0 %v3510, 64
    %v3518 = vpop.permute.xlu0 %3517
    %v3520 = vmul.f32 %v3509, %v3518
    %3522 = vrot.lane.b32.xlu0 %v3520, 32
    %v3523 = vpop.permute.xlu0 %3522
    %v3525 = vadd.f32 %v3515, %v3523
    %v3526 = vtanh.pop %v3525
    %3528 = vrot.lane.b32.xlu0 %v3526, 64
    %v3529 = vpop.permute.xlu0 %3528
    %v3531 = vmul.f32 %v3509, %v3529
    %vm3532 = vcmp.gt.f32.partialorder %v3426, 0.5
    %3534 = vrot.lane.b32.xlu0 %v3531, 32
    %v3535 = vpop.permute.xlu0 %3534
    %v3537 = vsel %vm3532, %v3535, %v3414
    %3539 = vrot.lane.b32.xlu0 %v3525, 96
    %v3540 = vpop.permute.xlu0 %3539
    %v3542 = vsel %vm3532, %v3540, %v3419
    %3544 = vrot.lane.b32.xlu0 %v3537, 32
    %v3545 = vpop.permute.xlu0 %3544
    %3547 = vst.msk [vmem:[%s2684] sm:$0xff] %vm1233, %v3545
    %v3548 = vld [vmem:[%s614] sm:$0xff]
    %v3549 = vld [vmem:[%s495] sm:$0xff]
    %3550 = vrot.lane.b32.xlu0 %v3537, 64
    %v3551 = vpop.permute.xlu0 %3550
    %v3553 = vsel %vm137, %v3548, %v3551
    %v3555 = vsel %vm2092, %v3553, 0
    %3557 = vmatprep.subr.mxu0 0.0
    %3558 = vmatpush1.msra.mxu0 0.0
    %3559 = vmatprep.subr.mxu0 0.0
    %3560 = vmatpush1.msra.mxu0 0.0
    %3561 = vmatprep.subr.mxu0 0.0
    %3562 = vmatpush1.msra.mxu0 0.0
    %3563 = vmatprep.subr.mxu0 0.0
    %3564 = vmatpush1.msra.mxu0 0.0
    %3565 = vmatprep.subr.mxu0 0.0
    %3566 = vmatpush1.msra.mxu0 %v3055
    %3567 = vmatprep.subr.mxu0 0.0
    %3568 = vmatpush1.msra.mxu0 %v3054
    %3569 = vmatprep.subr.mxu0 0.0
    %3570 = vmatpush1.msra.mxu0 %v3053
    %3571 = vmatprep.subr.mxu0 0.0
    %3572 = vmatpush1.msra.mxu0 %v3052
    %3573 = vmatprep.subr.mxu0 0.0
    %3574 = vmatpush1.msra.mxu0 %v3051
    %3575 = vmatprep.subr.mxu0 0.0
    %3576 = vmatpush1.msra.mxu0 %v3050
    %3577 = vmatprep.subr.mxu0 0.0
    %3578 = vmatpush1.msra.mxu0 %v3049
    %3579 = vmatprep.subr.mxu0 0.0
    %3580 = vmatpush1.msra.mxu0 %v3048
    %3581 = vmatprep.subr.mxu0 0.0
    %3582 = vmatpush1.msra.mxu0 %v3047
    %3583 = vmatprep.subr.mxu0 0.0
    %3584 = vmatpush1.msra.mxu0 %v3046
    %3585 = vmatprep.subr.mxu0 0.0
    %3586 = vmatpush1.msra.mxu0 %v3045
    %3587 = vmatprep.subr.mxu0 0.0
    %3588 = vmatpush1.msra.mxu0 %v3044
    %3589 = vmatprep.subr.mxu0 0.0
    %3590 = vmatpush2.msra.mxu0 0.0
    %3591 = vmatprep.subr.mxu0 0.0
    %3592 = vmatpush2.msra.mxu0 0.0
    %3593 = vmatprep.subr.mxu0 0.0
    %3594 = vmatpush2.msra.mxu0 0.0
    %3595 = vmatprep.subr.mxu0 0.0
    %3596 = vmatpush2.msra.mxu0 0.0
    %3597 = vmatprep.subr.mxu0 0.0
    %3598 = vmatpush2.msra.mxu0 0.0
    %3599 = vmatprep.subr.mxu0 0.0
    %3600 = vmatpush2.msra.mxu0 0.0
    %3601 = vmatprep.subr.mxu0 0.0
    %3602 = vmatpush2.msra.mxu0 0.0
    %3603 = vmatprep.subr.mxu0 0.0
    %3604 = vmatpush2.msra.mxu0 0.0
    %3605 = vmatprep.subr.mxu0 0.0
    %3606 = vmatpush2.msra.mxu0 0.0
    %3607 = vmatprep.subr.mxu0 0.0
    %3608 = vmatpush2.msra.mxu0 0.0
    %3609 = vmatprep.subr.mxu0 0.0
    %3610 = vmatpush2.msra.mxu0 0.0
    %3611 = vmatprep.subr.mxu0 0.0
    %3612 = vmatpush2.msra.mxu0 0.0
    %3613 = vmatprep.subr.mxu0 0.0
    %3614 = vmatpush2.msra.mxu0 0.0
    %3615 = vmatprep.subr.mxu0 0.0
    %3616 = vmatpush2.msra.mxu0 0.0
    %3617 = vmatprep.subr.mxu0 0.0
    %3618 = vmatpush2.msra.mxu0 0.0
    %3619 = vmatprep.subr.mxu0 0.0
    %3620 = vmatpush2.msra.mxu0 0.0
    %3621 = vmatprep.mubr.f32.mxu0 0.0
    %3622 = vmatmul.mubr.f32.gmra.mxu0 %v3555
    %v3623 = vpop.f32.mrf.mxu0
    %v3624 = vadd.f32 %v3061, %v3623
    %v3625 = vpop.f32.mrf.mxu0
    %3626 = vdwg.mxu0
    %v3627 = vxor.u32 %v3624, 2147483648
    %v3628 = vmul.f32 %v3627, 1.442695
    %v3629 = vpow.pop %v3628
    %v3630 = vadd.f32 %v3629, 1.0
    %v3631 = vrcp.pop %v3630
    %v3632 = vmul.f32 1.0, %v3631
    %v3633 = vtanh.pop %v3624
    %3635 = vrot.lane.b32.xlu0 %v3542, 32
    %v3636 = vpop.permute.xlu0 %3635
    %v3638 = vmul.f32 %v3632, %v3636
    %3640 = vrot.lane.b32.xlu0 %v3633, 64
    %v3641 = vpop.permute.xlu0 %3640
    %v3643 = vmul.f32 %v3632, %v3641
    %3645 = vrot.lane.b32.xlu0 %v3643, 32
    %v3646 = vpop.permute.xlu0 %3645
    %v3648 = vadd.f32 %v3638, %v3646
    %v3649 = vtanh.pop %v3648
    %3651 = vrot.lane.b32.xlu0 %v3649, 64
    %v3652 = vpop.permute.xlu0 %3651
    %v3654 = vmul.f32 %v3632, %v3652
    %vm3655 = vcmp.gt.f32.partialorder %v3549, 0.5
    %3657 = vrot.lane.b32.xlu0 %v3654, 32
    %v3658 = vpop.permute.xlu0 %3657
    %v3660 = vsel %vm3655, %v3658, %v3537
    %3662 = vrot.lane.b32.xlu0 %v3648, 96
    %v3663 = vpop.permute.xlu0 %3662
    %v3665 = vsel %vm3655, %v3663, %v3542
    %3667 = vrot.lane.b32.xlu0 %v3660, 32
    %v3668 = vpop.permute.xlu0 %3667
    %3670 = vst.msk [vmem:[%s2563] sm:$0xff] %vm1233, %v3668
    %v3671 = vld [vmem:[%s491] sm:$0xff]
    %v3672 = vld [vmem:[%s372] sm:$0xff]
    %3673 = vrot.lane.b32.xlu0 %v3660, 64
    %v3674 = vpop.permute.xlu0 %3673
    %v3676 = vsel %vm137, %v3671, %v3674
    %v3678 = vsel %vm2092, %v3676, 0
    %3680 = vmatprep.subr.mxu0 0.0
    %3681 = vmatpush1.msra.mxu0 0.0
    %3682 = vmatprep.subr.mxu0 0.0
    %3683 = vmatpush1.msra.mxu0 0.0
    %3684 = vmatprep.subr.mxu0 0.0
    %3685 = vmatpush1.msra.mxu0 0.0
    %3686 = vmatprep.subr.mxu0 0.0
    %3687 = vmatpush1.msra.mxu0 0.0
    %3688 = vmatprep.subr.mxu0 0.0
    %3689 = vmatpush1.msra.mxu0 %v3055
    %3690 = vmatprep.subr.mxu0 0.0
    %3691 = vmatpush1.msra.mxu0 %v3054
    %3692 = vmatprep.subr.mxu0 0.0
    %3693 = vmatpush1.msra.mxu0 %v3053
    %3694 = vmatprep.subr.mxu0 0.0
    %3695 = vmatpush1.msra.mxu0 %v3052
    %3696 = vmatprep.subr.mxu0 0.0
    %3697 = vmatpush1.msra.mxu0 %v3051
    %3698 = vmatprep.subr.mxu0 0.0
    %3699 = vmatpush1.msra.mxu0 %v3050
    %3700 = vmatprep.subr.mxu0 0.0
    %3701 = vmatpush1.msra.mxu0 %v3049
    %3702 = vmatprep.subr.mxu0 0.0
    %3703 = vmatpush1.msra.mxu0 %v3048
    %3704 = vmatprep.subr.mxu0 0.0
    %3705 = vmatpush1.msra.mxu0 %v3047
    %3706 = vmatprep.subr.mxu0 0.0
    %3707 = vmatpush1.msra.mxu0 %v3046
    %3708 = vmatprep.subr.mxu0 0.0
    %3709 = vmatpush1.msra.mxu0 %v3045
    %3710 = vmatprep.subr.mxu0 0.0
    %3711 = vmatpush1.msra.mxu0 %v3044
    %3712 = vmatprep.subr.mxu0 0.0
    %3713 = vmatpush2.msra.mxu0 0.0
    %3714 = vmatprep.subr.mxu0 0.0
    %3715 = vmatpush2.msra.mxu0 0.0
    %3716 = vmatprep.subr.mxu0 0.0
    %3717 = vmatpush2.msra.mxu0 0.0
    %3718 = vmatprep.subr.mxu0 0.0
    %3719 = vmatpush2.msra.mxu0 0.0
    %3720 = vmatprep.subr.mxu0 0.0
    %3721 = vmatpush2.msra.mxu0 0.0
    %3722 = vmatprep.subr.mxu0 0.0
    %3723 = vmatpush2.msra.mxu0 0.0
    %3724 = vmatprep.subr.mxu0 0.0
    %3725 = vmatpush2.msra.mxu0 0.0
    %3726 = vmatprep.subr.mxu0 0.0
    %3727 = vmatpush2.msra.mxu0 0.0
    %3728 = vmatprep.subr.mxu0 0.0
    %3729 = vmatpush2.msra.mxu0 0.0
    %3730 = vmatprep.subr.mxu0 0.0
    %3731 = vmatpush2.msra.mxu0 0.0
    %3732 = vmatprep.subr.mxu0 0.0
    %3733 = vmatpush2.msra.mxu0 0.0
    %3734 = vmatprep.subr.mxu0 0.0
    %3735 = vmatpush2.msra.mxu0 0.0
    %3736 = vmatprep.subr.mxu0 0.0
    %3737 = vmatpush2.msra.mxu0 0.0
    %3738 = vmatprep.subr.mxu0 0.0
    %3739 = vmatpush2.msra.mxu0 0.0
    %3740 = vmatprep.subr.mxu0 0.0
    %3741 = vmatpush2.msra.mxu0 0.0
    %3742 = vmatprep.subr.mxu0 0.0
    %3743 = vmatpush2.msra.mxu0 0.0
    %3744 = vmatprep.mubr.f32.mxu0 0.0
    %3745 = vmatmul.mubr.f32.gmra.mxu0 %v3678
    %v3746 = vpop.f32.mrf.mxu0
    %v3747 = vadd.f32 %v3061, %v3746
    %v3748 = vpop.f32.mrf.mxu0
    %3749 = vdwg.mxu0
    %v3750 = vxor.u32 %v3747, 2147483648
    %v3751 = vmul.f32 %v3750, 1.442695
    %v3752 = vpow.pop %v3751
    %v3753 = vadd.f32 %v3752, 1.0
    %v3754 = vrcp.pop %v3753
    %v3755 = vmul.f32 1.0, %v3754
    %v3756 = vtanh.pop %v3747
    %3758 = vrot.lane.b32.xlu0 %v3665, 32
    %v3759 = vpop.permute.xlu0 %3758
    %v3761 = vmul.f32 %v3755, %v3759
    %3763 = vrot.lane.b32.xlu0 %v3756, 64
    %v3764 = vpop.permute.xlu0 %3763
    %v3766 = vmul.f32 %v3755, %v3764
    %3768 = vrot.lane.b32.xlu0 %v3766, 32
    %v3769 = vpop.permute.xlu0 %3768
    %v3771 = vadd.f32 %v3761, %v3769
    %v3772 = vtanh.pop %v3771
    %3774 = vrot.lane.b32.xlu0 %v3772, 64
    %v3775 = vpop.permute.xlu0 %3774
    %v3777 = vmul.f32 %v3755, %v3775
    %vm3778 = vcmp.gt.f32.partialorder %v3672, 0.5
    %3780 = vrot.lane.b32.xlu0 %v3777, 32
    %v3781 = vpop.permute.xlu0 %3780
    %v3783 = vsel %vm3778, %v3781, %v3660
    %3785 = vrot.lane.b32.xlu0 %v3771, 96
    %v3786 = vpop.permute.xlu0 %3785
    %v3788 = vsel %vm3778, %v3786, %v3665
    %3790 = vrot.lane.b32.xlu0 %v3783, 32
    %v3791 = vpop.permute.xlu0 %3790
    %3793 = vst.msk [vmem:[%s2442] sm:$0xff] %vm1233, %v3791
    %v3794 = vld [vmem:[%s368] sm:$0xff]
    %v3795 = vld [vmem:[%s249] sm:$0xff]
    %3796 = vrot.lane.b32.xlu0 %v3783, 64
    %v3797 = vpop.permute.xlu0 %3796
    %v3799 = vsel %vm137, %v3794, %v3797
    %v3801 = vsel %vm2092, %v3799, 0
    %3803 = vmatprep.subr.mxu0 0.0
    %3804 = vmatpush1.msra.mxu0 0.0
    %3805 = vmatprep.subr.mxu0 0.0
    %3806 = vmatpush1.msra.mxu0 0.0
    %3807 = vmatprep.subr.mxu0 0.0
    %3808 = vmatpush1.msra.mxu0 0.0
    %3809 = vmatprep.subr.mxu0 0.0
    %3810 = vmatpush1.msra.mxu0 0.0
    %3811 = vmatprep.subr.mxu0 0.0
    %3812 = vmatpush1.msra.mxu0 %v3055
    %3813 = vmatprep.subr.mxu0 0.0
    %3814 = vmatpush1.msra.mxu0 %v3054
    %3815 = vmatprep.subr.mxu0 0.0
    %3816 = vmatpush1.msra.mxu0 %v3053
    %3817 = vmatprep.subr.mxu0 0.0
    %3818 = vmatpush1.msra.mxu0 %v3052
    %3819 = vmatprep.subr.mxu0 0.0
    %3820 = vmatpush1.msra.mxu0 %v3051
    %3821 = vmatprep.subr.mxu0 0.0
    %3822 = vmatpush1.msra.mxu0 %v3050
    %3823 = vmatprep.subr.mxu0 0.0
    %3824 = vmatpush1.msra.mxu0 %v3049
    %3825 = vmatprep.subr.mxu0 0.0
    %3826 = vmatpush1.msra.mxu0 %v3048
    %3827 = vmatprep.subr.mxu0 0.0
    %3828 = vmatpush1.msra.mxu0 %v3047
    %3829 = vmatprep.subr.mxu0 0.0
    %3830 = vmatpush1.msra.mxu0 %v3046
    %3831 = vmatprep.subr.mxu0 0.0
    %3832 = vmatpush1.msra.mxu0 %v3045
    %3833 = vmatprep.subr.mxu0 0.0
    %3834 = vmatpush1.msra.mxu0 %v3044
    %3835 = vmatprep.subr.mxu0 0.0
    %3836 = vmatpush2.msra.mxu0 0.0
    %3837 = vmatprep.subr.mxu0 0.0
    %3838 = vmatpush2.msra.mxu0 0.0
    %3839 = vmatprep.subr.mxu0 0.0
    %3840 = vmatpush2.msra.mxu0 0.0
    %3841 = vmatprep.subr.mxu0 0.0
    %3842 = vmatpush2.msra.mxu0 0.0
    %3843 = vmatprep.subr.mxu0 0.0
    %3844 = vmatpush2.msra.mxu0 0.0
    %3845 = vmatprep.subr.mxu0 0.0
    %3846 = vmatpush2.msra.mxu0 0.0
    %3847 = vmatprep.subr.mxu0 0.0
    %3848 = vmatpush2.msra.mxu0 0.0
    %3849 = vmatprep.subr.mxu0 0.0
    %3850 = vmatpush2.msra.mxu0 0.0
    %3851 = vmatprep.subr.mxu0 0.0
    %3852 = vmatpush2.msra.mxu0 0.0
    %3853 = vmatprep.subr.mxu0 0.0
    %3854 = vmatpush2.msra.mxu0 0.0
    %3855 = vmatprep.subr.mxu0 0.0
    %3856 = vmatpush2.msra.mxu0 0.0
    %3857 = vmatprep.subr.mxu0 0.0
    %3858 = vmatpush2.msra.mxu0 0.0
    %3859 = vmatprep.subr.mxu0 0.0
    %3860 = vmatpush2.msra.mxu0 0.0
    %3861 = vmatprep.subr.mxu0 0.0
    %3862 = vmatpush2.msra.mxu0 0.0
    %3863 = vmatprep.subr.mxu0 0.0
    %3864 = vmatpush2.msra.mxu0 0.0
    %3865 = vmatprep.subr.mxu0 0.0
    %3866 = vmatpush2.msra.mxu0 0.0
    %3867 = vmatprep.mubr.f32.mxu0 0.0
    %3868 = vmatmul.mubr.f32.gmra.mxu0 %v3801
    %v3869 = vpop.f32.mrf.mxu0
    %v3870 = vadd.f32 %v3061, %v3869
    %v3871 = vpop.f32.mrf.mxu0
    %3872 = vdwg.mxu0
    %v3873 = vxor.u32 %v3870, 2147483648
    %v3874 = vmul.f32 %v3873, 1.442695
    %v3875 = vpow.pop %v3874
    %v3876 = vadd.f32 %v3875, 1.0
    %v3877 = vrcp.pop %v3876
    %v3878 = vmul.f32 1.0, %v3877
    %v3879 = vtanh.pop %v3870
    %3881 = vrot.lane.b32.xlu0 %v3788, 32
    %v3882 = vpop.permute.xlu0 %3881
    %v3884 = vmul.f32 %v3878, %v3882
    %3886 = vrot.lane.b32.xlu0 %v3879, 64
    %v3887 = vpop.permute.xlu0 %3886
    %v3889 = vmul.f32 %v3878, %v3887
    %3891 = vrot.lane.b32.xlu0 %v3889, 32
    %v3892 = vpop.permute.xlu0 %3891
    %v3894 = vadd.f32 %v3884, %v3892
    %v3895 = vtanh.pop %v3894
    %3897 = vrot.lane.b32.xlu0 %v3895, 64
    %v3898 = vpop.permute.xlu0 %3897
    %v3900 = vmul.f32 %v3878, %v3898
    %vm3901 = vcmp.gt.f32.partialorder %v3795, 0.5
    %3903 = vrot.lane.b32.xlu0 %v3900, 32
    %v3904 = vpop.permute.xlu0 %3903
    %v3906 = vsel %vm3901, %v3904, %v3783
    %3908 = vrot.lane.b32.xlu0 %v3894, 96
    %v3909 = vpop.permute.xlu0 %3908
    %v3911 = vsel %vm3901, %v3909, %v3788
    %3913 = vrot.lane.b32.xlu0 %v3906, 32
    %v3914 = vpop.permute.xlu0 %3913
    %3916 = vst.msk [vmem:[%s2321] sm:$0xff] %vm1233, %v3914
    %v3917 = vld [vmem:[#allocation2] sm:$0xff]
    %v3918 = vld [vmem:[#allocation7] sm:$0xff]
    %3919 = vrot.lane.b32.xlu0 %v3906, 64
    %v3920 = vpop.permute.xlu0 %3919
    %v3922 = vsel %vm137, %v3917, %v3920
    %v3924 = vsel %vm2092, %v3922, 0
    %3926 = vmatprep.subr.mxu0 0.0
    %3927 = vmatpush1.msra.mxu0 0.0
    %3928 = vmatprep.subr.mxu0 0.0
    %3929 = vmatpush1.msra.mxu0 0.0
    %3930 = vmatprep.subr.mxu0 0.0
    %3931 = vmatpush1.msra.mxu0 0.0
    %3932 = vmatprep.subr.mxu0 0.0
    %3933 = vmatpush1.msra.mxu0 0.0
    %3934 = vmatprep.subr.mxu0 0.0
    %3935 = vmatpush1.msra.mxu0 %v3055
    %3936 = vmatprep.subr.mxu0 0.0
    %3937 = vmatpush1.msra.mxu0 %v3054
    %3938 = vmatprep.subr.mxu0 0.0
    %3939 = vmatpush1.msra.mxu0 %v3053
    %3940 = vmatprep.subr.mxu0 0.0
    %3941 = vmatpush1.msra.mxu0 %v3052
    %3942 = vmatprep.subr.mxu0 0.0
    %3943 = vmatpush1.msra.mxu0 %v3051
    %3944 = vmatprep.subr.mxu0 0.0
    %3945 = vmatpush1.msra.mxu0 %v3050
    %3946 = vmatprep.subr.mxu0 0.0
    %3947 = vmatpush1.msra.mxu0 %v3049
    %3948 = vmatprep.subr.mxu0 0.0
    %3949 = vmatpush1.msra.mxu0 %v3048
    %3950 = vmatprep.subr.mxu0 0.0
    %3951 = vmatpush1.msra.mxu0 %v3047
    %3952 = vmatprep.subr.mxu0 0.0
    %3953 = vmatpush1.msra.mxu0 %v3046
    %3954 = vmatprep.subr.mxu0 0.0
    %3955 = vmatpush1.msra.mxu0 %v3045
    %3956 = vmatprep.subr.mxu0 0.0
    %3957 = vmatpush1.msra.mxu0 %v3044
    %3958 = vmatprep.subr.mxu0 0.0
    %3959 = vmatpush2.msra.mxu0 0.0
    %3960 = vmatprep.subr.mxu0 0.0
    %3961 = vmatpush2.msra.mxu0 0.0
    %3962 = vmatprep.subr.mxu0 0.0
    %3963 = vmatpush2.msra.mxu0 0.0
    %3964 = vmatprep.subr.mxu0 0.0
    %3965 = vmatpush2.msra.mxu0 0.0
    %3966 = vmatprep.subr.mxu0 0.0
    %3967 = vmatpush2.msra.mxu0 0.0
    %3968 = vmatprep.subr.mxu0 0.0
    %3969 = vmatpush2.msra.mxu0 0.0
    %3970 = vmatprep.subr.mxu0 0.0
    %3971 = vmatpush2.msra.mxu0 0.0
    %3972 = vmatprep.subr.mxu0 0.0
    %3973 = vmatpush2.msra.mxu0 0.0
    %3974 = vmatprep.subr.mxu0 0.0
    %3975 = vmatpush2.msra.mxu0 0.0
    %3976 = vmatprep.subr.mxu0 0.0
    %3977 = vmatpush2.msra.mxu0 0.0
    %3978 = vmatprep.subr.mxu0 0.0
    %3979 = vmatpush2.msra.mxu0 0.0
    %3980 = vmatprep.subr.mxu0 0.0
    %3981 = vmatpush2.msra.mxu0 0.0
    %3982 = vmatprep.subr.mxu0 0.0
    %3983 = vmatpush2.msra.mxu0 0.0
    %3984 = vmatprep.subr.mxu0 0.0
    %3985 = vmatpush2.msra.mxu0 0.0
    %3986 = vmatprep.subr.mxu0 0.0
    %3987 = vmatpush2.msra.mxu0 0.0
    %3988 = vmatprep.subr.mxu0 0.0
    %3989 = vmatpush2.msra.mxu0 0.0
    %3990 = vmatprep.mubr.f32.mxu0 0.0
    %3991 = vmatmul.mubr.f32.gmra.mxu0 %v3924
    %v3992 = vpop.f32.mrf.mxu0
    %v3993 = vadd.f32 %v3061, %v3992
    %v3994 = vpop.f32.mrf.mxu0
    %3995 = vdwg.mxu0
    %v3996 = vxor.u32 %v3993, 2147483648
    %v3997 = vmul.f32 %v3996, 1.442695
    %v3998 = vpow.pop %v3997
    %v3999 = vadd.f32 %v3998, 1.0
    %v4000 = vrcp.pop %v3999
    %v4001 = vmul.f32 1.0, %v4000
    %v4002 = vtanh.pop %v3993
    %4004 = vrot.lane.b32.xlu0 %v3911, 32
    %v4005 = vpop.permute.xlu0 %4004
    %v4007 = vmul.f32 %v4001, %v4005
    %4009 = vrot.lane.b32.xlu0 %v4002, 64
    %v4010 = vpop.permute.xlu0 %4009
    %v4012 = vmul.f32 %v4001, %v4010
    %4014 = vrot.lane.b32.xlu0 %v4012, 32
    %v4015 = vpop.permute.xlu0 %4014
    %v4017 = vadd.f32 %v4007, %v4015
    %v4018 = vtanh.pop %v4017
    %4020 = vrot.lane.b32.xlu0 %v4018, 64
    %v4021 = vpop.permute.xlu0 %4020
    %v4023 = vmul.f32 %v4001, %v4021
    %vm4024 = vcmp.gt.f32.partialorder %v3918, 0.5
    %4026 = vrot.lane.b32.xlu0 %v4023, 32
    %v4027 = vpop.permute.xlu0 %4026
    %v4029 = vsel %vm4024, %v4027, %v3906
    %4031 = vrot.lane.b32.xlu0 %v4029, 32
    %v4032 = vpop.permute.xlu0 %4031
    %4034 = vst.msk [vmem:[#allocation15] sm:$0xff] %vm1233, %v4032
    // Predicated region
    $region66: #{tpu_custom_call.1} parent=1 // pred_check
      _
    $region67: #{tpu_custom_call.1} parent=1 // pred_check_branch
      %4036 = sbr.rel (0) target = $region69
    $region68: #{tpu_custom_call.1} parent=1 // pred_region
      %s4038 = ssub.s32 1024, 1024
      %4039 = vsyncadd [#allocation6], %s4038
      %s4040 = sshll.u32 [#allocation15], 4
      %s4041 = int_to_ptr.vmem [resolvable:$true] %s4040
      %4046 = dma.vmem_to_hbm [thread:$0]  %s4041, 1024, %s10, [#allocation6], 128, 128, 8
    $region69: #{tpu_custom_call.1} parent=1 // pred_fallthru
      _
    // Predicated region
    $region70: #{tpu_custom_call.1} parent=1 // pred_check
      _
    $region71: #{tpu_custom_call.1} parent=1 // pred_check_branch
      %4048 = sbr.rel (0) target = $region73
    $region72: #{tpu_custom_call.1} parent=1 // pred_region
      %4049 = dma.done [#allocation6], 1024
    $region73: #{tpu_custom_call.1} parent=1 // pred_fallthru
      _
    %4050 = vsyncpa [#allocation5], 1
    %4051 = vsyncpa [#allocation8], 1
    %4052 = vsyncpa [#allocation11], 1
    %4053 = vsyncpa [#allocation14], 1
    %4054 = vsyncpa [#allocation6], 1

</llo_original>
